<compile_context>
chip_gen: v7x
topology: tpu7x:2x2x1
jax: 0.10.0
libtpu: 0.0.40
codegen_flags: <defaults>
</compile_context>

<pallas_src>
import functools

import jax
import jax.numpy as jnp
from jax.experimental import pallas as pl
from jax.experimental.pallas import tpu as pltpu

NUM_CLASSES = 9
IN_CH = 103
PATCH = 5           # spatial size implied by the forward (3x3 conv -> 3x3 map -> maxpool3; maxpool5 on 5x5)
BN_EPS = 1e-5
C_PAD = 128         # 103 channels padded to one lane width
K1 = 9 * C_PAD      # conv1a contraction: 9 taps x 128 padded channels


def _round_up(v, m):
    return (v + m - 1) // m * m


# --------------------------------------------------------------------------------------
# Pass 1: conv1a(3x3)+maxpool3 || conv1b(1x1)+maxpool5 -> feat:(tn,128) bf16
#         + per-tile BatchNorm partial sums (f32).
# --------------------------------------------------------------------------------------
def _feat_kernel(slab_ref, w1a_ref, w1b_ref, bias_ref, feat_ref, ssum_ref, ssq_ref):
    tn = feat_ref.shape[0]
    slab = slab_ref[...]                                        # (25, tn, 128) bf16

    # conv1b (1x1): fold all 25 spatial positions into M -> one K=128 matmul,
    # then MaxPool2d(5) == max over positions.  Output lives in lanes 64:128.
    y1b = jnp.dot(slab.reshape(25 * tn, C_PAD), w1b_ref[...],
                  preferred_element_type=jnp.float32)           # (25*tn, 128)
    m1b = y1b[0:tn]
    for p in range(1, 25):
        m1b = jnp.maximum(m1b, y1b[p * tn:(p + 1) * tn])

    # conv1a (3x3): assemble each output position's 3x3 patch (K=1152) in VMEM from the
    # shared slab, one full-depth matmul per position; MaxPool2d(3) == running max.
    # Output lives in lanes 0:64 (lanes 64:128 of the weight are zero).
    m1a = None
    for oi in range(3):
        for oj in range(3):
            taps = [slab[(oi + ki) * 5 + (oj + kj)] for ki in range(3) for kj in range(3)]
            patch = jnp.concatenate(taps, axis=-1)              # (tn, 1152) bf16
            y = jnp.dot(patch, w1a_ref[...],
                        preferred_element_type=jnp.float32)     # (tn, 128)
            m1a = y if m1a is None else jnp.maximum(m1a, y)

    # Fused branches (zero halves don't interact) + bias hoisted out of the max.
    feat = m1a + m1b + bias_ref[...]                            # (tn, 128) f32
    feat_ref[...] = feat.astype(feat_ref.dtype)                 # bf16 writeback

    # BatchNorm partial statistics in f32 (8-row groups -> lane/sublane-friendly output).
    f3 = feat.reshape(tn // 8, 8, C_PAD)
    ssum_ref[...] = jnp.sum(f3, axis=0)
    ssq_ref[...] = jnp.sum(f3 * f3, axis=0)


# --------------------------------------------------------------------------------------
# Pass 2: BN(affine-folded) -> ReLU -> conv2a -> ReLU -> conv2b -> residual -> fc
# --------------------------------------------------------------------------------------
def _head_kernel(feat_ref, scale_ref, shift_ref,
                 w2a_ref, b2a_ref, w2b_ref, b2b_ref, wfc_ref, bfc_ref, out_ref):
    feat = feat_ref[...].astype(jnp.float32)                    # (tn, 128)

    h = feat * scale_ref[...] + shift_ref[...]                  # BatchNorm folded to affine
    h = jnp.maximum(h, 0.0)                                     # ReLU
    h = jnp.dot(h.astype(jnp.bfloat16), w2a_ref[...],
                preferred_element_type=jnp.float32) + b2a_ref[...]   # conv2a (1x1)
    h = jnp.maximum(h, 0.0)                                     # ReLU
    h = jnp.dot(h.astype(jnp.bfloat16), w2b_ref[...],
                preferred_element_type=jnp.float32) + b2b_ref[...]   # conv2b (1x1)

    res = feat + h                                              # residual on pre-BN feat
    out = jnp.dot(res.astype(jnp.bfloat16), wfc_ref[...],
                  preferred_element_type=jnp.float32) + bfc_ref[...]  # fc, 128 padded lanes
    out_ref[...] = out.astype(out_ref.dtype)


# --------------------------------------------------------------------------------------
# Glue
# --------------------------------------------------------------------------------------
def init_params(key, num_classes=NUM_CLASSES):
    ks = jax.random.split(key, 10)

    def w(k, shape, fan_in):
        return (jax.random.normal(k, shape, jnp.float32) / jnp.sqrt(fan_in)).astype(jnp.float32)

    return dict(
        w1a=w(ks[0], (64, IN_CH, 3, 3), IN_CH * 9),
        b1a=w(ks[1], (64,), IN_CH * 9),
        w1b=w(ks[2], (64, IN_CH, 1, 1), IN_CH),
        b1b=w(ks[3], (64,), IN_CH),
        gamma=jnp.ones((128,), jnp.float32),
        beta=jnp.zeros((128,), jnp.float32),
        w2a=w(ks[4], (128, 128, 1, 1), 128),
        b2a=w(ks[5], (128,), 128),
        w2b=w(ks[6], (128, 128, 1, 1), 128),
        b2b=w(ks[7], (128,), 128),
        wfc=w(ks[8], (num_classes, 128), 128),
        bfc=w(ks[9], (num_classes,), 128),
    )


@functools.partial(jax.jit, static_argnames=("tile_n",))
def wcrn_forward(x, params, tile_n=512):
    n = x.shape[0]
    num_classes = params["wfc"].shape[0]

    # Batch tiling: large tiles for DMA efficiency; if everything fits in one tile and
    # the batch is non-trivial, split in two so the "parallel" axis can use both v7x TCs.
    tn = min(tile_n, _round_up(n, 8))
    if n > 8 and _round_up(n, tn) // tn < 2:
        tn = _round_up((n + 1) // 2, 8)
    n_pad = _round_up(n, tn)
    grid_n = n_pad // tn

    # Single bf16 input slab, spatial-position-major: (25, n_pad, 128).
    xp = jnp.pad(x.astype(jnp.float32), ((0, n_pad - n), (0, 0), (0, 0), (0, 0)))
    slab = xp.transpose(2, 3, 0, 1).reshape(PATCH * PATCH, n_pad, IN_CH)
    slab = jnp.pad(slab, ((0, 0), (0, 0), (0, C_PAD - IN_CH))).astype(jnp.bfloat16)

    # Fused first-layer weights:
    #   w1a -> (1152, 128): tap-major K blocks (per-tap channel pad 103->128), out lanes 0:64
    #   w1b -> ( 128, 128): channel pad 103->128, out lanes 64:128
    w1a = params["w1a"].transpose(2, 3, 1, 0).reshape(9, IN_CH, 64)
    w1a = jnp.pad(w1a, ((0, 0), (0, C_PAD - IN_CH), (0, 0))).reshape(K1, 64)
    w1a = jnp.pad(w1a, ((0, 0), (0, 64))).astype(jnp.bfloat16)
    w1b = params["w1b"].reshape(64, IN_CH).T
    w1b = jnp.pad(w1b, ((0, C_PAD - IN_CH), (64, 0))).astype(jnp.bfloat16)
    bias_f = jnp.concatenate([params["b1a"], params["b1b"]]).astype(jnp.float32)   # (128,)
    bias = bias_f.reshape(1, C_PAD)

    cparams = pltpu.CompilerParams(
        dimension_semantics=("parallel",),
        vmem_limit_bytes=48 << 20,
    )

    # ---------------- pass 1: feature extraction + BN partial stats ----------------
    feat, ssum, ssq = pl.pallas_call(
        _feat_kernel,
        out_shape=(
            jax.ShapeDtypeStruct((n_pad, C_PAD), jnp.bfloat16),
            jax.ShapeDtypeStruct((grid_n * 8, C_PAD), jnp.float32),
            jax.ShapeDtypeStruct((grid_n * 8, C_PAD), jnp.float32),
        ),
        grid_spec=pltpu.PrefetchScalarGridSpec(
            num_scalar_prefetch=0,
            grid=(grid_n,),
            in_specs=[
                pl.BlockSpec((PATCH * PATCH, tn, C_PAD), lambda i: (0, i, 0)),
                pl.BlockSpec((K1, C_PAD), lambda i: (0, 0)),
                pl.BlockSpec((C_PAD, C_PAD), lambda i: (0, 0)),
                pl.BlockSpec((1, C_PAD), lambda i: (0, 0)),
            ],
            out_specs=(
                pl.BlockSpec((tn, C_PAD), lambda i: (i, 0)),
                pl.BlockSpec((8, C_PAD), lambda i: (i, 0)),
                pl.BlockSpec((8, C_PAD), lambda i: (i, 0)),
            ),
        ),
        compiler_params=cparams,
    )(slab, w1a, w1b, bias)

    # BatchNorm2d (training-mode batch stats, biased variance) from the per-tile partial
    # sums.  Padded rows contribute exactly `bias` per channel (zero input -> conv = 0,
    # max = 0, + bias), so remove them analytically instead of re-sweeping feat.
    n_fake = jnp.float32(n_pad - n)
    s1 = jnp.sum(ssum, axis=0) - n_fake * bias_f
    s2 = jnp.sum(ssq, axis=0) - n_fake * bias_f * bias_f
    mean = s1 / n
    var = jnp.maximum(s2 / n - mean * mean, 0.0)
    inv = jax.lax.rsqrt(var + BN_EPS)
    scale = (params["gamma"] * inv).reshape(1, C_PAD).astype(jnp.float32)
    shift = (params["beta"] - params["gamma"] * mean * inv).reshape(1, C_PAD).astype(jnp.float32)

    w2a = params["w2a"].reshape(128, 128).T.astype(jnp.bfloat16)
    w2b = params["w2b"].reshape(128, 128).T.astype(jnp.bfloat16)
    b2a = params["b2a"].reshape(1, 128).astype(jnp.float32)
    b2b = params["b2b"].reshape(1, 128).astype(jnp.float32)
    wfc = jnp.pad(params["wfc"].T, ((0, 0), (0, 128 - num_classes))).astype(jnp.bfloat16)
    bfc = jnp.pad(params["bfc"].reshape(1, -1), ((0, 0), (0, 128 - num_classes))).astype(jnp.float32)

    # ---------------- pass 2: BN + MLP head (lane-dense 128-wide bf16 output) ----------------
    out = pl.pallas_call(
        _head_kernel,
        out_shape=jax.ShapeDtypeStruct((n_pad, 128), jnp.bfloat16),
        grid_spec=pltpu.PrefetchScalarGridSpec(
            num_scalar_prefetch=0,
            grid=(grid_n,),
            in_specs=[
                pl.BlockSpec((tn, 128), lambda i: (i, 0)),
                pl.BlockSpec((1, 128), lambda i: (0, 0)),
                pl.BlockSpec((1, 128), lambda i: (0, 0)),
                pl.BlockSpec((128, 128), lambda i: (0, 0)),
                pl.BlockSpec((1, 128), lambda i: (0, 0)),
                pl.BlockSpec((128, 128), lambda i: (0, 0)),
                pl.BlockSpec((1, 128), lambda i: (0, 0)),
                pl.BlockSpec((128, 128), lambda i: (0, 0)),
                pl.BlockSpec((1, 128), lambda i: (0, 0)),
            ],
            out_specs=pl.BlockSpec((tn, 128), lambda i: (i, 0)),
        ),
        compiler_params=cparams,
    )(feat, scale, shift, w2a, b2a, w2b, b2b, wfc, bfc)

    return out[:n, :num_classes].astype(jnp.float32)


if __name__ == "__main__":
    key = jax.random.PRNGKey(0)
    k_x, k_p = jax.random.split(key)
    N = 4
    x = jax.random.normal(k_x, (N, IN_CH, PATCH, PATCH), jnp.float32)
    params = init_params(k_p)

    logits = wcrn_forward(x, params)
    logits = jax.block_until_ready(logits)
    assert logits.shape == (N, NUM_CLASSES), logits.shape
    assert bool(jnp.all(jnp.isfinite(logits)))
    print("KERNEL_OK")
</pallas_src>

<mosaic_0001>
module attributes {stable_mosaic.version = 11 : i64} {
  func.func @_feat_kernel(%arg0: i32, %arg1: memref<25x8x128xbf16, #tpu.memory_space<vmem>>, %arg2: memref<1152x128xbf16, #tpu.memory_space<vmem>>, %arg3: memref<128x128xbf16, #tpu.memory_space<vmem>>, %arg4: memref<1x128xf32, #tpu.memory_space<vmem>>, %arg5: memref<8x128xbf16, #tpu.memory_space<vmem>>, %arg6: memref<8x128xf32, #tpu.memory_space<vmem>>, %arg7: memref<8x128xf32, #tpu.memory_space<vmem>>) attributes {dimension_semantics = [#tpu.dimension_semantics<parallel>], iteration_bounds = array<i64: 1>, scalar_prefetch = 0 : i64, scratch_operands = 0 : i64, tpu.core_type = #tpu.core_type<tc>, window_params = [{transform_indices = @transform_0, window_bounds = array<i64: 25, 8, 128>}, {pipeline_mode = #tpu.pipeline_mode<synchronous>, transform_indices = @transform_1, window_bounds = array<i64: 1152, 128>}, {pipeline_mode = #tpu.pipeline_mode<synchronous>, transform_indices = @transform_2, window_bounds = array<i64: 128, 128>}, {pipeline_mode = #tpu.pipeline_mode<synchronous>, transform_indices = @transform_3, window_bounds = array<i64: 1, 128>}, {transform_indices = @transform_4, window_bounds = array<i64: 8, 128>}, {transform_indices = @transform_5, window_bounds = array<i64: 8, 128>}, {transform_indices = @transform_6, window_bounds = array<i64: 8, 128>}]} {
    %c0 = arith.constant 0 : index
    %c0_0 = arith.constant 0 : index
    %c0_1 = arith.constant 0 : index
    %0 = vector.load %arg1[%c0, %c0_0, %c0_1] : memref<25x8x128xbf16, #tpu.memory_space<vmem>>, vector<25x8x128xbf16>
    %1 = vector.shape_cast %0 : vector<25x8x128xbf16> to vector<200x128xbf16>
    %c0_2 = arith.constant 0 : index
    %c0_3 = arith.constant 0 : index
    %2 = vector.load %arg3[%c0_2, %c0_3] : memref<128x128xbf16, #tpu.memory_space<vmem>>, vector<128x128xbf16>
    %cst = arith.constant dense<0.000000e+00> : vector<200x128xf32>
    %3 = tpu.matmul %1, %2, %cst {dimension_numbers = #tpu.dot_dimension_numbers<[1], [0], [0], [1], [0, 0, 1, 1], [], []>} : vector<200x128xbf16>, vector<128x128xbf16>, vector<200x128xf32> -> vector<200x128xf32>
    %4 = vector.extract_strided_slice %3 {offsets = [0, 0], sizes = [8, 128], strides = [1, 1]} : vector<200x128xf32> to vector<8x128xf32>
    %5 = vector.extract_strided_slice %3 {offsets = [8, 0], sizes = [8, 128], strides = [1, 1]} : vector<200x128xf32> to vector<8x128xf32>
    %6 = arith.maximumf %4, %5 : vector<8x128xf32>
    %7 = vector.extract_strided_slice %3 {offsets = [16, 0], sizes = [8, 128], strides = [1, 1]} : vector<200x128xf32> to vector<8x128xf32>
    %8 = arith.maximumf %6, %7 : vector<8x128xf32>
    %9 = vector.extract_strided_slice %3 {offsets = [24, 0], sizes = [8, 128], strides = [1, 1]} : vector<200x128xf32> to vector<8x128xf32>
    %10 = arith.maximumf %8, %9 : vector<8x128xf32>
    %11 = vector.extract_strided_slice %3 {offsets = [32, 0], sizes = [8, 128], strides = [1, 1]} : vector<200x128xf32> to vector<8x128xf32>
    %12 = arith.maximumf %10, %11 : vector<8x128xf32>
    %13 = vector.extract_strided_slice %3 {offsets = [40, 0], sizes = [8, 128], strides = [1, 1]} : vector<200x128xf32> to vector<8x128xf32>
    %14 = arith.maximumf %12, %13 : vector<8x128xf32>
    %15 = vector.extract_strided_slice %3 {offsets = [48, 0], sizes = [8, 128], strides = [1, 1]} : vector<200x128xf32> to vector<8x128xf32>
    %16 = arith.maximumf %14, %15 : vector<8x128xf32>
    %17 = vector.extract_strided_slice %3 {offsets = [56, 0], sizes = [8, 128], strides = [1, 1]} : vector<200x128xf32> to vector<8x128xf32>
    %18 = arith.maximumf %16, %17 : vector<8x128xf32>
    %19 = vector.extract_strided_slice %3 {offsets = [64, 0], sizes = [8, 128], strides = [1, 1]} : vector<200x128xf32> to vector<8x128xf32>
    %20 = arith.maximumf %18, %19 : vector<8x128xf32>
    %21 = vector.extract_strided_slice %3 {offsets = [72, 0], sizes = [8, 128], strides = [1, 1]} : vector<200x128xf32> to vector<8x128xf32>
    %22 = arith.maximumf %20, %21 : vector<8x128xf32>
    %23 = vector.extract_strided_slice %3 {offsets = [80, 0], sizes = [8, 128], strides = [1, 1]} : vector<200x128xf32> to vector<8x128xf32>
    %24 = arith.maximumf %22, %23 : vector<8x128xf32>
    %25 = vector.extract_strided_slice %3 {offsets = [88, 0], sizes = [8, 128], strides = [1, 1]} : vector<200x128xf32> to vector<8x128xf32>
    %26 = arith.maximumf %24, %25 : vector<8x128xf32>
    %27 = vector.extract_strided_slice %3 {offsets = [96, 0], sizes = [8, 128], strides = [1, 1]} : vector<200x128xf32> to vector<8x128xf32>
    %28 = arith.maximumf %26, %27 : vector<8x128xf32>
    %29 = vector.extract_strided_slice %3 {offsets = [104, 0], sizes = [8, 128], strides = [1, 1]} : vector<200x128xf32> to vector<8x128xf32>
    %30 = arith.maximumf %28, %29 : vector<8x128xf32>
    %31 = vector.extract_strided_slice %3 {offsets = [112, 0], sizes = [8, 128], strides = [1, 1]} : vector<200x128xf32> to vector<8x128xf32>
    %32 = arith.maximumf %30, %31 : vector<8x128xf32>
    %33 = vector.extract_strided_slice %3 {offsets = [120, 0], sizes = [8, 128], strides = [1, 1]} : vector<200x128xf32> to vector<8x128xf32>
    %34 = arith.maximumf %32, %33 : vector<8x128xf32>
    %35 = vector.extract_strided_slice %3 {offsets = [128, 0], sizes = [8, 128], strides = [1, 1]} : vector<200x128xf32> to vector<8x128xf32>
    %36 = arith.maximumf %34, %35 : vector<8x128xf32>
    %37 = vector.extract_strided_slice %3 {offsets = [136, 0], sizes = [8, 128], strides = [1, 1]} : vector<200x128xf32> to vector<8x128xf32>
    %38 = arith.maximumf %36, %37 : vector<8x128xf32>
    %39 = vector.extract_strided_slice %3 {offsets = [144, 0], sizes = [8, 128], strides = [1, 1]} : vector<200x128xf32> to vector<8x128xf32>
    %40 = arith.maximumf %38, %39 : vector<8x128xf32>
    %41 = vector.extract_strided_slice %3 {offsets = [152, 0], sizes = [8, 128], strides = [1, 1]} : vector<200x128xf32> to vector<8x128xf32>
    %42 = arith.maximumf %40, %41 : vector<8x128xf32>
    %43 = vector.extract_strided_slice %3 {offsets = [160, 0], sizes = [8, 128], strides = [1, 1]} : vector<200x128xf32> to vector<8x128xf32>
    %44 = arith.maximumf %42, %43 : vector<8x128xf32>
    %45 = vector.extract_strided_slice %3 {offsets = [168, 0], sizes = [8, 128], strides = [1, 1]} : vector<200x128xf32> to vector<8x128xf32>
    %46 = arith.maximumf %44, %45 : vector<8x128xf32>
    %47 = vector.extract_strided_slice %3 {offsets = [176, 0], sizes = [8, 128], strides = [1, 1]} : vector<200x128xf32> to vector<8x128xf32>
    %48 = arith.maximumf %46, %47 : vector<8x128xf32>
    %49 = vector.extract_strided_slice %3 {offsets = [184, 0], sizes = [8, 128], strides = [1, 1]} : vector<200x128xf32> to vector<8x128xf32>
    %50 = arith.maximumf %48, %49 : vector<8x128xf32>
    %51 = vector.extract_strided_slice %3 {offsets = [192, 0], sizes = [8, 128], strides = [1, 1]} : vector<200x128xf32> to vector<8x128xf32>
    %52 = arith.maximumf %50, %51 : vector<8x128xf32>
    %53 = vector.extract_strided_slice %0 {offsets = [0, 0, 0], sizes = [1, 8, 128], strides = [1, 1, 1]} : vector<25x8x128xbf16> to vector<1x8x128xbf16>
    %54 = vector.shape_cast %53 : vector<1x8x128xbf16> to vector<8x128xbf16>
    %55 = vector.extract_strided_slice %0 {offsets = [1, 0, 0], sizes = [1, 8, 128], strides = [1, 1, 1]} : vector<25x8x128xbf16> to vector<1x8x128xbf16>
    %56 = vector.shape_cast %55 : vector<1x8x128xbf16> to vector<8x128xbf16>
    %57 = vector.extract_strided_slice %0 {offsets = [2, 0, 0], sizes = [1, 8, 128], strides = [1, 1, 1]} : vector<25x8x128xbf16> to vector<1x8x128xbf16>
    %58 = vector.shape_cast %57 : vector<1x8x128xbf16> to vector<8x128xbf16>
    %59 = vector.extract_strided_slice %0 {offsets = [5, 0, 0], sizes = [1, 8, 128], strides = [1, 1, 1]} : vector<25x8x128xbf16> to vector<1x8x128xbf16>
    %60 = vector.shape_cast %59 : vector<1x8x128xbf16> to vector<8x128xbf16>
    %61 = vector.extract_strided_slice %0 {offsets = [6, 0, 0], sizes = [1, 8, 128], strides = [1, 1, 1]} : vector<25x8x128xbf16> to vector<1x8x128xbf16>
    %62 = vector.shape_cast %61 : vector<1x8x128xbf16> to vector<8x128xbf16>
    %63 = vector.extract_strided_slice %0 {offsets = [7, 0, 0], sizes = [1, 8, 128], strides = [1, 1, 1]} : vector<25x8x128xbf16> to vector<1x8x128xbf16>
    %64 = vector.shape_cast %63 : vector<1x8x128xbf16> to vector<8x128xbf16>
    %65 = vector.extract_strided_slice %0 {offsets = [10, 0, 0], sizes = [1, 8, 128], strides = [1, 1, 1]} : vector<25x8x128xbf16> to vector<1x8x128xbf16>
    %66 = vector.shape_cast %65 : vector<1x8x128xbf16> to vector<8x128xbf16>
    %67 = vector.extract_strided_slice %0 {offsets = [11, 0, 0], sizes = [1, 8, 128], strides = [1, 1, 1]} : vector<25x8x128xbf16> to vector<1x8x128xbf16>
    %68 = vector.shape_cast %67 : vector<1x8x128xbf16> to vector<8x128xbf16>
    %69 = vector.extract_strided_slice %0 {offsets = [12, 0, 0], sizes = [1, 8, 128], strides = [1, 1, 1]} : vector<25x8x128xbf16> to vector<1x8x128xbf16>
    %70 = vector.shape_cast %69 : vector<1x8x128xbf16> to vector<8x128xbf16>
    %71 = tpu.concatenate %54, %56, %58, %60, %62, %64, %66, %68, %70 in 1 : vector<8x128xbf16>, vector<8x128xbf16>, vector<8x128xbf16>, vector<8x128xbf16>, vector<8x128xbf16>, vector<8x128xbf16>, vector<8x128xbf16>, vector<8x128xbf16>, vector<8x128xbf16> -> vector<8x1152xbf16>
    %c0_4 = arith.constant 0 : index
    %c0_5 = arith.constant 0 : index
    %72 = vector.load %arg2[%c0_4, %c0_5] : memref<1152x128xbf16, #tpu.memory_space<vmem>>, vector<1152x128xbf16>
    %cst_6 = arith.constant dense<0.000000e+00> : vector<8x128xf32>
    %73 = tpu.matmul %71, %72, %cst_6 {dimension_numbers = #tpu.dot_dimension_numbers<[1], [0], [0], [1], [0, 0, 1, 1], [], []>} : vector<8x1152xbf16>, vector<1152x128xbf16>, vector<8x128xf32> -> vector<8x128xf32>
    %74 = vector.extract_strided_slice %0 {offsets = [1, 0, 0], sizes = [1, 8, 128], strides = [1, 1, 1]} : vector<25x8x128xbf16> to vector<1x8x128xbf16>
    %75 = vector.shape_cast %74 : vector<1x8x128xbf16> to vector<8x128xbf16>
    %76 = vector.extract_strided_slice %0 {offsets = [2, 0, 0], sizes = [1, 8, 128], strides = [1, 1, 1]} : vector<25x8x128xbf16> to vector<1x8x128xbf16>
    %77 = vector.shape_cast %76 : vector<1x8x128xbf16> to vector<8x128xbf16>
    %78 = vector.extract_strided_slice %0 {offsets = [3, 0, 0], sizes = [1, 8, 128], strides = [1, 1, 1]} : vector<25x8x128xbf16> to vector<1x8x128xbf16>
    %79 = vector.shape_cast %78 : vector<1x8x128xbf16> to vector<8x128xbf16>
    %80 = vector.extract_strided_slice %0 {offsets = [6, 0, 0], sizes = [1, 8, 128], strides = [1, 1, 1]} : vector<25x8x128xbf16> to vector<1x8x128xbf16>
    %81 = vector.shape_cast %80 : vector<1x8x128xbf16> to vector<8x128xbf16>
    %82 = vector.extract_strided_slice %0 {offsets = [7, 0, 0], sizes = [1, 8, 128], strides = [1, 1, 1]} : vector<25x8x128xbf16> to vector<1x8x128xbf16>
    %83 = vector.shape_cast %82 : vector<1x8x128xbf16> to vector<8x128xbf16>
    %84 = vector.extract_strided_slice %0 {offsets = [8, 0, 0], sizes = [1, 8, 128], strides = [1, 1, 1]} : vector<25x8x128xbf16> to vector<1x8x128xbf16>
    %85 = vector.shape_cast %84 : vector<1x8x128xbf16> to vector<8x128xbf16>
    %86 = vector.extract_strided_slice %0 {offsets = [11, 0, 0], sizes = [1, 8, 128], strides = [1, 1, 1]} : vector<25x8x128xbf16> to vector<1x8x128xbf16>
    %87 = vector.shape_cast %86 : vector<1x8x128xbf16> to vector<8x128xbf16>
    %88 = vector.extract_strided_slice %0 {offsets = [12, 0, 0], sizes = [1, 8, 128], strides = [1, 1, 1]} : vector<25x8x128xbf16> to vector<1x8x128xbf16>
    %89 = vector.shape_cast %88 : vector<1x8x128xbf16> to vector<8x128xbf16>
    %90 = vector.extract_strided_slice %0 {offsets = [13, 0, 0], sizes = [1, 8, 128], strides = [1, 1, 1]} : vector<25x8x128xbf16> to vector<1x8x128xbf16>
    %91 = vector.shape_cast %90 : vector<1x8x128xbf16> to vector<8x128xbf16>
    %92 = tpu.concatenate %75, %77, %79, %81, %83, %85, %87, %89, %91 in 1 : vector<8x128xbf16>, vector<8x128xbf16>, vector<8x128xbf16>, vector<8x128xbf16>, vector<8x128xbf16>, vector<8x128xbf16>, vector<8x128xbf16>, vector<8x128xbf16>, vector<8x128xbf16> -> vector<8x1152xbf16>
    %c0_7 = arith.constant 0 : index
    %c0_8 = arith.constant 0 : index
    %93 = vector.load %arg2[%c0_7, %c0_8] : memref<1152x128xbf16, #tpu.memory_space<vmem>>, vector<1152x128xbf16>
    %cst_9 = arith.constant dense<0.000000e+00> : vector<8x128xf32>
    %94 = tpu.matmul %92, %93, %cst_9 {dimension_numbers = #tpu.dot_dimension_numbers<[1], [0], [0], [1], [0, 0, 1, 1], [], []>} : vector<8x1152xbf16>, vector<1152x128xbf16>, vector<8x128xf32> -> vector<8x128xf32>
    %95 = arith.maximumf %73, %94 : vector<8x128xf32>
    %96 = vector.extract_strided_slice %0 {offsets = [2, 0, 0], sizes = [1, 8, 128], strides = [1, 1, 1]} : vector<25x8x128xbf16> to vector<1x8x128xbf16>
    %97 = vector.shape_cast %96 : vector<1x8x128xbf16> to vector<8x128xbf16>
    %98 = vector.extract_strided_slice %0 {offsets = [3, 0, 0], sizes = [1, 8, 128], strides = [1, 1, 1]} : vector<25x8x128xbf16> to vector<1x8x128xbf16>
    %99 = vector.shape_cast %98 : vector<1x8x128xbf16> to vector<8x128xbf16>
    %100 = vector.extract_strided_slice %0 {offsets = [4, 0, 0], sizes = [1, 8, 128], strides = [1, 1, 1]} : vector<25x8x128xbf16> to vector<1x8x128xbf16>
    %101 = vector.shape_cast %100 : vector<1x8x128xbf16> to vector<8x128xbf16>
    %102 = vector.extract_strided_slice %0 {offsets = [7, 0, 0], sizes = [1, 8, 128], strides = [1, 1, 1]} : vector<25x8x128xbf16> to vector<1x8x128xbf16>
    %103 = vector.shape_cast %102 : vector<1x8x128xbf16> to vector<8x128xbf16>
    %104 = vector.extract_strided_slice %0 {offsets = [8, 0, 0], sizes = [1, 8, 128], strides = [1, 1, 1]} : vector<25x8x128xbf16> to vector<1x8x128xbf16>
    %105 = vector.shape_cast %104 : vector<1x8x128xbf16> to vector<8x128xbf16>
    %106 = vector.extract_strided_slice %0 {offsets = [9, 0, 0], sizes = [1, 8, 128], strides = [1, 1, 1]} : vector<25x8x128xbf16> to vector<1x8x128xbf16>
    %107 = vector.shape_cast %106 : vector<1x8x128xbf16> to vector<8x128xbf16>
    %108 = vector.extract_strided_slice %0 {offsets = [12, 0, 0], sizes = [1, 8, 128], strides = [1, 1, 1]} : vector<25x8x128xbf16> to vector<1x8x128xbf16>
    %109 = vector.shape_cast %108 : vector<1x8x128xbf16> to vector<8x128xbf16>
    %110 = vector.extract_strided_slice %0 {offsets = [13, 0, 0], sizes = [1, 8, 128], strides = [1, 1, 1]} : vector<25x8x128xbf16> to vector<1x8x128xbf16>
    %111 = vector.shape_cast %110 : vector<1x8x128xbf16> to vector<8x128xbf16>
    %112 = vector.extract_strided_slice %0 {offsets = [14, 0, 0], sizes = [1, 8, 128], strides = [1, 1, 1]} : vector<25x8x128xbf16> to vector<1x8x128xbf16>
    %113 = vector.shape_cast %112 : vector<1x8x128xbf16> to vector<8x128xbf16>
    %114 = tpu.concatenate %97, %99, %101, %103, %105, %107, %109, %111, %113 in 1 : vector<8x128xbf16>, vector<8x128xbf16>, vector<8x128xbf16>, vector<8x128xbf16>, vector<8x128xbf16>, vector<8x128xbf16>, vector<8x128xbf16>, vector<8x128xbf16>, vector<8x128xbf16> -> vector<8x1152xbf16>
    %c0_10 = arith.constant 0 : index
    %c0_11 = arith.constant 0 : index
    %115 = vector.load %arg2[%c0_10, %c0_11] : memref<1152x128xbf16, #tpu.memory_space<vmem>>, vector<1152x128xbf16>
    %cst_12 = arith.constant dense<0.000000e+00> : vector<8x128xf32>
    %116 = tpu.matmul %114, %115, %cst_12 {dimension_numbers = #tpu.dot_dimension_numbers<[1], [0], [0], [1], [0, 0, 1, 1], [], []>} : vector<8x1152xbf16>, vector<1152x128xbf16>, vector<8x128xf32> -> vector<8x128xf32>
    %117 = arith.maximumf %95, %116 : vector<8x128xf32>
    %118 = vector.extract_strided_slice %0 {offsets = [5, 0, 0], sizes = [1, 8, 128], strides = [1, 1, 1]} : vector<25x8x128xbf16> to vector<1x8x128xbf16>
    %119 = vector.shape_cast %118 : vector<1x8x128xbf16> to vector<8x128xbf16>
    %120 = vector.extract_strided_slice %0 {offsets = [6, 0, 0], sizes = [1, 8, 128], strides = [1, 1, 1]} : vector<25x8x128xbf16> to vector<1x8x128xbf16>
    %121 = vector.shape_cast %120 : vector<1x8x128xbf16> to vector<8x128xbf16>
    %122 = vector.extract_strided_slice %0 {offsets = [7, 0, 0], sizes = [1, 8, 128], strides = [1, 1, 1]} : vector<25x8x128xbf16> to vector<1x8x128xbf16>
    %123 = vector.shape_cast %122 : vector<1x8x128xbf16> to vector<8x128xbf16>
    %124 = vector.extract_strided_slice %0 {offsets = [10, 0, 0], sizes = [1, 8, 128], strides = [1, 1, 1]} : vector<25x8x128xbf16> to vector<1x8x128xbf16>
    %125 = vector.shape_cast %124 : vector<1x8x128xbf16> to vector<8x128xbf16>
    %126 = vector.extract_strided_slice %0 {offsets = [11, 0, 0], sizes = [1, 8, 128], strides = [1, 1, 1]} : vector<25x8x128xbf16> to vector<1x8x128xbf16>
    %127 = vector.shape_cast %126 : vector<1x8x128xbf16> to vector<8x128xbf16>
    %128 = vector.extract_strided_slice %0 {offsets = [12, 0, 0], sizes = [1, 8, 128], strides = [1, 1, 1]} : vector<25x8x128xbf16> to vector<1x8x128xbf16>
    %129 = vector.shape_cast %128 : vector<1x8x128xbf16> to vector<8x128xbf16>
    %130 = vector.extract_strided_slice %0 {offsets = [15, 0, 0], sizes = [1, 8, 128], strides = [1, 1, 1]} : vector<25x8x128xbf16> to vector<1x8x128xbf16>
    %131 = vector.shape_cast %130 : vector<1x8x128xbf16> to vector<8x128xbf16>
    %132 = vector.extract_strided_slice %0 {offsets = [16, 0, 0], sizes = [1, 8, 128], strides = [1, 1, 1]} : vector<25x8x128xbf16> to vector<1x8x128xbf16>
    %133 = vector.shape_cast %132 : vector<1x8x128xbf16> to vector<8x128xbf16>
    %134 = vector.extract_strided_slice %0 {offsets = [17, 0, 0], sizes = [1, 8, 128], strides = [1, 1, 1]} : vector<25x8x128xbf16> to vector<1x8x128xbf16>
    %135 = vector.shape_cast %134 : vector<1x8x128xbf16> to vector<8x128xbf16>
    %136 = tpu.concatenate %119, %121, %123, %125, %127, %129, %131, %133, %135 in 1 : vector<8x128xbf16>, vector<8x128xbf16>, vector<8x128xbf16>, vector<8x128xbf16>, vector<8x128xbf16>, vector<8x128xbf16>, vector<8x128xbf16>, vector<8x128xbf16>, vector<8x128xbf16> -> vector<8x1152xbf16>
    %c0_13 = arith.constant 0 : index
    %c0_14 = arith.constant 0 : index
    %137 = vector.load %arg2[%c0_13, %c0_14] : memref<1152x128xbf16, #tpu.memory_space<vmem>>, vector<1152x128xbf16>
    %cst_15 = arith.constant dense<0.000000e+00> : vector<8x128xf32>
    %138 = tpu.matmul %136, %137, %cst_15 {dimension_numbers = #tpu.dot_dimension_numbers<[1], [0], [0], [1], [0, 0, 1, 1], [], []>} : vector<8x1152xbf16>, vector<1152x128xbf16>, vector<8x128xf32> -> vector<8x128xf32>
    %139 = arith.maximumf %117, %138 : vector<8x128xf32>
    %140 = vector.extract_strided_slice %0 {offsets = [6, 0, 0], sizes = [1, 8, 128], strides = [1, 1, 1]} : vector<25x8x128xbf16> to vector<1x8x128xbf16>
    %141 = vector.shape_cast %140 : vector<1x8x128xbf16> to vector<8x128xbf16>
    %142 = vector.extract_strided_slice %0 {offsets = [7, 0, 0], sizes = [1, 8, 128], strides = [1, 1, 1]} : vector<25x8x128xbf16> to vector<1x8x128xbf16>
    %143 = vector.shape_cast %142 : vector<1x8x128xbf16> to vector<8x128xbf16>
    %144 = vector.extract_strided_slice %0 {offsets = [8, 0, 0], sizes = [1, 8, 128], strides = [1, 1, 1]} : vector<25x8x128xbf16> to vector<1x8x128xbf16>
    %145 = vector.shape_cast %144 : vector<1x8x128xbf16> to vector<8x128xbf16>
    %146 = vector.extract_strided_slice %0 {offsets = [11, 0, 0], sizes = [1, 8, 128], strides = [1, 1, 1]} : vector<25x8x128xbf16> to vector<1x8x128xbf16>
    %147 = vector.shape_cast %146 : vector<1x8x128xbf16> to vector<8x128xbf16>
    %148 = vector.extract_strided_slice %0 {offsets = [12, 0, 0], sizes = [1, 8, 128], strides = [1, 1, 1]} : vector<25x8x128xbf16> to vector<1x8x128xbf16>
    %149 = vector.shape_cast %148 : vector<1x8x128xbf16> to vector<8x128xbf16>
    %150 = vector.extract_strided_slice %0 {offsets = [13, 0, 0], sizes = [1, 8, 128], strides = [1, 1, 1]} : vector<25x8x128xbf16> to vector<1x8x128xbf16>
    %151 = vector.shape_cast %150 : vector<1x8x128xbf16> to vector<8x128xbf16>
    %152 = vector.extract_strided_slice %0 {offsets = [16, 0, 0], sizes = [1, 8, 128], strides = [1, 1, 1]} : vector<25x8x128xbf16> to vector<1x8x128xbf16>
    %153 = vector.shape_cast %152 : vector<1x8x128xbf16> to vector<8x128xbf16>
    %154 = vector.extract_strided_slice %0 {offsets = [17, 0, 0], sizes = [1, 8, 128], strides = [1, 1, 1]} : vector<25x8x128xbf16> to vector<1x8x128xbf16>
    %155 = vector.shape_cast %154 : vector<1x8x128xbf16> to vector<8x128xbf16>
    %156 = vector.extract_strided_slice %0 {offsets = [18, 0, 0], sizes = [1, 8, 128], strides = [1, 1, 1]} : vector<25x8x128xbf16> to vector<1x8x128xbf16>
    %157 = vector.shape_cast %156 : vector<1x8x128xbf16> to vector<8x128xbf16>
    %158 = tpu.concatenate %141, %143, %145, %147, %149, %151, %153, %155, %157 in 1 : vector<8x128xbf16>, vector<8x128xbf16>, vector<8x128xbf16>, vector<8x128xbf16>, vector<8x128xbf16>, vector<8x128xbf16>, vector<8x128xbf16>, vector<8x128xbf16>, vector<8x128xbf16> -> vector<8x1152xbf16>
    %c0_16 = arith.constant 0 : index
    %c0_17 = arith.constant 0 : index
    %159 = vector.load %arg2[%c0_16, %c0_17] : memref<1152x128xbf16, #tpu.memory_space<vmem>>, vector<1152x128xbf16>
    %cst_18 = arith.constant dense<0.000000e+00> : vector<8x128xf32>
    %160 = tpu.matmul %158, %159, %cst_18 {dimension_numbers = #tpu.dot_dimension_numbers<[1], [0], [0], [1], [0, 0, 1, 1], [], []>} : vector<8x1152xbf16>, vector<1152x128xbf16>, vector<8x128xf32> -> vector<8x128xf32>
    %161 = arith.maximumf %139, %160 : vector<8x128xf32>
    %162 = vector.extract_strided_slice %0 {offsets = [7, 0, 0], sizes = [1, 8, 128], strides = [1, 1, 1]} : vector<25x8x128xbf16> to vector<1x8x128xbf16>
    %163 = vector.shape_cast %162 : vector<1x8x128xbf16> to vector<8x128xbf16>
    %164 = vector.extract_strided_slice %0 {offsets = [8, 0, 0], sizes = [1, 8, 128], strides = [1, 1, 1]} : vector<25x8x128xbf16> to vector<1x8x128xbf16>
    %165 = vector.shape_cast %164 : vector<1x8x128xbf16> to vector<8x128xbf16>
    %166 = vector.extract_strided_slice %0 {offsets = [9, 0, 0], sizes = [1, 8, 128], strides = [1, 1, 1]} : vector<25x8x128xbf16> to vector<1x8x128xbf16>
    %167 = vector.shape_cast %166 : vector<1x8x128xbf16> to vector<8x128xbf16>
    %168 = vector.extract_strided_slice %0 {offsets = [12, 0, 0], sizes = [1, 8, 128], strides = [1, 1, 1]} : vector<25x8x128xbf16> to vector<1x8x128xbf16>
    %169 = vector.shape_cast %168 : vector<1x8x128xbf16> to vector<8x128xbf16>
    %170 = vector.extract_strided_slice %0 {offsets = [13, 0, 0], sizes = [1, 8, 128], strides = [1, 1, 1]} : vector<25x8x128xbf16> to vector<1x8x128xbf16>
    %171 = vector.shape_cast %170 : vector<1x8x128xbf16> to vector<8x128xbf16>
    %172 = vector.extract_strided_slice %0 {offsets = [14, 0, 0], sizes = [1, 8, 128], strides = [1, 1, 1]} : vector<25x8x128xbf16> to vector<1x8x128xbf16>
    %173 = vector.shape_cast %172 : vector<1x8x128xbf16> to vector<8x128xbf16>
    %174 = vector.extract_strided_slice %0 {offsets = [17, 0, 0], sizes = [1, 8, 128], strides = [1, 1, 1]} : vector<25x8x128xbf16> to vector<1x8x128xbf16>
    %175 = vector.shape_cast %174 : vector<1x8x128xbf16> to vector<8x128xbf16>
    %176 = vector.extract_strided_slice %0 {offsets = [18, 0, 0], sizes = [1, 8, 128], strides = [1, 1, 1]} : vector<25x8x128xbf16> to vector<1x8x128xbf16>
    %177 = vector.shape_cast %176 : vector<1x8x128xbf16> to vector<8x128xbf16>
    %178 = vector.extract_strided_slice %0 {offsets = [19, 0, 0], sizes = [1, 8, 128], strides = [1, 1, 1]} : vector<25x8x128xbf16> to vector<1x8x128xbf16>
    %179 = vector.shape_cast %178 : vector<1x8x128xbf16> to vector<8x128xbf16>
    %180 = tpu.concatenate %163, %165, %167, %169, %171, %173, %175, %177, %179 in 1 : vector<8x128xbf16>, vector<8x128xbf16>, vector<8x128xbf16>, vector<8x128xbf16>, vector<8x128xbf16>, vector<8x128xbf16>, vector<8x128xbf16>, vector<8x128xbf16>, vector<8x128xbf16> -> vector<8x1152xbf16>
    %c0_19 = arith.constant 0 : index
    %c0_20 = arith.constant 0 : index
    %181 = vector.load %arg2[%c0_19, %c0_20] : memref<1152x128xbf16, #tpu.memory_space<vmem>>, vector<1152x128xbf16>
    %cst_21 = arith.constant dense<0.000000e+00> : vector<8x128xf32>
    %182 = tpu.matmul %180, %181, %cst_21 {dimension_numbers = #tpu.dot_dimension_numbers<[1], [0], [0], [1], [0, 0, 1, 1], [], []>} : vector<8x1152xbf16>, vector<1152x128xbf16>, vector<8x128xf32> -> vector<8x128xf32>
    %183 = arith.maximumf %161, %182 : vector<8x128xf32>
    %184 = vector.extract_strided_slice %0 {offsets = [10, 0, 0], sizes = [1, 8, 128], strides = [1, 1, 1]} : vector<25x8x128xbf16> to vector<1x8x128xbf16>
    %185 = vector.shape_cast %184 : vector<1x8x128xbf16> to vector<8x128xbf16>
    %186 = vector.extract_strided_slice %0 {offsets = [11, 0, 0], sizes = [1, 8, 128], strides = [1, 1, 1]} : vector<25x8x128xbf16> to vector<1x8x128xbf16>
    %187 = vector.shape_cast %186 : vector<1x8x128xbf16> to vector<8x128xbf16>
    %188 = vector.extract_strided_slice %0 {offsets = [12, 0, 0], sizes = [1, 8, 128], strides = [1, 1, 1]} : vector<25x8x128xbf16> to vector<1x8x128xbf16>
    %189 = vector.shape_cast %188 : vector<1x8x128xbf16> to vector<8x128xbf16>
    %190 = vector.extract_strided_slice %0 {offsets = [15, 0, 0], sizes = [1, 8, 128], strides = [1, 1, 1]} : vector<25x8x128xbf16> to vector<1x8x128xbf16>
    %191 = vector.shape_cast %190 : vector<1x8x128xbf16> to vector<8x128xbf16>
    %192 = vector.extract_strided_slice %0 {offsets = [16, 0, 0], sizes = [1, 8, 128], strides = [1, 1, 1]} : vector<25x8x128xbf16> to vector<1x8x128xbf16>
    %193 = vector.shape_cast %192 : vector<1x8x128xbf16> to vector<8x128xbf16>
    %194 = vector.extract_strided_slice %0 {offsets = [17, 0, 0], sizes = [1, 8, 128], strides = [1, 1, 1]} : vector<25x8x128xbf16> to vector<1x8x128xbf16>
    %195 = vector.shape_cast %194 : vector<1x8x128xbf16> to vector<8x128xbf16>
    %196 = vector.extract_strided_slice %0 {offsets = [20, 0, 0], sizes = [1, 8, 128], strides = [1, 1, 1]} : vector<25x8x128xbf16> to vector<1x8x128xbf16>
    %197 = vector.shape_cast %196 : vector<1x8x128xbf16> to vector<8x128xbf16>
    %198 = vector.extract_strided_slice %0 {offsets = [21, 0, 0], sizes = [1, 8, 128], strides = [1, 1, 1]} : vector<25x8x128xbf16> to vector<1x8x128xbf16>
    %199 = vector.shape_cast %198 : vector<1x8x128xbf16> to vector<8x128xbf16>
    %200 = vector.extract_strided_slice %0 {offsets = [22, 0, 0], sizes = [1, 8, 128], strides = [1, 1, 1]} : vector<25x8x128xbf16> to vector<1x8x128xbf16>
    %201 = vector.shape_cast %200 : vector<1x8x128xbf16> to vector<8x128xbf16>
    %202 = tpu.concatenate %185, %187, %189, %191, %193, %195, %197, %199, %201 in 1 : vector<8x128xbf16>, vector<8x128xbf16>, vector<8x128xbf16>, vector<8x128xbf16>, vector<8x128xbf16>, vector<8x128xbf16>, vector<8x128xbf16>, vector<8x128xbf16>, vector<8x128xbf16> -> vector<8x1152xbf16>
    %c0_22 = arith.constant 0 : index
    %c0_23 = arith.constant 0 : index
    %203 = vector.load %arg2[%c0_22, %c0_23] : memref<1152x128xbf16, #tpu.memory_space<vmem>>, vector<1152x128xbf16>
    %cst_24 = arith.constant dense<0.000000e+00> : vector<8x128xf32>
    %204 = tpu.matmul %202, %203, %cst_24 {dimension_numbers = #tpu.dot_dimension_numbers<[1], [0], [0], [1], [0, 0, 1, 1], [], []>} : vector<8x1152xbf16>, vector<1152x128xbf16>, vector<8x128xf32> -> vector<8x128xf32>
    %205 = arith.maximumf %183, %204 : vector<8x128xf32>
    %206 = vector.extract_strided_slice %0 {offsets = [11, 0, 0], sizes = [1, 8, 128], strides = [1, 1, 1]} : vector<25x8x128xbf16> to vector<1x8x128xbf16>
    %207 = vector.shape_cast %206 : vector<1x8x128xbf16> to vector<8x128xbf16>
    %208 = vector.extract_strided_slice %0 {offsets = [12, 0, 0], sizes = [1, 8, 128], strides = [1, 1, 1]} : vector<25x8x128xbf16> to vector<1x8x128xbf16>
    %209 = vector.shape_cast %208 : vector<1x8x128xbf16> to vector<8x128xbf16>
    %210 = vector.extract_strided_slice %0 {offsets = [13, 0, 0], sizes = [1, 8, 128], strides = [1, 1, 1]} : vector<25x8x128xbf16> to vector<1x8x128xbf16>
    %211 = vector.shape_cast %210 : vector<1x8x128xbf16> to vector<8x128xbf16>
    %212 = vector.extract_strided_slice %0 {offsets = [16, 0, 0], sizes = [1, 8, 128], strides = [1, 1, 1]} : vector<25x8x128xbf16> to vector<1x8x128xbf16>
    %213 = vector.shape_cast %212 : vector<1x8x128xbf16> to vector<8x128xbf16>
    %214 = vector.extract_strided_slice %0 {offsets = [17, 0, 0], sizes = [1, 8, 128], strides = [1, 1, 1]} : vector<25x8x128xbf16> to vector<1x8x128xbf16>
    %215 = vector.shape_cast %214 : vector<1x8x128xbf16> to vector<8x128xbf16>
    %216 = vector.extract_strided_slice %0 {offsets = [18, 0, 0], sizes = [1, 8, 128], strides = [1, 1, 1]} : vector<25x8x128xbf16> to vector<1x8x128xbf16>
    %217 = vector.shape_cast %216 : vector<1x8x128xbf16> to vector<8x128xbf16>
    %218 = vector.extract_strided_slice %0 {offsets = [21, 0, 0], sizes = [1, 8, 128], strides = [1, 1, 1]} : vector<25x8x128xbf16> to vector<1x8x128xbf16>
    %219 = vector.shape_cast %218 : vector<1x8x128xbf16> to vector<8x128xbf16>
    %220 = vector.extract_strided_slice %0 {offsets = [22, 0, 0], sizes = [1, 8, 128], strides = [1, 1, 1]} : vector<25x8x128xbf16> to vector<1x8x128xbf16>
    %221 = vector.shape_cast %220 : vector<1x8x128xbf16> to vector<8x128xbf16>
    %222 = vector.extract_strided_slice %0 {offsets = [23, 0, 0], sizes = [1, 8, 128], strides = [1, 1, 1]} : vector<25x8x128xbf16> to vector<1x8x128xbf16>
    %223 = vector.shape_cast %222 : vector<1x8x128xbf16> to vector<8x128xbf16>
    %224 = tpu.concatenate %207, %209, %211, %213, %215, %217, %219, %221, %223 in 1 : vector<8x128xbf16>, vector<8x128xbf16>, vector<8x128xbf16>, vector<8x128xbf16>, vector<8x128xbf16>, vector<8x128xbf16>, vector<8x128xbf16>, vector<8x128xbf16>, vector<8x128xbf16> -> vector<8x1152xbf16>
    %c0_25 = arith.constant 0 : index
    %c0_26 = arith.constant 0 : index
    %225 = vector.load %arg2[%c0_25, %c0_26] : memref<1152x128xbf16, #tpu.memory_space<vmem>>, vector<1152x128xbf16>
    %cst_27 = arith.constant dense<0.000000e+00> : vector<8x128xf32>
    %226 = tpu.matmul %224, %225, %cst_27 {dimension_numbers = #tpu.dot_dimension_numbers<[1], [0], [0], [1], [0, 0, 1, 1], [], []>} : vector<8x1152xbf16>, vector<1152x128xbf16>, vector<8x128xf32> -> vector<8x128xf32>
    %227 = arith.maximumf %205, %226 : vector<8x128xf32>
    %228 = vector.extract_strided_slice %0 {offsets = [12, 0, 0], sizes = [1, 8, 128], strides = [1, 1, 1]} : vector<25x8x128xbf16> to vector<1x8x128xbf16>
    %229 = vector.shape_cast %228 : vector<1x8x128xbf16> to vector<8x128xbf16>
    %230 = vector.extract_strided_slice %0 {offsets = [13, 0, 0], sizes = [1, 8, 128], strides = [1, 1, 1]} : vector<25x8x128xbf16> to vector<1x8x128xbf16>
    %231 = vector.shape_cast %230 : vector<1x8x128xbf16> to vector<8x128xbf16>
    %232 = vector.extract_strided_slice %0 {offsets = [14, 0, 0], sizes = [1, 8, 128], strides = [1, 1, 1]} : vector<25x8x128xbf16> to vector<1x8x128xbf16>
    %233 = vector.shape_cast %232 : vector<1x8x128xbf16> to vector<8x128xbf16>
    %234 = vector.extract_strided_slice %0 {offsets = [17, 0, 0], sizes = [1, 8, 128], strides = [1, 1, 1]} : vector<25x8x128xbf16> to vector<1x8x128xbf16>
    %235 = vector.shape_cast %234 : vector<1x8x128xbf16> to vector<8x128xbf16>
    %236 = vector.extract_strided_slice %0 {offsets = [18, 0, 0], sizes = [1, 8, 128], strides = [1, 1, 1]} : vector<25x8x128xbf16> to vector<1x8x128xbf16>
    %237 = vector.shape_cast %236 : vector<1x8x128xbf16> to vector<8x128xbf16>
    %238 = vector.extract_strided_slice %0 {offsets = [19, 0, 0], sizes = [1, 8, 128], strides = [1, 1, 1]} : vector<25x8x128xbf16> to vector<1x8x128xbf16>
    %239 = vector.shape_cast %238 : vector<1x8x128xbf16> to vector<8x128xbf16>
    %240 = vector.extract_strided_slice %0 {offsets = [22, 0, 0], sizes = [1, 8, 128], strides = [1, 1, 1]} : vector<25x8x128xbf16> to vector<1x8x128xbf16>
    %241 = vector.shape_cast %240 : vector<1x8x128xbf16> to vector<8x128xbf16>
    %242 = vector.extract_strided_slice %0 {offsets = [23, 0, 0], sizes = [1, 8, 128], strides = [1, 1, 1]} : vector<25x8x128xbf16> to vector<1x8x128xbf16>
    %243 = vector.shape_cast %242 : vector<1x8x128xbf16> to vector<8x128xbf16>
    %244 = vector.extract_strided_slice %0 {offsets = [24, 0, 0], sizes = [1, 8, 128], strides = [1, 1, 1]} : vector<25x8x128xbf16> to vector<1x8x128xbf16>
    %245 = vector.shape_cast %244 : vector<1x8x128xbf16> to vector<8x128xbf16>
    %246 = tpu.concatenate %229, %231, %233, %235, %237, %239, %241, %243, %245 in 1 : vector<8x128xbf16>, vector<8x128xbf16>, vector<8x128xbf16>, vector<8x128xbf16>, vector<8x128xbf16>, vector<8x128xbf16>, vector<8x128xbf16>, vector<8x128xbf16>, vector<8x128xbf16> -> vector<8x1152xbf16>
    %c0_28 = arith.constant 0 : index
    %c0_29 = arith.constant 0 : index
    %247 = vector.load %arg2[%c0_28, %c0_29] : memref<1152x128xbf16, #tpu.memory_space<vmem>>, vector<1152x128xbf16>
    %cst_30 = arith.constant dense<0.000000e+00> : vector<8x128xf32>
    %248 = tpu.matmul %246, %247, %cst_30 {dimension_numbers = #tpu.dot_dimension_numbers<[1], [0], [0], [1], [0, 0, 1, 1], [], []>} : vector<8x1152xbf16>, vector<1152x128xbf16>, vector<8x128xf32> -> vector<8x128xf32>
    %249 = arith.maximumf %227, %248 : vector<8x128xf32>
    %250 = arith.addf %249, %52 : vector<8x128xf32>
    %c0_31 = arith.constant 0 : index
    %c0_32 = arith.constant 0 : index
    %251 = vector.load %arg4[%c0_31, %c0_32] : memref<1x128xf32, #tpu.memory_space<vmem>>, vector<1x128xf32>
    %252 = vector.broadcast %251 : vector<1x128xf32> to vector<8x128xf32>
    %253 = arith.addf %250, %252 : vector<8x128xf32>
    %254 = arith.truncf %253 : vector<8x128xf32> to vector<8x128xbf16>
    %c0_33 = arith.constant 0 : index
    %c0_34 = arith.constant 0 : index
    %255 = vector.load %arg5[%c0_33, %c0_34] : memref<8x128xbf16, #tpu.memory_space<vmem>>, vector<8x128xbf16>
    tpu.vector_store %arg5[%c0_33, %c0_34], %254 {strides = array<i32>} : memref<8x128xbf16, #tpu.memory_space<vmem>>, vector<8x128xbf16>,
    %256 = vector.shape_cast %253 : vector<8x128xf32> to vector<1x8x128xf32>
    %cst_35 = arith.constant dense<0.000000e+00> : vector<8x128xf32>
    %257 = vector.multi_reduction <add>, %256, %cst_35 [0] : vector<1x8x128xf32> to vector<8x128xf32>
    %c0_36 = arith.constant 0 : index
    %c0_37 = arith.constant 0 : index
    %258 = vector.load %arg6[%c0_36, %c0_37] : memref<8x128xf32, #tpu.memory_space<vmem>>, vector<8x128xf32>
    tpu.vector_store %arg6[%c0_36, %c0_37], %257 {strides = array<i32>} : memref<8x128xf32, #tpu.memory_space<vmem>>, vector<8x128xf32>,
    %259 = arith.mulf %256, %256 : vector<1x8x128xf32>
    %cst_38 = arith.constant dense<0.000000e+00> : vector<8x128xf32>
    %260 = vector.multi_reduction <add>, %259, %cst_38 [0] : vector<1x8x128xf32> to vector<8x128xf32>
    %c0_39 = arith.constant 0 : index
    %c0_40 = arith.constant 0 : index
    %261 = vector.load %arg7[%c0_39, %c0_40] : memref<8x128xf32, #tpu.memory_space<vmem>>, vector<8x128xf32>
    tpu.vector_store %arg7[%c0_39, %c0_40], %260 {strides = array<i32>} : memref<8x128xf32, #tpu.memory_space<vmem>>, vector<8x128xf32>,
    return
  }
  func.func @transform_0(%arg0: i32) -> (i32, i32, i32) {
    %c0_i32 = arith.constant 0 : i32
    %c0_i32_0 = arith.constant 0 : i32
    %c0_i32_1 = arith.constant 0 : i32
    return %c0_i32, %arg0, %c0_i32_0 : i32, i32, i32
  }
  func.func @transform_1(%arg0: i32) -> (i32, i32) {
    %c0_i32 = arith.constant 0 : i32
    %c0_i32_0 = arith.constant 0 : i32
    %c0_i32_1 = arith.constant 0 : i32
    return %c0_i32, %c0_i32_0 : i32, i32
  }
  func.func @transform_2(%arg0: i32) -> (i32, i32) {
    %c0_i32 = arith.constant 0 : i32
    %c0_i32_0 = arith.constant 0 : i32
    %c0_i32_1 = arith.constant 0 : i32
    return %c0_i32, %c0_i32_0 : i32, i32
  }
  func.func @transform_3(%arg0: i32) -> (i32, i32) {
    %c0_i32 = arith.constant 0 : i32
    %c0_i32_0 = arith.constant 0 : i32
    %c0_i32_1 = arith.constant 0 : i32
    return %c0_i32, %c0_i32_0 : i32, i32
  }
  func.func @transform_4(%arg0: i32) -> (i32, i32) {
    %c0_i32 = arith.constant 0 : i32
    %c0_i32_0 = arith.constant 0 : i32
    return %arg0, %c0_i32 : i32, i32
  }
  func.func @transform_5(%arg0: i32) -> (i32, i32) {
    %c0_i32 = arith.constant 0 : i32
    %c0_i32_0 = arith.constant 0 : i32
    return %arg0, %c0_i32 : i32, i32
  }
  func.func @transform_6(%arg0: i32) -> (i32, i32) {
    %c0_i32 = arith.constant 0 : i32
    %c0_i32_0 = arith.constant 0 : i32
    return %arg0, %c0_i32 : i32, i32
  }
}

module attributes {stable_mosaic.version = 11 : i64} {
  func.func @_head_kernel(%arg0: i32, %arg1: memref<8x128xbf16, #tpu.memory_space<vmem>>, %arg2: memref<1x128xf32, #tpu.memory_space<vmem>>, %arg3: memref<1x128xf32, #tpu.memory_space<vmem>>, %arg4: memref<128x128xbf16, #tpu.memory_space<vmem>>, %arg5: memref<1x128xf32, #tpu.memory_space<vmem>>, %arg6: memref<128x128xbf16, #tpu.memory_space<vmem>>, %arg7: memref<1x128xf32, #tpu.memory_space<vmem>>, %arg8: memref<128x128xbf16, #tpu.memory_space<vmem>>, %arg9: memref<1x128xf32, #tpu.memory_space<vmem>>, %arg10: memref<8x128xbf16, #tpu.memory_space<vmem>>) attributes {dimension_semantics = [#tpu.dimension_semantics<parallel>], iteration_bounds = array<i64: 1>, scalar_prefetch = 0 : i64, scratch_operands = 0 : i64, tpu.core_type = #tpu.core_type<tc>, window_params = [{transform_indices = @transform_0, window_bounds = array<i64: 8, 128>}, {pipeline_mode = #tpu.pipeline_mode<synchronous>, transform_indices = @transform_1, window_bounds = array<i64: 1, 128>}, {pipeline_mode = #tpu.pipeline_mode<synchronous>, transform_indices = @transform_2, window_bounds = array<i64: 1, 128>}, {pipeline_mode = #tpu.pipeline_mode<synchronous>, transform_indices = @transform_3, window_bounds = array<i64: 128, 128>}, {pipeline_mode = #tpu.pipeline_mode<synchronous>, transform_indices = @transform_4, window_bounds = array<i64: 1, 128>}, {pipeline_mode = #tpu.pipeline_mode<synchronous>, transform_indices = @transform_5, window_bounds = array<i64: 128, 128>}, {pipeline_mode = #tpu.pipeline_mode<synchronous>, transform_indices = @transform_6, window_bounds = array<i64: 1, 128>}, {pipeline_mode = #tpu.pipeline_mode<synchronous>, transform_indices = @transform_7, window_bounds = array<i64: 128, 128>}, {pipeline_mode = #tpu.pipeline_mode<synchronous>, transform_indices = @transform_8, window_bounds = array<i64: 1, 128>}, {transform_indices = @transform_9, window_bounds = array<i64: 8, 128>}]} {
    %c0 = arith.constant 0 : index
    %c0_0 = arith.constant 0 : index
    %0 = vector.load %arg1[%c0, %c0_0] : memref<8x128xbf16, #tpu.memory_space<vmem>>, vector<8x128xbf16>
    %1 = arith.extf %0 : vector<8x128xbf16> to vector<8x128xf32>
    %c0_1 = arith.constant 0 : index
    %c0_2 = arith.constant 0 : index
    %2 = vector.load %arg2[%c0_1, %c0_2] : memref<1x128xf32, #tpu.memory_space<vmem>>, vector<1x128xf32>
    %3 = vector.broadcast %2 : vector<1x128xf32> to vector<8x128xf32>
    %4 = arith.mulf %1, %3 : vector<8x128xf32>
    %c0_3 = arith.constant 0 : index
    %c0_4 = arith.constant 0 : index
    %5 = vector.load %arg3[%c0_3, %c0_4] : memref<1x128xf32, #tpu.memory_space<vmem>>, vector<1x128xf32>
    %6 = vector.broadcast %5 : vector<1x128xf32> to vector<8x128xf32>
    %7 = arith.addf %4, %6 : vector<8x128xf32>
    %cst = arith.constant 0.000000e+00 : f32
    %8 = vector.broadcast %cst : f32 to vector<8x128xf32>
    %9 = arith.maximumf %7, %8 : vector<8x128xf32>
    %10 = arith.truncf %9 : vector<8x128xf32> to vector<8x128xbf16>
    %c0_5 = arith.constant 0 : index
    %c0_6 = arith.constant 0 : index
    %11 = vector.load %arg4[%c0_5, %c0_6] : memref<128x128xbf16, #tpu.memory_space<vmem>>, vector<128x128xbf16>
    %cst_7 = arith.constant dense<0.000000e+00> : vector<8x128xf32>
    %12 = tpu.matmul %10, %11, %cst_7 {dimension_numbers = #tpu.dot_dimension_numbers<[1], [0], [0], [1], [0, 0, 1, 1], [], []>} : vector<8x128xbf16>, vector<128x128xbf16>, vector<8x128xf32> -> vector<8x128xf32>
    %c0_8 = arith.constant 0 : index
    %c0_9 = arith.constant 0 : index
    %13 = vector.load %arg5[%c0_8, %c0_9] : memref<1x128xf32, #tpu.memory_space<vmem>>, vector<1x128xf32>
    %14 = vector.broadcast %13 : vector<1x128xf32> to vector<8x128xf32>
    %15 = arith.addf %12, %14 : vector<8x128xf32>
    %cst_10 = arith.constant 0.000000e+00 : f32
    %16 = vector.broadcast %cst_10 : f32 to vector<8x128xf32>
    %17 = arith.maximumf %15, %16 : vector<8x128xf32>
    %18 = arith.truncf %17 : vector<8x128xf32> to vector<8x128xbf16>
    %c0_11 = arith.constant 0 : index
    %c0_12 = arith.constant 0 : index
    %19 = vector.load %arg6[%c0_11, %c0_12] : memref<128x128xbf16, #tpu.memory_space<vmem>>, vector<128x128xbf16>
    %cst_13 = arith.constant dense<0.000000e+00> : vector<8x128xf32>
    %20 = tpu.matmul %18, %19, %cst_13 {dimension_numbers = #tpu.dot_dimension_numbers<[1], [0], [0], [1], [0, 0, 1, 1], [], []>} : vector<8x128xbf16>, vector<128x128xbf16>, vector<8x128xf32> -> vector<8x128xf32>
    %c0_14 = arith.constant 0 : index
    %c0_15 = arith.constant 0 : index
    %21 = vector.load %arg7[%c0_14, %c0_15] : memref<1x128xf32, #tpu.memory_space<vmem>>, vector<1x128xf32>
    %22 = vector.broadcast %21 : vector<1x128xf32> to vector<8x128xf32>
    %23 = arith.addf %20, %22 : vector<8x128xf32>
    %24 = arith.addf %1, %23 : vector<8x128xf32>
    %25 = arith.truncf %24 : vector<8x128xf32> to vector<8x128xbf16>
    %c0_16 = arith.constant 0 : index
    %c0_17 = arith.constant 0 : index
    %26 = vector.load %arg8[%c0_16, %c0_17] : memref<128x128xbf16, #tpu.memory_space<vmem>>, vector<128x128xbf16>
    %cst_18 = arith.constant dense<0.000000e+00> : vector<8x128xf32>
    %27 = tpu.matmul %25, %26, %cst_18 {dimension_numbers = #tpu.dot_dimension_numbers<[1], [0], [0], [1], [0, 0, 1, 1], [], []>} : vector<8x128xbf16>, vector<128x128xbf16>, vector<8x128xf32> -> vector<8x128xf32>
    %c0_19 = arith.constant 0 : index
    %c0_20 = arith.constant 0 : index
    %28 = vector.load %arg9[%c0_19, %c0_20] : memref<1x128xf32, #tpu.memory_space<vmem>>, vector<1x128xf32>
    %29 = vector.broadcast %28 : vector<1x128xf32> to vector<8x128xf32>
    %30 = arith.addf %27, %29 : vector<8x128xf32>
    %31 = arith.truncf %30 : vector<8x128xf32> to vector<8x128xbf16>
    %c0_21 = arith.constant 0 : index
    %c0_22 = arith.constant 0 : index
    %32 = vector.load %arg10[%c0_21, %c0_22] : memref<8x128xbf16, #tpu.memory_space<vmem>>, vector<8x128xbf16>
    tpu.vector_store %arg10[%c0_21, %c0_22], %31 {strides = array<i32>} : memref<8x128xbf16, #tpu.memory_space<vmem>>, vector<8x128xbf16>,
    return
  }
  func.func @transform_0(%arg0: i32) -> (i32, i32) {
    %c0_i32 = arith.constant 0 : i32
    %c0_i32_0 = arith.constant 0 : i32
    return %arg0, %c0_i32 : i32, i32
  }
  func.func @transform_1(%arg0: i32) -> (i32, i32) {
    %c0_i32 = arith.constant 0 : i32
    %c0_i32_0 = arith.constant 0 : i32
    %c0_i32_1 = arith.constant 0 : i32
    return %c0_i32, %c0_i32_0 : i32, i32
  }
  func.func @transform_2(%arg0: i32) -> (i32, i32) {
    %c0_i32 = arith.constant 0 : i32
    %c0_i32_0 = arith.constant 0 : i32
    %c0_i32_1 = arith.constant 0 : i32
    return %c0_i32, %c0_i32_0 : i32, i32
  }
  func.func @transform_3(%arg0: i32) -> (i32, i32) {
    %c0_i32 = arith.constant 0 : i32
    %c0_i32_0 = arith.constant 0 : i32
    %c0_i32_1 = arith.constant 0 : i32
    return %c0_i32, %c0_i32_0 : i32, i32
  }
  func.func @transform_4(%arg0: i32) -> (i32, i32) {
    %c0_i32 = arith.constant 0 : i32
    %c0_i32_0 = arith.constant 0 : i32
    %c0_i32_1 = arith.constant 0 : i32
    return %c0_i32, %c0_i32_0 : i32, i32
  }
  func.func @transform_5(%arg0: i32) -> (i32, i32) {
    %c0_i32 = arith.constant 0 : i32
    %c0_i32_0 = arith.constant 0 : i32
    %c0_i32_1 = arith.constant 0 : i32
    return %c0_i32, %c0_i32_0 : i32, i32
  }
  func.func @transform_6(%arg0: i32) -> (i32, i32) {
    %c0_i32 = arith.constant 0 : i32
    %c0_i32_0 = arith.constant 0 : i32
    %c0_i32_1 = arith.constant 0 : i32
    return %c0_i32, %c0_i32_0 : i32, i32
  }
  func.func @transform_7(%arg0: i32) -> (i32, i32) {
    %c0_i32 = arith.constant 0 : i32
    %c0_i32_0 = arith.constant 0 : i32
    %c0_i32_1 = arith.constant 0 : i32
    return %c0_i32, %c0_i32_0 : i32, i32
  }
  func.func @transform_8(%arg0: i32) -> (i32, i32) {
    %c0_i32 = arith.constant 0 : i32
    %c0_i32_0 = arith.constant 0 : i32
    %c0_i32_1 = arith.constant 0 : i32
    return %c0_i32, %c0_i32_0 : i32, i32
  }
  func.func @transform_9(%arg0: i32) -> (i32, i32) {
    %c0_i32 = arith.constant 0 : i32
    %c0_i32_0 = arith.constant 0 : i32
    return %arg0, %c0_i32 : i32, i32
  }
}

</mosaic_0001>

<llo_original>
// kernel: wcrn_forward.3
$region0: #{wcrn_forward.3}
  #allocation0 [shape = 'u32[]', space=smem, size = 0x4, offset = 0x4, fixed_abs, tag = 'smem constant byte address 0x4 - core index']
  #allocation1 [shape = 'u32[144,128]{1,0:T(1,128)}', space=vmem, size = 0x12000, scoped, tag = 'internal scratch']
  %s0 = inlined_call_operand.vmem [shape: bf16[8,128], index: 0, kind: input, shape index: {}]
  %s1 = inlined_call_operand.vmem [shape: f32[1,128], index: 1, kind: input, shape index: {}]
  %s2 = inlined_call_operand.vmem [shape: f32[1,128], index: 2, kind: input, shape index: {}]
  %s3 = inlined_call_operand.vmem [shape: bf16[128,128], index: 3, kind: input, shape index: {}]
  %s4 = inlined_call_operand.vmem [shape: f32[1,128], index: 4, kind: input, shape index: {}]
  %s5 = inlined_call_operand.vmem [shape: bf16[128,128], index: 5, kind: input, shape index: {}]
  %s6 = inlined_call_operand.vmem [shape: f32[1,128], index: 6, kind: input, shape index: {}]
  %s7 = inlined_call_operand.vmem [shape: bf16[128,128], index: 7, kind: input, shape index: {}]
  %s8 = inlined_call_operand.vmem [shape: f32[1,128], index: 8, kind: input, shape index: {}]
  %s9 = inlined_call_operand.vmem [shape: bf16[8,128], index: 9, kind: output, shape index: {}]
  %s10 = sld [smem:[#allocation0]]
  $region46: #{wcrn_forward.3} parent=0
    _
  %s12 = ssub.s32 1, %s10
  %s13 = scalar_select 0, %s12, %s10
  // Predicated region
  $region2: #{wcrn_forward.3} parent=0 // pred_check
    _
  $region3: #{wcrn_forward.3} parent=0 // pred_check_branch
    %15 = sbr.rel (0) target = $region5
  $region4: #{wcrn_forward.3} parent=0 // pred_region
    _
  $region5: #{wcrn_forward.3} parent=0 // pred_fallthru
    _
  // Predicated region
  $region6: #{wcrn_forward.3} parent=0 // pred_check
    _
  $region7: #{wcrn_forward.3} parent=0 // pred_check_branch
    %17 = sbr.rel (0) target = $region9
  $region8: #{wcrn_forward.3} parent=0 // pred_region
    _
  $region9: #{wcrn_forward.3} parent=0 // pred_fallthru
    _
  // Predicated region
  $region10: #{wcrn_forward.3} parent=0 // pred_check
    _
  $region11: #{wcrn_forward.3} parent=0 // pred_check_branch
    %19 = sbr.rel (0) target = $region13
  $region12: #{wcrn_forward.3} parent=0 // pred_region
    _
  $region13: #{wcrn_forward.3} parent=0 // pred_fallthru
    _
  // Predicated region
  $region14: #{wcrn_forward.3} parent=0 // pred_check
    _
  $region15: #{wcrn_forward.3} parent=0 // pred_check_branch
    %21 = sbr.rel (0) target = $region17
  $region16: #{wcrn_forward.3} parent=0 // pred_region
    _
  $region17: #{wcrn_forward.3} parent=0 // pred_fallthru
    _
  // Predicated region
  $region18: #{wcrn_forward.3} parent=0 // pred_check
    _
  $region19: #{wcrn_forward.3} parent=0 // pred_check_branch
    %23 = sbr.rel (0) target = $region21
  $region20: #{wcrn_forward.3} parent=0 // pred_region
    _
  $region21: #{wcrn_forward.3} parent=0 // pred_fallthru
    _
  // Predicated region
  $region22: #{wcrn_forward.3} parent=0 // pred_check
    _
  $region23: #{wcrn_forward.3} parent=0 // pred_check_branch
    %25 = sbr.rel (0) target = $region25
  $region24: #{wcrn_forward.3} parent=0 // pred_region
    _
  $region25: #{wcrn_forward.3} parent=0 // pred_fallthru
    _
  // Predicated region
  $region26: #{wcrn_forward.3} parent=0 // pred_check
    _
  $region27: #{wcrn_forward.3} parent=0 // pred_check_branch
    %27 = sbr.rel (0) target = $region29
  $region28: #{wcrn_forward.3} parent=0 // pred_region
    _
  $region29: #{wcrn_forward.3} parent=0 // pred_fallthru
    _
  // Predicated region
  $region30: #{wcrn_forward.3} parent=0 // pred_check
    _
  $region31: #{wcrn_forward.3} parent=0 // pred_check_branch
    %29 = sbr.rel (0) target = $region33
  $region32: #{wcrn_forward.3} parent=0 // pred_region
    _
  $region33: #{wcrn_forward.3} parent=0 // pred_fallthru
    _
  // Predicated region
  $region34: #{wcrn_forward.3} parent=0 // pred_check
    _
  $region35: #{wcrn_forward.3} parent=0 // pred_check_branch
    %31 = sbr.rel (0) target = $region37
  $region36: #{wcrn_forward.3} parent=0 // pred_region
    _
  $region37: #{wcrn_forward.3} parent=0 // pred_fallthru
    _
  %v33 = vld [vmem:[%s0] sm:$0xf]
  %v34 = vunpack.c.l.bf16 %v33
  %v35 = vld [vmem:[%s1] sm:$0x1]
  %v37 = vlaneseq
  %v38 = vshrl.u32 %v37, 7
  %v39 = vsub.s32 0, %v38
  %v40 = vrot.slane %v35, %v39
  %v42 = vmul.f32 %v34, %v40
  %v43 = vld [vmem:[%s2] sm:$0x1]
  %v45 = vlaneseq
  %v46 = vshrl.u32 %v45, 7
  %v47 = vsub.s32 0, %v46
  %v48 = vrot.slane %v43, %v47
  %v50 = vadd.f32 %v42, %v48
  %v51 = vmax.f32 %v50, 0.0
  %v52 = vpack.c.bf16 %v51, %v51
  %v53 = vld [vmem:[%s3] sm:$0xf]
  %v54 = vld [vmem:[%s3 + $0x4] sm:$0xf]
  %v55 = vld [vmem:[%s3 + $0x8] sm:$0xf]
  %v56 = vld [vmem:[%s3 + $0xc] sm:$0xf]
  %v57 = vld [vmem:[%s3 + $0x10] sm:$0xf]
  %v58 = vld [vmem:[%s3 + $0x14] sm:$0xf]
  %v59 = vld [vmem:[%s3 + $0x18] sm:$0xf]
  %v60 = vld [vmem:[%s3 + $0x1c] sm:$0xf]
  %v61 = vld [vmem:[%s3 + $0x20] sm:$0xf]
  %v62 = vld [vmem:[%s3 + $0x24] sm:$0xf]
  %v63 = vld [vmem:[%s3 + $0x28] sm:$0xf]
  %v64 = vld [vmem:[%s3 + $0x2c] sm:$0xf]
  %v65 = vld [vmem:[%s3 + $0x30] sm:$0xf]
  %v66 = vld [vmem:[%s3 + $0x34] sm:$0xf]
  %v67 = vld [vmem:[%s3 + $0x38] sm:$0xf]
  %v68 = vld [vmem:[%s3 + $0x3c] sm:$0xf]
  %v69 = vld [vmem:[%s4] sm:$0x1]
  %v71 = vlaneseq
  %v72 = vshrl.u32 %v71, 7
  %v73 = vsub.s32 0, %v72
  %v74 = vrot.slane %v69, %v73
  %v92 = vunpack.c.l.b16 %v53
  %v93 = vunpack.c.l.b16 %v54
  %v94 = vunpack.c.l.b16 %v55
  %v95 = vunpack.c.l.b16 %v56
  %v96 = vunpack.c.l.b16 %v57
  %v97 = vunpack.c.l.b16 %v58
  %v98 = vunpack.c.l.b16 %v59
  %v99 = vunpack.c.l.b16 %v60
  %v100 = vunpack.c.l.b16 %v61
  %v101 = vunpack.c.l.b16 %v62
  %v102 = vunpack.c.l.b16 %v63
  %v103 = vunpack.c.l.b16 %v64
  %v104 = vunpack.c.l.b16 %v65
  %v105 = vunpack.c.l.b16 %v66
  %v106 = vunpack.c.l.b16 %v67
  %v107 = vunpack.c.l.b16 %v68
  %v108 = vpack.c.b16 %v93, %v92
  %v109 = vpack.c.b16 %v95, %v94
  %v110 = vpack.c.b16 %v97, %v96
  %v111 = vpack.c.b16 %v99, %v98
  %v112 = vpack.c.b16 %v101, %v100
  %v113 = vpack.c.b16 %v103, %v102
  %v114 = vpack.c.b16 %v105, %v104
  %v115 = vpack.c.b16 %v107, %v106
  %124 = vmatprep.subr.bf16.mxu0 0
  %125 = vmatpush1.bf16.msra.mxu0 %v108
  %126 = vmatprep.subr.bf16.mxu0 0
  %127 = vmatpush1.bf16.msra.mxu0 %v109
  %128 = vmatprep.subr.bf16.mxu0 0
  %129 = vmatpush1.bf16.msra.mxu0 %v110
  %130 = vmatprep.subr.bf16.mxu0 0
  %131 = vmatpush1.bf16.msra.mxu0 %v111
  %132 = vmatprep.subr.bf16.mxu0 0
  %133 = vmatpush1.bf16.msra.mxu0 %v112
  %134 = vmatprep.subr.bf16.mxu0 0
  %135 = vmatpush1.bf16.msra.mxu0 %v113
  %136 = vmatprep.subr.bf16.mxu0 0
  %137 = vmatpush1.bf16.msra.mxu0 %v114
  %138 = vmatprep.subr.bf16.mxu0 0
  %139 = vmatpush1.bf16.msra.mxu0 %v115
  %140 = vmatprep.subr.bf16.mxu0 0
  %141 = vmatpush1.bf16.msra.mxu0 0
  %142 = vmatprep.subr.bf16.mxu0 0
  %143 = vmatpush1.bf16.msra.mxu0 0
  %144 = vmatprep.subr.bf16.mxu0 0
  %145 = vmatpush1.bf16.msra.mxu0 0
  %146 = vmatprep.subr.bf16.mxu0 0
  %147 = vmatpush1.bf16.msra.mxu0 0
  %148 = vmatprep.subr.bf16.mxu0 0
  %149 = vmatpush1.bf16.msra.mxu0 0
  %150 = vmatprep.subr.bf16.mxu0 0
  %151 = vmatpush1.bf16.msra.mxu0 0
  %152 = vmatprep.subr.bf16.mxu0 0
  %153 = vmatpush1.bf16.msra.mxu0 0
  %154 = vmatprep.subr.bf16.mxu0 0
  %155 = vmatpush1.bf16.msra.mxu0 0
  %156 = vmatprep.mubr.bf16.mxu0 0
  %157 = vmatmul.mubr.bf16.gmra.mrb[0].mxu0 %v52
  %v158 = vpop.f32.mrb[0].mxu0
  %v159 = vadd.f32 %v74, %v158
  %v160 = vpop.f32.mrb[0].mxu0
  %v161 = vpop.f32.mrb[0].mxu0
  %v162 = vpop.f32.mrb[0].mxu0
  %163 = vdwg.mxu0
  %v164 = vmax.f32 %v159, 0.0
  %v165 = vpack.c.bf16 %v164, %v164
  %v166 = vld [vmem:[%s5] sm:$0xf]
  %v167 = vld [vmem:[%s5 + $0x4] sm:$0xf]
  %v168 = vld [vmem:[%s5 + $0x8] sm:$0xf]
  %v169 = vld [vmem:[%s5 + $0xc] sm:$0xf]
  %v170 = vld [vmem:[%s5 + $0x10] sm:$0xf]
  %v171 = vld [vmem:[%s5 + $0x14] sm:$0xf]
  %v172 = vld [vmem:[%s5 + $0x18] sm:$0xf]
  %v173 = vld [vmem:[%s5 + $0x1c] sm:$0xf]
  %v174 = vld [vmem:[%s5 + $0x20] sm:$0xf]
  %v175 = vld [vmem:[%s5 + $0x24] sm:$0xf]
  %v176 = vld [vmem:[%s5 + $0x28] sm:$0xf]
  %v177 = vld [vmem:[%s5 + $0x2c] sm:$0xf]
  %v178 = vld [vmem:[%s5 + $0x30] sm:$0xf]
  %v179 = vld [vmem:[%s5 + $0x34] sm:$0xf]
  %v180 = vld [vmem:[%s5 + $0x38] sm:$0xf]
  %v181 = vld [vmem:[%s5 + $0x3c] sm:$0xf]
  %v182 = vld [vmem:[%s6] sm:$0x1]
  %v184 = vlaneseq
  %v185 = vshrl.u32 %v184, 7
  %v186 = vsub.s32 0, %v185
  %v187 = vrot.slane %v182, %v186
  %v205 = vunpack.c.l.b16 %v166
  %v206 = vunpack.c.l.b16 %v167
  %v207 = vunpack.c.l.b16 %v168
  %v208 = vunpack.c.l.b16 %v169
  %v209 = vunpack.c.l.b16 %v170
  %v210 = vunpack.c.l.b16 %v171
  %v211 = vunpack.c.l.b16 %v172
  %v212 = vunpack.c.l.b16 %v173
  %v213 = vunpack.c.l.b16 %v174
  %v214 = vunpack.c.l.b16 %v175
  %v215 = vunpack.c.l.b16 %v176
  %v216 = vunpack.c.l.b16 %v177
  %v217 = vunpack.c.l.b16 %v178
  %v218 = vunpack.c.l.b16 %v179
  %v219 = vunpack.c.l.b16 %v180
  %v220 = vunpack.c.l.b16 %v181
  %v221 = vpack.c.b16 %v206, %v205
  %v222 = vpack.c.b16 %v208, %v207
  %v223 = vpack.c.b16 %v210, %v209
  %v224 = vpack.c.b16 %v212, %v211
  %v225 = vpack.c.b16 %v214, %v213
  %v226 = vpack.c.b16 %v216, %v215
  %v227 = vpack.c.b16 %v218, %v217
  %v228 = vpack.c.b16 %v220, %v219
  %237 = vmatprep.subr.bf16.mxu0 0
  %238 = vmatpush1.bf16.msra.mxu0 %v221
  %239 = vmatprep.subr.bf16.mxu0 0
  %240 = vmatpush1.bf16.msra.mxu0 %v222
  %241 = vmatprep.subr.bf16.mxu0 0
  %242 = vmatpush1.bf16.msra.mxu0 %v223
  %243 = vmatprep.subr.bf16.mxu0 0
  %244 = vmatpush1.bf16.msra.mxu0 %v224
  %245 = vmatprep.subr.bf16.mxu0 0
  %246 = vmatpush1.bf16.msra.mxu0 %v225
  %247 = vmatprep.subr.bf16.mxu0 0
  %248 = vmatpush1.bf16.msra.mxu0 %v226
  %249 = vmatprep.subr.bf16.mxu0 0
  %250 = vmatpush1.bf16.msra.mxu0 %v227
  %251 = vmatprep.subr.bf16.mxu0 0
  %252 = vmatpush1.bf16.msra.mxu0 %v228
  %253 = vmatprep.subr.bf16.mxu0 0
  %254 = vmatpush1.bf16.msra.mxu0 0
  %255 = vmatprep.subr.bf16.mxu0 0
  %256 = vmatpush1.bf16.msra.mxu0 0
  %257 = vmatprep.subr.bf16.mxu0 0
  %258 = vmatpush1.bf16.msra.mxu0 0
  %259 = vmatprep.subr.bf16.mxu0 0
  %260 = vmatpush1.bf16.msra.mxu0 0
  %261 = vmatprep.subr.bf16.mxu0 0
  %262 = vmatpush1.bf16.msra.mxu0 0
  %263 = vmatprep.subr.bf16.mxu0 0
  %264 = vmatpush1.bf16.msra.mxu0 0
  %265 = vmatprep.subr.bf16.mxu0 0
  %266 = vmatpush1.bf16.msra.mxu0 0
  %267 = vmatprep.subr.bf16.mxu0 0
  %268 = vmatpush1.bf16.msra.mxu0 0
  %269 = vmatprep.mubr.bf16.mxu0 0
  %270 = vmatmul.mubr.bf16.gmra.mrb[0].mxu0 %v165
  %v271 = vpop.f32.mrb[0].mxu0
  %v272 = vadd.f32 %v187, %v271
  %v273 = vpop.f32.mrb[0].mxu0
  %v274 = vpop.f32.mrb[0].mxu0
  %v275 = vpop.f32.mrb[0].mxu0
  %276 = vdwg.mxu0
  %v277 = vadd.f32 %v34, %v272
  %v278 = vpack.c.bf16 %v277, %v277
  %v279 = vld [vmem:[%s7] sm:$0xf]
  %v280 = vld [vmem:[%s7 + $0x4] sm:$0xf]
  %v281 = vld [vmem:[%s7 + $0x8] sm:$0xf]
  %v282 = vld [vmem:[%s7 + $0xc] sm:$0xf]
  %v283 = vld [vmem:[%s7 + $0x10] sm:$0xf]
  %v284 = vld [vmem:[%s7 + $0x14] sm:$0xf]
  %v285 = vld [vmem:[%s7 + $0x18] sm:$0xf]
  %v286 = vld [vmem:[%s7 + $0x1c] sm:$0xf]
  %v287 = vld [vmem:[%s7 + $0x20] sm:$0xf]
  %v288 = vld [vmem:[%s7 + $0x24] sm:$0xf]
  %v289 = vld [vmem:[%s7 + $0x28] sm:$0xf]
  %v290 = vld [vmem:[%s7 + $0x2c] sm:$0xf]
  %v291 = vld [vmem:[%s7 + $0x30] sm:$0xf]
  %v292 = vld [vmem:[%s7 + $0x34] sm:$0xf]
  %v293 = vld [vmem:[%s7 + $0x38] sm:$0xf]
  %v294 = vld [vmem:[%s7 + $0x3c] sm:$0xf]
  %v295 = vld [vmem:[%s8] sm:$0x1]
  %v297 = vlaneseq
  %v298 = vshrl.u32 %v297, 7
  %v299 = vsub.s32 0, %v298
  %v300 = vrot.slane %v295, %v299
  %v318 = vunpack.c.l.b16 %v279
  %v319 = vunpack.c.l.b16 %v280
  %v320 = vunpack.c.l.b16 %v281
  %v321 = vunpack.c.l.b16 %v282
  %v322 = vunpack.c.l.b16 %v283
  %v323 = vunpack.c.l.b16 %v284
  %v324 = vunpack.c.l.b16 %v285
  %v325 = vunpack.c.l.b16 %v286
  %v326 = vunpack.c.l.b16 %v287
  %v327 = vunpack.c.l.b16 %v288
  %v328 = vunpack.c.l.b16 %v289
  %v329 = vunpack.c.l.b16 %v290
  %v330 = vunpack.c.l.b16 %v291
  %v331 = vunpack.c.l.b16 %v292
  %v332 = vunpack.c.l.b16 %v293
  %v333 = vunpack.c.l.b16 %v294
  %v334 = vpack.c.b16 %v319, %v318
  %v335 = vpack.c.b16 %v321, %v320
  %v336 = vpack.c.b16 %v323, %v322
  %v337 = vpack.c.b16 %v325, %v324
  %v338 = vpack.c.b16 %v327, %v326
  %v339 = vpack.c.b16 %v329, %v328
  %v340 = vpack.c.b16 %v331, %v330
  %v341 = vpack.c.b16 %v333, %v332
  %350 = vmatprep.subr.bf16.mxu0 0
  %351 = vmatpush1.bf16.msra.mxu0 %v334
  %352 = vmatprep.subr.bf16.mxu0 0
  %353 = vmatpush1.bf16.msra.mxu0 %v335
  %354 = vmatprep.subr.bf16.mxu0 0
  %355 = vmatpush1.bf16.msra.mxu0 %v336
  %356 = vmatprep.subr.bf16.mxu0 0
  %357 = vmatpush1.bf16.msra.mxu0 %v337
  %358 = vmatprep.subr.bf16.mxu0 0
  %359 = vmatpush1.bf16.msra.mxu0 %v338
  %360 = vmatprep.subr.bf16.mxu0 0
  %361 = vmatpush1.bf16.msra.mxu0 %v339
  %362 = vmatprep.subr.bf16.mxu0 0
  %363 = vmatpush1.bf16.msra.mxu0 %v340
  %364 = vmatprep.subr.bf16.mxu0 0
  %365 = vmatpush1.bf16.msra.mxu0 %v341
  %366 = vmatprep.subr.bf16.mxu0 0
  %367 = vmatpush1.bf16.msra.mxu0 0
  %368 = vmatprep.subr.bf16.mxu0 0
  %369 = vmatpush1.bf16.msra.mxu0 0
  %370 = vmatprep.subr.bf16.mxu0 0
  %371 = vmatpush1.bf16.msra.mxu0 0
  %372 = vmatprep.subr.bf16.mxu0 0
  %373 = vmatpush1.bf16.msra.mxu0 0
  %374 = vmatprep.subr.bf16.mxu0 0
  %375 = vmatpush1.bf16.msra.mxu0 0
  %376 = vmatprep.subr.bf16.mxu0 0
  %377 = vmatpush1.bf16.msra.mxu0 0
  %378 = vmatprep.subr.bf16.mxu0 0
  %379 = vmatpush1.bf16.msra.mxu0 0
  %380 = vmatprep.subr.bf16.mxu0 0
  %381 = vmatpush1.bf16.msra.mxu0 0
  %382 = vmatprep.mubr.bf16.mxu0 0
  %383 = vmatmul.mubr.bf16.gmra.mrb[0].mxu0 %v278
  %v384 = vpop.f32.mrb[0].mxu0
  %v385 = vadd.f32 %v300, %v384
  %v386 = vpop.f32.mrb[0].mxu0
  %v387 = vpop.f32.mrb[0].mxu0
  %v388 = vpop.f32.mrb[0].mxu0
  %389 = vdwg.mxu0
  %v390 = vpack.c.bf16 %v385, %v385
  %391 = vst [vmem:[%s9] sm:$0xf] %v390
  // Predicated region
  $region38: #{wcrn_forward.3} parent=0 // pred_check
    _
  $region39: #{wcrn_forward.3} parent=0 // pred_check_branch
    %393 = sbr.rel (0) target = $region41
  $region40: #{wcrn_forward.3} parent=0 // pred_region
    _
  $region41: #{wcrn_forward.3} parent=0 // pred_fallthru
    _
  // Predicated region
  $region42: #{wcrn_forward.3} parent=0 // pred_check
    _
  $region43: #{wcrn_forward.3} parent=0 // pred_check_branch
    %395 = sbr.rel (0) target = $region45
  $region44: #{wcrn_forward.3} parent=0 // pred_region
    _
  $region45: #{wcrn_forward.3} parent=0 // pred_fallthru
    _

// kernel: wcrn_forward.2
$region0: #{wcrn_forward.2}
  #allocation0 [shape = 'u32[]', space=smem, size = 0x4, offset = 0x4, fixed_abs, tag = 'smem constant byte address 0x4 - core index']
  #allocation1 [shape = 'u32[144,128]{1,0:T(1,128)}', space=vmem, size = 0x12000, scoped, tag = 'internal scratch']
  %s0 = inlined_call_operand.vmem [shape: bf16[25,8,128], index: 0, kind: input, shape index: {}]
  %s1 = inlined_call_operand.vmem [shape: bf16[1152,128], index: 1, kind: input, shape index: {}]
  %s2 = inlined_call_operand.vmem [shape: bf16[128,128], index: 2, kind: input, shape index: {}]
  %s3 = inlined_call_operand.vmem [shape: f32[1,128], index: 3, kind: input, shape index: {}]
  %s4 = inlined_call_operand.vmem [shape: bf16[8,128], index: 4, kind: output, shape index: {0}]
  %s5 = inlined_call_operand.vmem [shape: f32[8,128], index: 5, kind: output, shape index: {1}]
  %s6 = inlined_call_operand.vmem [shape: f32[8,128], index: 6, kind: output, shape index: {2}]
  %7 = xla_tuple %s4, %s5, %s6
  %s8 = sld [smem:[#allocation0]]
  $region42: #{wcrn_forward.2} parent=0
    _
  %s10 = ssub.s32 1, %s8
  %s11 = scalar_select 0, %s10, %s8
  // Predicated region
  $region2: #{wcrn_forward.2} parent=0 // pred_check
    _
  $region3: #{wcrn_forward.2} parent=0 // pred_check_branch
    %13 = sbr.rel (0) target = $region5
  $region4: #{wcrn_forward.2} parent=0 // pred_region
    _
  $region5: #{wcrn_forward.2} parent=0 // pred_fallthru
    _
  // Predicated region
  $region6: #{wcrn_forward.2} parent=0 // pred_check
    _
  $region7: #{wcrn_forward.2} parent=0 // pred_check_branch
    %15 = sbr.rel (0) target = $region9
  $region8: #{wcrn_forward.2} parent=0 // pred_region
    _
  $region9: #{wcrn_forward.2} parent=0 // pred_fallthru
    _
  // Predicated region
  $region10: #{wcrn_forward.2} parent=0 // pred_check
    _
  $region11: #{wcrn_forward.2} parent=0 // pred_check_branch
    %17 = sbr.rel (0) target = $region13
  $region12: #{wcrn_forward.2} parent=0 // pred_region
    _
  $region13: #{wcrn_forward.2} parent=0 // pred_fallthru
    _
  // Predicated region
  $region14: #{wcrn_forward.2} parent=0 // pred_check
    _
  $region15: #{wcrn_forward.2} parent=0 // pred_check_branch
    %19 = sbr.rel (0) target = $region17
  $region16: #{wcrn_forward.2} parent=0 // pred_region
    _
  $region17: #{wcrn_forward.2} parent=0 // pred_fallthru
    _
  %v21 = vld [vmem:[%s0] sm:$0xf]
  %v22 = vld [vmem:[%s0 + $0x4] sm:$0xf]
  %v23 = vld [vmem:[%s0 + $0x8] sm:$0xf]
  %v24 = vld [vmem:[%s0 + $0xc] sm:$0xf]
  %v25 = vld [vmem:[%s0 + $0x10] sm:$0xf]
  %v26 = vld [vmem:[%s0 + $0x14] sm:$0xf]
  %v27 = vld [vmem:[%s0 + $0x18] sm:$0xf]
  %v28 = vld [vmem:[%s0 + $0x1c] sm:$0xf]
  %v29 = vld [vmem:[%s0 + $0x20] sm:$0xf]
  %v30 = vld [vmem:[%s0 + $0x24] sm:$0xf]
  %v31 = vld [vmem:[%s0 + $0x28] sm:$0xf]
  %v32 = vld [vmem:[%s0 + $0x2c] sm:$0xf]
  %v33 = vld [vmem:[%s0 + $0x30] sm:$0xf]
  %v34 = vld [vmem:[%s0 + $0x34] sm:$0xf]
  %v35 = vld [vmem:[%s0 + $0x38] sm:$0xf]
  %v36 = vld [vmem:[%s0 + $0x3c] sm:$0xf]
  %v37 = vld [vmem:[%s0 + $0x40] sm:$0xf]
  %v38 = vld [vmem:[%s0 + $0x44] sm:$0xf]
  %v39 = vld [vmem:[%s0 + $0x48] sm:$0xf]
  %v40 = vld [vmem:[%s0 + $0x4c] sm:$0xf]
  %v41 = vld [vmem:[%s0 + $0x50] sm:$0xf]
  %v42 = vld [vmem:[%s0 + $0x54] sm:$0xf]
  %v43 = vld [vmem:[%s0 + $0x58] sm:$0xf]
  %v44 = vld [vmem:[%s0 + $0x5c] sm:$0xf]
  %v45 = vld [vmem:[%s0 + $0x60] sm:$0xf]
  %v46 = vld [vmem:[%s2] sm:$0xf]
  %v47 = vld [vmem:[%s2 + $0x4] sm:$0xf]
  %v48 = vld [vmem:[%s2 + $0x8] sm:$0xf]
  %v49 = vld [vmem:[%s2 + $0xc] sm:$0xf]
  %v50 = vld [vmem:[%s2 + $0x10] sm:$0xf]
  %v51 = vld [vmem:[%s2 + $0x14] sm:$0xf]
  %v52 = vld [vmem:[%s2 + $0x18] sm:$0xf]
  %v53 = vld [vmem:[%s2 + $0x1c] sm:$0xf]
  %v54 = vld [vmem:[%s2 + $0x20] sm:$0xf]
  %v55 = vld [vmem:[%s2 + $0x24] sm:$0xf]
  %v56 = vld [vmem:[%s2 + $0x28] sm:$0xf]
  %v57 = vld [vmem:[%s2 + $0x2c] sm:$0xf]
  %v58 = vld [vmem:[%s2 + $0x30] sm:$0xf]
  %v59 = vld [vmem:[%s2 + $0x34] sm:$0xf]
  %v60 = vld [vmem:[%s2 + $0x38] sm:$0xf]
  %v61 = vld [vmem:[%s2 + $0x3c] sm:$0xf]
  %v87 = vunpack.c.l.b16 %v21
  %v88 = vunpack.c.l.b16 %v22
  %v89 = vunpack.c.l.b16 %v23
  %v90 = vunpack.c.l.b16 %v24
  %v91 = vunpack.c.l.b16 %v25
  %v92 = vunpack.c.l.b16 %v26
  %v93 = vunpack.c.l.b16 %v27
  %v94 = vunpack.c.l.b16 %v28
  %v95 = vunpack.c.l.b16 %v29
  %v96 = vunpack.c.l.b16 %v30
  %v97 = vunpack.c.l.b16 %v31
  %v98 = vunpack.c.l.b16 %v32
  %v99 = vunpack.c.l.b16 %v33
  %v100 = vunpack.c.l.b16 %v34
  %v101 = vunpack.c.l.b16 %v35
  %v102 = vunpack.c.l.b16 %v36
  %v103 = vunpack.c.l.b16 %v37
  %v104 = vunpack.c.l.b16 %v38
  %v105 = vunpack.c.l.b16 %v39
  %v106 = vunpack.c.l.b16 %v40
  %v107 = vunpack.c.l.b16 %v41
  %v108 = vunpack.c.l.b16 %v42
  %v109 = vunpack.c.l.b16 %v43
  %v110 = vunpack.c.l.b16 %v44
  %v111 = vunpack.c.l.b16 %v45
  %v112 = vpack.c.b16 %v88, %v87
  %v113 = vpack.c.b16 %v90, %v89
  %v114 = vpack.c.b16 %v92, %v91
  %v115 = vpack.c.b16 %v94, %v93
  %v116 = vpack.c.b16 %v96, %v95
  %v117 = vpack.c.b16 %v98, %v97
  %v118 = vpack.c.b16 %v100, %v99
  %v119 = vpack.c.b16 %v102, %v101
  %v120 = vpack.c.b16 %v104, %v103
  %v121 = vpack.c.b16 %v106, %v105
  %v122 = vpack.c.b16 %v108, %v107
  %v123 = vpack.c.b16 %v110, %v109
  %v124 = vpack.c.b16 %v111, %v111
  %v154 = vunpack.c.l.b16 %v46
  %v155 = vunpack.c.l.b16 %v47
  %v156 = vunpack.c.l.b16 %v48
  %v157 = vunpack.c.l.b16 %v49
  %v158 = vunpack.c.l.b16 %v50
  %v159 = vunpack.c.l.b16 %v51
  %v160 = vunpack.c.l.b16 %v52
  %v161 = vunpack.c.l.b16 %v53
  %v162 = vunpack.c.l.b16 %v54
  %v163 = vunpack.c.l.b16 %v55
  %v164 = vunpack.c.l.b16 %v56
  %v165 = vunpack.c.l.b16 %v57
  %v166 = vunpack.c.l.b16 %v58
  %v167 = vunpack.c.l.b16 %v59
  %v168 = vunpack.c.l.b16 %v60
  %v169 = vunpack.c.l.b16 %v61
  %v170 = vpack.c.b16 %v155, %v154
  %v171 = vpack.c.b16 %v157, %v156
  %v172 = vpack.c.b16 %v159, %v158
  %v173 = vpack.c.b16 %v161, %v160
  %v174 = vpack.c.b16 %v163, %v162
  %v175 = vpack.c.b16 %v165, %v164
  %v176 = vpack.c.b16 %v167, %v166
  %v177 = vpack.c.b16 %v169, %v168
  %186 = vmatprep.subr.bf16.mxu0 0
  %187 = vmatpush1.bf16.msra.mxu0 %v170
  %188 = vmatprep.subr.bf16.mxu0 0
  %189 = vmatpush1.bf16.msra.mxu0 %v171
  %190 = vmatprep.subr.bf16.mxu0 0
  %191 = vmatpush1.bf16.msra.mxu0 %v172
  %192 = vmatprep.subr.bf16.mxu0 0
  %193 = vmatpush1.bf16.msra.mxu0 %v173
  %194 = vmatprep.subr.bf16.mxu0 0
  %195 = vmatpush1.bf16.msra.mxu0 %v174
  %196 = vmatprep.subr.bf16.mxu0 0
  %197 = vmatpush1.bf16.msra.mxu0 %v175
  %198 = vmatprep.subr.bf16.mxu0 0
  %199 = vmatpush1.bf16.msra.mxu0 %v176
  %200 = vmatprep.subr.bf16.mxu0 0
  %201 = vmatpush1.bf16.msra.mxu0 %v177
  %202 = vmatprep.subr.bf16.mxu0 0
  %203 = vmatpush1.bf16.msra.mxu0 0
  %204 = vmatprep.subr.bf16.mxu0 0
  %205 = vmatpush1.bf16.msra.mxu0 0
  %206 = vmatprep.subr.bf16.mxu0 0
  %207 = vmatpush1.bf16.msra.mxu0 0
  %208 = vmatprep.subr.bf16.mxu0 0
  %209 = vmatpush1.bf16.msra.mxu0 0
  %210 = vmatprep.subr.bf16.mxu0 0
  %211 = vmatpush1.bf16.msra.mxu0 0
  %212 = vmatprep.subr.bf16.mxu0 0
  %213 = vmatpush1.bf16.msra.mxu0 0
  %214 = vmatprep.subr.bf16.mxu0 0
  %215 = vmatpush1.bf16.msra.mxu0 0
  %216 = vmatprep.subr.bf16.mxu0 0
  %217 = vmatpush1.bf16.msra.mxu0 0
  %218 = vmatprep.mubr.bf16.mxu0 0
  %219 = vmatmul.mubr.bf16.gmra.mrb[0].mxu0 %v112
  %v220 = vpop.f32.mrb[0].mxu0
  %v221 = vadd.f32 0.0, %v220
  %v222 = vpop.f32.mrb[0].mxu0
  %v223 = vpop.f32.mrb[0].mxu0
  %v224 = vadd.f32 0.0, %v223
  %v225 = vpop.f32.mrb[0].mxu0
  %226 = vmatprep.mubr.bf16.mxu0 0
  %227 = vmatmul.mubr.bf16.gmra.mrb[0].mxu0 %v113
  %v228 = vpop.f32.mrb[0].mxu0
  %v229 = vadd.f32 0.0, %v228
  %v230 = vpop.f32.mrb[0].mxu0
  %v231 = vpop.f32.mrb[0].mxu0
  %v232 = vadd.f32 0.0, %v231
  %v233 = vpop.f32.mrb[0].mxu0
  %234 = vmatprep.mubr.bf16.mxu0 0
  %235 = vmatmul.mubr.bf16.gmra.mrb[0].mxu0 %v114
  %v236 = vpop.f32.mrb[0].mxu0
  %v237 = vadd.f32 0.0, %v236
  %v238 = vpop.f32.mrb[0].mxu0
  %v239 = vpop.f32.mrb[0].mxu0
  %v240 = vadd.f32 0.0, %v239
  %v241 = vpop.f32.mrb[0].mxu0
  %242 = vmatprep.mubr.bf16.mxu0 0
  %243 = vmatmul.mubr.bf16.gmra.mrb[0].mxu0 %v115
  %v244 = vpop.f32.mrb[0].mxu0
  %v245 = vadd.f32 0.0, %v244
  %v246 = vpop.f32.mrb[0].mxu0
  %v247 = vpop.f32.mrb[0].mxu0
  %v248 = vadd.f32 0.0, %v247
  %v249 = vpop.f32.mrb[0].mxu0
  %250 = vmatprep.mubr.bf16.mxu0 0
  %251 = vmatmul.mubr.bf16.gmra.mrb[0].mxu0 %v116
  %v252 = vpop.f32.mrb[0].mxu0
  %v253 = vadd.f32 0.0, %v252
  %v254 = vpop.f32.mrb[0].mxu0
  %v255 = vpop.f32.mrb[0].mxu0
  %v256 = vadd.f32 0.0, %v255
  %v257 = vpop.f32.mrb[0].mxu0
  %258 = vmatprep.mubr.bf16.mxu0 0
  %259 = vmatmul.mubr.bf16.gmra.mrb[0].mxu0 %v117
  %v260 = vpop.f32.mrb[0].mxu0
  %v261 = vadd.f32 0.0, %v260
  %v262 = vpop.f32.mrb[0].mxu0
  %v263 = vpop.f32.mrb[0].mxu0
  %v264 = vadd.f32 0.0, %v263
  %v265 = vpop.f32.mrb[0].mxu0
  %266 = vmatprep.mubr.bf16.mxu0 0
  %267 = vmatmul.mubr.bf16.gmra.mrb[0].mxu0 %v118
  %v268 = vpop.f32.mrb[0].mxu0
  %v269 = vadd.f32 0.0, %v268
  %v270 = vpop.f32.mrb[0].mxu0
  %v271 = vpop.f32.mrb[0].mxu0
  %v272 = vadd.f32 0.0, %v271
  %v273 = vpop.f32.mrb[0].mxu0
  %274 = vmatprep.mubr.bf16.mxu0 0
  %275 = vmatmul.mubr.bf16.gmra.mrb[0].mxu0 %v119
  %v276 = vpop.f32.mrb[0].mxu0
  %v277 = vadd.f32 0.0, %v276
  %v278 = vpop.f32.mrb[0].mxu0
  %v279 = vpop.f32.mrb[0].mxu0
  %v280 = vadd.f32 0.0, %v279
  %v281 = vpop.f32.mrb[0].mxu0
  %282 = vmatprep.mubr.bf16.mxu0 0
  %283 = vmatmul.mubr.bf16.gmra.mrb[0].mxu0 %v120
  %v284 = vpop.f32.mrb[0].mxu0
  %v285 = vadd.f32 0.0, %v284
  %v286 = vpop.f32.mrb[0].mxu0
  %v287 = vpop.f32.mrb[0].mxu0
  %v288 = vadd.f32 0.0, %v287
  %v289 = vpop.f32.mrb[0].mxu0
  %290 = vmatprep.mubr.bf16.mxu0 0
  %291 = vmatmul.mubr.bf16.gmra.mrb[0].mxu0 %v121
  %v292 = vpop.f32.mrb[0].mxu0
  %v293 = vadd.f32 0.0, %v292
  %v294 = vpop.f32.mrb[0].mxu0
  %v295 = vpop.f32.mrb[0].mxu0
  %v296 = vadd.f32 0.0, %v295
  %v297 = vpop.f32.mrb[0].mxu0
  %298 = vmatprep.mubr.bf16.mxu0 0
  %299 = vmatmul.mubr.bf16.gmra.mrb[0].mxu0 %v122
  %v300 = vpop.f32.mrb[0].mxu0
  %v301 = vadd.f32 0.0, %v300
  %v302 = vpop.f32.mrb[0].mxu0
  %v303 = vpop.f32.mrb[0].mxu0
  %v304 = vadd.f32 0.0, %v303
  %v305 = vpop.f32.mrb[0].mxu0
  %306 = vmatprep.mubr.bf16.mxu0 0
  %307 = vmatmul.mubr.bf16.gmra.mrb[0].mxu0 %v123
  %v308 = vpop.f32.mrb[0].mxu0
  %v309 = vadd.f32 0.0, %v308
  %v310 = vpop.f32.mrb[0].mxu0
  %v311 = vpop.f32.mrb[0].mxu0
  %v312 = vadd.f32 0.0, %v311
  %v313 = vpop.f32.mrb[0].mxu0
  %314 = vmatprep.mubr.bf16.mxu0 0
  %315 = vmatmul.mubr.bf16.gmra.mrb[0].mxu0 %v124
  %v316 = vpop.f32.mrb[0].mxu0
  %v317 = vadd.f32 0.0, %v316
  %v318 = vpop.f32.mrb[0].mxu0
  %v319 = vpop.f32.mrb[0].mxu0
  %v320 = vpop.f32.mrb[0].mxu0
  %321 = vdwg.mxu0
  %v322 = vmax.f32 %v221, %v224
  %v323 = vmax.f32 %v322, %v229
  %v324 = vmax.f32 %v323, %v232
  %v325 = vmax.f32 %v324, %v237
  %v326 = vmax.f32 %v325, %v240
  %v327 = vmax.f32 %v326, %v245
  %v328 = vmax.f32 %v327, %v248
  %v329 = vmax.f32 %v328, %v253
  %v330 = vmax.f32 %v329, %v256
  %v331 = vmax.f32 %v330, %v261
  %v332 = vmax.f32 %v331, %v264
  %v333 = vmax.f32 %v332, %v269
  %v334 = vmax.f32 %v333, %v272
  %v335 = vmax.f32 %v334, %v277
  %v336 = vmax.f32 %v335, %v280
  %v337 = vmax.f32 %v336, %v285
  %v338 = vmax.f32 %v337, %v288
  %v339 = vmax.f32 %v338, %v293
  %v340 = vmax.f32 %v339, %v296
  %v341 = vmax.f32 %v340, %v301
  %v342 = vmax.f32 %v341, %v304
  %v343 = vmax.f32 %v342, %v309
  %v344 = vmax.f32 %v343, %v312
  %v345 = vmax.f32 %v344, %v317
  %v346 = vld [vmem:[%s1] sm:$0xf]
  %v347 = vld [vmem:[%s1 + $0x4] sm:$0xf]
  %v348 = vld [vmem:[%s1 + $0x8] sm:$0xf]
  %v349 = vld [vmem:[%s1 + $0xc] sm:$0xf]
  %v350 = vld [vmem:[%s1 + $0x10] sm:$0xf]
  %v351 = vld [vmem:[%s1 + $0x14] sm:$0xf]
  %v352 = vld [vmem:[%s1 + $0x18] sm:$0xf]
  %v353 = vld [vmem:[%s1 + $0x1c] sm:$0xf]
  %v354 = vld [vmem:[%s1 + $0x20] sm:$0xf]
  %v355 = vld [vmem:[%s1 + $0x24] sm:$0xf]
  %v356 = vld [vmem:[%s1 + $0x28] sm:$0xf]
  %v357 = vld [vmem:[%s1 + $0x2c] sm:$0xf]
  %v358 = vld [vmem:[%s1 + $0x30] sm:$0xf]
  %v359 = vld [vmem:[%s1 + $0x34] sm:$0xf]
  %v360 = vld [vmem:[%s1 + $0x38] sm:$0xf]
  %v361 = vld [vmem:[%s1 + $0x3c] sm:$0xf]
  %v362 = vld [vmem:[%s1 + $0x40] sm:$0xf]
  %v363 = vld [vmem:[%s1 + $0x44] sm:$0xf]
  %v364 = vld [vmem:[%s1 + $0x48] sm:$0xf]
  %v365 = vld [vmem:[%s1 + $0x4c] sm:$0xf]
  %v366 = vld [vmem:[%s1 + $0x50] sm:$0xf]
  %v367 = vld [vmem:[%s1 + $0x54] sm:$0xf]
  %v368 = vld [vmem:[%s1 + $0x58] sm:$0xf]
  %v369 = vld [vmem:[%s1 + $0x5c] sm:$0xf]
  %v370 = vld [vmem:[%s1 + $0x60] sm:$0xf]
  %v371 = vld [vmem:[%s1 + $0x64] sm:$0xf]
  %v372 = vld [vmem:[%s1 + $0x68] sm:$0xf]
  %v373 = vld [vmem:[%s1 + $0x6c] sm:$0xf]
  %v374 = vld [vmem:[%s1 + $0x70] sm:$0xf]
  %v375 = vld [vmem:[%s1 + $0x74] sm:$0xf]
  %v376 = vld [vmem:[%s1 + $0x78] sm:$0xf]
  %v377 = vld [vmem:[%s1 + $0x7c] sm:$0xf]
  %v378 = vld [vmem:[%s1 + $0x80] sm:$0xf]
  %v379 = vld [vmem:[%s1 + $0x84] sm:$0xf]
  %v380 = vld [vmem:[%s1 + $0x88] sm:$0xf]
  %v381 = vld [vmem:[%s1 + $0x8c] sm:$0xf]
  %v382 = vld [vmem:[%s1 + $0x90] sm:$0xf]
  %v383 = vld [vmem:[%s1 + $0x94] sm:$0xf]
  %v384 = vld [vmem:[%s1 + $0x98] sm:$0xf]
  %v385 = vld [vmem:[%s1 + $0x9c] sm:$0xf]
  %v386 = vld [vmem:[%s1 + $0xa0] sm:$0xf]
  %v387 = vld [vmem:[%s1 + $0xa4] sm:$0xf]
  %v388 = vld [vmem:[%s1 + $0xa8] sm:$0xf]
  %v389 = vld [vmem:[%s1 + $0xac] sm:$0xf]
  %v390 = vld [vmem:[%s1 + $0xb0] sm:$0xf]
  %v391 = vld [vmem:[%s1 + $0xb4] sm:$0xf]
  %v392 = vld [vmem:[%s1 + $0xb8] sm:$0xf]
  %v393 = vld [vmem:[%s1 + $0xbc] sm:$0xf]
  %v394 = vld [vmem:[%s1 + $0xc0] sm:$0xf]
  %v395 = vld [vmem:[%s1 + $0xc4] sm:$0xf]
  %v396 = vld [vmem:[%s1 + $0xc8] sm:$0xf]
  %v397 = vld [vmem:[%s1 + $0xcc] sm:$0xf]
  %v398 = vld [vmem:[%s1 + $0xd0] sm:$0xf]
  %v399 = vld [vmem:[%s1 + $0xd4] sm:$0xf]
  %v400 = vld [vmem:[%s1 + $0xd8] sm:$0xf]
  %v401 = vld [vmem:[%s1 + $0xdc] sm:$0xf]
  %v402 = vld [vmem:[%s1 + $0xe0] sm:$0xf]
  %v403 = vld [vmem:[%s1 + $0xe4] sm:$0xf]
  %v404 = vld [vmem:[%s1 + $0xe8] sm:$0xf]
  %v405 = vld [vmem:[%s1 + $0xec] sm:$0xf]
  %v406 = vld [vmem:[%s1 + $0xf0] sm:$0xf]
  %v407 = vld [vmem:[%s1 + $0xf4] sm:$0xf]
  %v408 = vld [vmem:[%s1 + $0xf8] sm:$0xf]
  %v409 = vld [vmem:[%s1 + $0xfc] sm:$0xf]
  %v410 = vld [vmem:[%s1 + $0x100] sm:$0xf]
  %v411 = vld [vmem:[%s1 + $0x104] sm:$0xf]
  %v412 = vld [vmem:[%s1 + $0x108] sm:$0xf]
  %v413 = vld [vmem:[%s1 + $0x10c] sm:$0xf]
  %v414 = vld [vmem:[%s1 + $0x110] sm:$0xf]
  %v415 = vld [vmem:[%s1 + $0x114] sm:$0xf]
  %v416 = vld [vmem:[%s1 + $0x118] sm:$0xf]
  %v417 = vld [vmem:[%s1 + $0x11c] sm:$0xf]
  %v418 = vld [vmem:[%s1 + $0x120] sm:$0xf]
  %v419 = vld [vmem:[%s1 + $0x124] sm:$0xf]
  %v420 = vld [vmem:[%s1 + $0x128] sm:$0xf]
  %v421 = vld [vmem:[%s1 + $0x12c] sm:$0xf]
  %v422 = vld [vmem:[%s1 + $0x130] sm:$0xf]
  %v423 = vld [vmem:[%s1 + $0x134] sm:$0xf]
  %v424 = vld [vmem:[%s1 + $0x138] sm:$0xf]
  %v425 = vld [vmem:[%s1 + $0x13c] sm:$0xf]
  %v426 = vld [vmem:[%s1 + $0x140] sm:$0xf]
  %v427 = vld [vmem:[%s1 + $0x144] sm:$0xf]
  %v428 = vld [vmem:[%s1 + $0x148] sm:$0xf]
  %v429 = vld [vmem:[%s1 + $0x14c] sm:$0xf]
  %v430 = vld [vmem:[%s1 + $0x150] sm:$0xf]
  %v431 = vld [vmem:[%s1 + $0x154] sm:$0xf]
  %v432 = vld [vmem:[%s1 + $0x158] sm:$0xf]
  %v433 = vld [vmem:[%s1 + $0x15c] sm:$0xf]
  %v434 = vld [vmem:[%s1 + $0x160] sm:$0xf]
  %v435 = vld [vmem:[%s1 + $0x164] sm:$0xf]
  %v436 = vld [vmem:[%s1 + $0x168] sm:$0xf]
  %v437 = vld [vmem:[%s1 + $0x16c] sm:$0xf]
  %v438 = vld [vmem:[%s1 + $0x170] sm:$0xf]
  %v439 = vld [vmem:[%s1 + $0x174] sm:$0xf]
  %v440 = vld [vmem:[%s1 + $0x178] sm:$0xf]
  %v441 = vld [vmem:[%s1 + $0x17c] sm:$0xf]
  %v442 = vld [vmem:[%s1 + $0x180] sm:$0xf]
  %v443 = vld [vmem:[%s1 + $0x184] sm:$0xf]
  %v444 = vld [vmem:[%s1 + $0x188] sm:$0xf]
  %v445 = vld [vmem:[%s1 + $0x18c] sm:$0xf]
  %v446 = vld [vmem:[%s1 + $0x190] sm:$0xf]
  %v447 = vld [vmem:[%s1 + $0x194] sm:$0xf]
  %v448 = vld [vmem:[%s1 + $0x198] sm:$0xf]
  %v449 = vld [vmem:[%s1 + $0x19c] sm:$0xf]
  %v450 = vld [vmem:[%s1 + $0x1a0] sm:$0xf]
  %v451 = vld [vmem:[%s1 + $0x1a4] sm:$0xf]
  %v452 = vld [vmem:[%s1 + $0x1a8] sm:$0xf]
  %v453 = vld [vmem:[%s1 + $0x1ac] sm:$0xf]
  %v454 = vld [vmem:[%s1 + $0x1b0] sm:$0xf]
  %v455 = vld [vmem:[%s1 + $0x1b4] sm:$0xf]
  %v456 = vld [vmem:[%s1 + $0x1b8] sm:$0xf]
  %v457 = vld [vmem:[%s1 + $0x1bc] sm:$0xf]
  %v458 = vld [vmem:[%s1 + $0x1c0] sm:$0xf]
  %v459 = vld [vmem:[%s1 + $0x1c4] sm:$0xf]
  %v460 = vld [vmem:[%s1 + $0x1c8] sm:$0xf]
  %v461 = vld [vmem:[%s1 + $0x1cc] sm:$0xf]
  %v462 = vld [vmem:[%s1 + $0x1d0] sm:$0xf]
  %v463 = vld [vmem:[%s1 + $0x1d4] sm:$0xf]
  %v464 = vld [vmem:[%s1 + $0x1d8] sm:$0xf]
  %v465 = vld [vmem:[%s1 + $0x1dc] sm:$0xf]
  %v466 = vld [vmem:[%s1 + $0x1e0] sm:$0xf]
  %v467 = vld [vmem:[%s1 + $0x1e4] sm:$0xf]
  %v468 = vld [vmem:[%s1 + $0x1e8] sm:$0xf]
  %v469 = vld [vmem:[%s1 + $0x1ec] sm:$0xf]
  %v470 = vld [vmem:[%s1 + $0x1f0] sm:$0xf]
  %v471 = vld [vmem:[%s1 + $0x1f4] sm:$0xf]
  %v472 = vld [vmem:[%s1 + $0x1f8] sm:$0xf]
  %v473 = vld [vmem:[%s1 + $0x1fc] sm:$0xf]
  %v474 = vld [vmem:[%s1 + $0x200] sm:$0xf]
  %v475 = vld [vmem:[%s1 + $0x204] sm:$0xf]
  %v476 = vld [vmem:[%s1 + $0x208] sm:$0xf]
  %v477 = vld [vmem:[%s1 + $0x20c] sm:$0xf]
  %v478 = vld [vmem:[%s1 + $0x210] sm:$0xf]
  %v479 = vld [vmem:[%s1 + $0x214] sm:$0xf]
  %v480 = vld [vmem:[%s1 + $0x218] sm:$0xf]
  %v481 = vld [vmem:[%s1 + $0x21c] sm:$0xf]
  %v482 = vld [vmem:[%s1 + $0x220] sm:$0xf]
  %v483 = vld [vmem:[%s1 + $0x224] sm:$0xf]
  %v484 = vld [vmem:[%s1 + $0x228] sm:$0xf]
  %v485 = vld [vmem:[%s1 + $0x22c] sm:$0xf]
  %v486 = vld [vmem:[%s1 + $0x230] sm:$0xf]
  %v487 = vld [vmem:[%s1 + $0x234] sm:$0xf]
  %v488 = vld [vmem:[%s1 + $0x238] sm:$0xf]
  %v489 = vld [vmem:[%s1 + $0x23c] sm:$0xf]
  %v634 = vunpack.c.l.b16 %v346
  %v635 = vunpack.c.l.b16 %v347
  %v636 = vunpack.c.l.b16 %v348
  %v637 = vunpack.c.l.b16 %v349
  %v638 = vunpack.c.l.b16 %v350
  %v639 = vunpack.c.l.b16 %v351
  %v640 = vunpack.c.l.b16 %v352
  %v641 = vunpack.c.l.b16 %v353
  %v642 = vunpack.c.l.b16 %v354
  %v643 = vunpack.c.l.b16 %v355
  %v644 = vunpack.c.l.b16 %v356
  %v645 = vunpack.c.l.b16 %v357
  %v646 = vunpack.c.l.b16 %v358
  %v647 = vunpack.c.l.b16 %v359
  %v648 = vunpack.c.l.b16 %v360
  %v649 = vunpack.c.l.b16 %v361
  %v650 = vunpack.c.l.b16 %v362
  %v651 = vunpack.c.l.b16 %v363
  %v652 = vunpack.c.l.b16 %v364
  %v653 = vunpack.c.l.b16 %v365
  %v654 = vunpack.c.l.b16 %v366
  %v655 = vunpack.c.l.b16 %v367
  %v656 = vunpack.c.l.b16 %v368
  %v657 = vunpack.c.l.b16 %v369
  %v658 = vunpack.c.l.b16 %v370
  %v659 = vunpack.c.l.b16 %v371
  %v660 = vunpack.c.l.b16 %v372
  %v661 = vunpack.c.l.b16 %v373
  %v662 = vunpack.c.l.b16 %v374
  %v663 = vunpack.c.l.b16 %v375
  %v664 = vunpack.c.l.b16 %v376
  %v665 = vunpack.c.l.b16 %v377
  %v666 = vunpack.c.l.b16 %v378
  %v667 = vunpack.c.l.b16 %v379
  %v668 = vunpack.c.l.b16 %v380
  %v669 = vunpack.c.l.b16 %v381
  %v670 = vunpack.c.l.b16 %v382
  %v671 = vunpack.c.l.b16 %v383
  %v672 = vunpack.c.l.b16 %v384
  %v673 = vunpack.c.l.b16 %v385
  %v674 = vunpack.c.l.b16 %v386
  %v675 = vunpack.c.l.b16 %v387
  %v676 = vunpack.c.l.b16 %v388
  %v677 = vunpack.c.l.b16 %v389
  %v678 = vunpack.c.l.b16 %v390
  %v679 = vunpack.c.l.b16 %v391
  %v680 = vunpack.c.l.b16 %v392
  %v681 = vunpack.c.l.b16 %v393
  %v682 = vunpack.c.l.b16 %v394
  %v683 = vunpack.c.l.b16 %v395
  %v684 = vunpack.c.l.b16 %v396
  %v685 = vunpack.c.l.b16 %v397
  %v686 = vunpack.c.l.b16 %v398
  %v687 = vunpack.c.l.b16 %v399
  %v688 = vunpack.c.l.b16 %v400
  %v689 = vunpack.c.l.b16 %v401
  %v690 = vunpack.c.l.b16 %v402
  %v691 = vunpack.c.l.b16 %v403
  %v692 = vunpack.c.l.b16 %v404
  %v693 = vunpack.c.l.b16 %v405
  %v694 = vunpack.c.l.b16 %v406
  %v695 = vunpack.c.l.b16 %v407
  %v696 = vunpack.c.l.b16 %v408
  %v697 = vunpack.c.l.b16 %v409
  %v698 = vunpack.c.l.b16 %v410
  %v699 = vunpack.c.l.b16 %v411
  %v700 = vunpack.c.l.b16 %v412
  %v701 = vunpack.c.l.b16 %v413
  %v702 = vunpack.c.l.b16 %v414
  %v703 = vunpack.c.l.b16 %v415
  %v704 = vunpack.c.l.b16 %v416
  %v705 = vunpack.c.l.b16 %v417
  %v706 = vunpack.c.l.b16 %v418
  %v707 = vunpack.c.l.b16 %v419
  %v708 = vunpack.c.l.b16 %v420
  %v709 = vunpack.c.l.b16 %v421
  %v710 = vunpack.c.l.b16 %v422
  %v711 = vunpack.c.l.b16 %v423
  %v712 = vunpack.c.l.b16 %v424
  %v713 = vunpack.c.l.b16 %v425
  %v714 = vunpack.c.l.b16 %v426
  %v715 = vunpack.c.l.b16 %v427
  %v716 = vunpack.c.l.b16 %v428
  %v717 = vunpack.c.l.b16 %v429
  %v718 = vunpack.c.l.b16 %v430
  %v719 = vunpack.c.l.b16 %v431
  %v720 = vunpack.c.l.b16 %v432
  %v721 = vunpack.c.l.b16 %v433
  %v722 = vunpack.c.l.b16 %v434
  %v723 = vunpack.c.l.b16 %v435
  %v724 = vunpack.c.l.b16 %v436
  %v725 = vunpack.c.l.b16 %v437
  %v726 = vunpack.c.l.b16 %v438
  %v727 = vunpack.c.l.b16 %v439
  %v728 = vunpack.c.l.b16 %v440
  %v729 = vunpack.c.l.b16 %v441
  %v730 = vunpack.c.l.b16 %v442
  %v731 = vunpack.c.l.b16 %v443
  %v732 = vunpack.c.l.b16 %v444
  %v733 = vunpack.c.l.b16 %v445
  %v734 = vunpack.c.l.b16 %v446
  %v735 = vunpack.c.l.b16 %v447
  %v736 = vunpack.c.l.b16 %v448
  %v737 = vunpack.c.l.b16 %v449
  %v738 = vunpack.c.l.b16 %v450
  %v739 = vunpack.c.l.b16 %v451
  %v740 = vunpack.c.l.b16 %v452
  %v741 = vunpack.c.l.b16 %v453
  %v742 = vunpack.c.l.b16 %v454
  %v743 = vunpack.c.l.b16 %v455
  %v744 = vunpack.c.l.b16 %v456
  %v745 = vunpack.c.l.b16 %v457
  %v746 = vunpack.c.l.b16 %v458
  %v747 = vunpack.c.l.b16 %v459
  %v748 = vunpack.c.l.b16 %v460
  %v749 = vunpack.c.l.b16 %v461
  %v750 = vunpack.c.l.b16 %v462
  %v751 = vunpack.c.l.b16 %v463
  %v752 = vunpack.c.l.b16 %v464
  %v753 = vunpack.c.l.b16 %v465
  %v754 = vunpack.c.l.b16 %v466
  %v755 = vunpack.c.l.b16 %v467
  %v756 = vunpack.c.l.b16 %v468
  %v757 = vunpack.c.l.b16 %v469
  %v758 = vunpack.c.l.b16 %v470
  %v759 = vunpack.c.l.b16 %v471
  %v760 = vunpack.c.l.b16 %v472
  %v761 = vunpack.c.l.b16 %v473
  %v762 = vunpack.c.l.b16 %v474
  %v763 = vunpack.c.l.b16 %v475
  %v764 = vunpack.c.l.b16 %v476
  %v765 = vunpack.c.l.b16 %v477
  %v766 = vunpack.c.l.b16 %v478
  %v767 = vunpack.c.l.b16 %v479
  %v768 = vunpack.c.l.b16 %v480
  %v769 = vunpack.c.l.b16 %v481
  %v770 = vunpack.c.l.b16 %v482
  %v771 = vunpack.c.l.b16 %v483
  %v772 = vunpack.c.l.b16 %v484
  %v773 = vunpack.c.l.b16 %v485
  %v774 = vunpack.c.l.b16 %v486
  %v775 = vunpack.c.l.b16 %v487
  %v776 = vunpack.c.l.b16 %v488
  %v777 = vunpack.c.l.b16 %v489
  %v778 = vpack.c.b16 %v635, %v634
  %v779 = vpack.c.b16 %v637, %v636
  %v780 = vpack.c.b16 %v639, %v638
  %v781 = vpack.c.b16 %v641, %v640
  %v782 = vpack.c.b16 %v643, %v642
  %v783 = vpack.c.b16 %v645, %v644
  %v784 = vpack.c.b16 %v647, %v646
  %v785 = vpack.c.b16 %v649, %v648
  %v786 = vpack.c.b16 %v651, %v650
  %v787 = vpack.c.b16 %v653, %v652
  %v788 = vpack.c.b16 %v655, %v654
  %v789 = vpack.c.b16 %v657, %v656
  %v790 = vpack.c.b16 %v659, %v658
  %v791 = vpack.c.b16 %v661, %v660
  %v792 = vpack.c.b16 %v663, %v662
  %v793 = vpack.c.b16 %v665, %v664
  %v794 = vpack.c.b16 %v667, %v666
  %v795 = vpack.c.b16 %v669, %v668
  %v796 = vpack.c.b16 %v671, %v670
  %v797 = vpack.c.b16 %v673, %v672
  %v798 = vpack.c.b16 %v675, %v674
  %v799 = vpack.c.b16 %v677, %v676
  %v800 = vpack.c.b16 %v679, %v678
  %v801 = vpack.c.b16 %v681, %v680
  %v802 = vpack.c.b16 %v683, %v682
  %v803 = vpack.c.b16 %v685, %v684
  %v804 = vpack.c.b16 %v687, %v686
  %v805 = vpack.c.b16 %v689, %v688
  %v806 = vpack.c.b16 %v691, %v690
  %v807 = vpack.c.b16 %v693, %v692
  %v808 = vpack.c.b16 %v695, %v694
  %v809 = vpack.c.b16 %v697, %v696
  %v810 = vpack.c.b16 %v699, %v698
  %v811 = vpack.c.b16 %v701, %v700
  %v812 = vpack.c.b16 %v703, %v702
  %v813 = vpack.c.b16 %v705, %v704
  %v814 = vpack.c.b16 %v707, %v706
  %v815 = vpack.c.b16 %v709, %v708
  %v816 = vpack.c.b16 %v711, %v710
  %v817 = vpack.c.b16 %v713, %v712
  %v818 = vpack.c.b16 %v715, %v714
  %v819 = vpack.c.b16 %v717, %v716
  %v820 = vpack.c.b16 %v719, %v718
  %v821 = vpack.c.b16 %v721, %v720
  %v822 = vpack.c.b16 %v723, %v722
  %v823 = vpack.c.b16 %v725, %v724
  %v824 = vpack.c.b16 %v727, %v726
  %v825 = vpack.c.b16 %v729, %v728
  %v826 = vpack.c.b16 %v731, %v730
  %v827 = vpack.c.b16 %v733, %v732
  %v828 = vpack.c.b16 %v735, %v734
  %v829 = vpack.c.b16 %v737, %v736
  %v830 = vpack.c.b16 %v739, %v738
  %v831 = vpack.c.b16 %v741, %v740
  %v832 = vpack.c.b16 %v743, %v742
  %v833 = vpack.c.b16 %v745, %v744
  %v834 = vpack.c.b16 %v747, %v746
  %v835 = vpack.c.b16 %v749, %v748
  %v836 = vpack.c.b16 %v751, %v750
  %v837 = vpack.c.b16 %v753, %v752
  %v838 = vpack.c.b16 %v755, %v754
  %v839 = vpack.c.b16 %v757, %v756
  %v840 = vpack.c.b16 %v759, %v758
  %v841 = vpack.c.b16 %v761, %v760
  %v842 = vpack.c.b16 %v763, %v762
  %v843 = vpack.c.b16 %v765, %v764
  %v844 = vpack.c.b16 %v767, %v766
  %v845 = vpack.c.b16 %v769, %v768
  %v846 = vpack.c.b16 %v771, %v770
  %v847 = vpack.c.b16 %v773, %v772
  %v848 = vpack.c.b16 %v775, %v774
  %v849 = vpack.c.b16 %v777, %v776
  %922 = vmatprep.subr.bf16.mxu0 0
  %923 = vmatpush1.bf16.msra.mxu0 %v778
  %924 = vmatprep.subr.bf16.mxu0 0
  %925 = vmatpush1.bf16.msra.mxu0 %v779
  %926 = vmatprep.subr.bf16.mxu0 0
  %927 = vmatpush1.bf16.msra.mxu0 %v780
  %928 = vmatprep.subr.bf16.mxu0 0
  %929 = vmatpush1.bf16.msra.mxu0 %v781
  %930 = vmatprep.subr.bf16.mxu0 0
  %931 = vmatpush1.bf16.msra.mxu0 %v782
  %932 = vmatprep.subr.bf16.mxu0 0
  %933 = vmatpush1.bf16.msra.mxu0 %v783
  %934 = vmatprep.subr.bf16.mxu0 0
  %935 = vmatpush1.bf16.msra.mxu0 %v784
  %936 = vmatprep.subr.bf16.mxu0 0
  %937 = vmatpush1.bf16.msra.mxu0 %v785
  %938 = vmatprep.subr.bf16.mxu0 0
  %939 = vmatpush1.bf16.msra.mxu0 %v786
  %940 = vmatprep.subr.bf16.mxu0 0
  %941 = vmatpush1.bf16.msra.mxu0 %v787
  %942 = vmatprep.subr.bf16.mxu0 0
  %943 = vmatpush1.bf16.msra.mxu0 %v788
  %944 = vmatprep.subr.bf16.mxu0 0
  %945 = vmatpush1.bf16.msra.mxu0 %v789
  %946 = vmatprep.subr.bf16.mxu0 0
  %947 = vmatpush1.bf16.msra.mxu0 %v790
  %948 = vmatprep.subr.bf16.mxu0 0
  %949 = vmatpush1.bf16.msra.mxu0 %v791
  %950 = vmatprep.subr.bf16.mxu0 0
  %951 = vmatpush1.bf16.msra.mxu0 %v792
  %952 = vmatprep.subr.bf16.mxu0 0
  %953 = vmatpush1.bf16.msra.mxu0 %v793
  %954 = vmatprep.mubr.bf16.mxu0 %v22
  %955 = vmatmul.mubr.bf16.gmra.mrb[0].mxu0 %v21
  %v956 = vpop.f32.mrb[0].mxu0
  %v957 = vadd.f32 0.0, %v956
  %v958 = vpop.f32.mrb[0].mxu0
  %v959 = vpop.f32.mrb[0].mxu0
  %v960 = vpop.f32.mrb[0].mxu0
  %961 = vdwg.mxu0
  %962 = vmatprep.subr.bf16.mxu0 0
  %963 = vmatpush1.bf16.msra.mxu0 %v794
  %964 = vmatprep.subr.bf16.mxu0 0
  %965 = vmatpush1.bf16.msra.mxu0 %v795
  %966 = vmatprep.subr.bf16.mxu0 0
  %967 = vmatpush1.bf16.msra.mxu0 %v796
  %968 = vmatprep.subr.bf16.mxu0 0
  %969 = vmatpush1.bf16.msra.mxu0 %v797
  %970 = vmatprep.subr.bf16.mxu0 0
  %971 = vmatpush1.bf16.msra.mxu0 %v798
  %972 = vmatprep.subr.bf16.mxu0 0
  %973 = vmatpush1.bf16.msra.mxu0 %v799
  %974 = vmatprep.subr.bf16.mxu0 0
  %975 = vmatpush1.bf16.msra.mxu0 %v800
  %976 = vmatprep.subr.bf16.mxu0 0
  %977 = vmatpush1.bf16.msra.mxu0 %v801
  %978 = vmatprep.subr.bf16.mxu0 0
  %979 = vmatpush1.bf16.msra.mxu0 %v802
  %980 = vmatprep.subr.bf16.mxu0 0
  %981 = vmatpush1.bf16.msra.mxu0 %v803
  %982 = vmatprep.subr.bf16.mxu0 0
  %983 = vmatpush1.bf16.msra.mxu0 %v804
  %984 = vmatprep.subr.bf16.mxu0 0
  %985 = vmatpush1.bf16.msra.mxu0 %v805
  %986 = vmatprep.subr.bf16.mxu0 0
  %987 = vmatpush1.bf16.msra.mxu0 %v806
  %988 = vmatprep.subr.bf16.mxu0 0
  %989 = vmatpush1.bf16.msra.mxu0 %v807
  %990 = vmatprep.subr.bf16.mxu0 0
  %991 = vmatpush1.bf16.msra.mxu0 %v808
  %992 = vmatprep.subr.bf16.mxu0 0
  %993 = vmatpush1.bf16.msra.mxu0 %v809
  %994 = vmatprep.mubr.bf16.mxu0 %v26
  %995 = vmatmul.mubr.bf16.gmra.mrb[0].mxu0 %v23
  %v996 = vpop.f32.mrb[0].mxu0
  %v997 = vadd.f32 %v957, %v996
  %v998 = vpop.f32.mrb[0].mxu0
  %v999 = vpop.f32.mrb[0].mxu0
  %v1000 = vpop.f32.mrb[0].mxu0
  %1001 = vdwg.mxu0
  %1002 = vmatprep.subr.bf16.mxu0 0
  %1003 = vmatpush1.bf16.msra.mxu0 %v810
  %1004 = vmatprep.subr.bf16.mxu0 0
  %1005 = vmatpush1.bf16.msra.mxu0 %v811
  %1006 = vmatprep.subr.bf16.mxu0 0
  %1007 = vmatpush1.bf16.msra.mxu0 %v812
  %1008 = vmatprep.subr.bf16.mxu0 0
  %1009 = vmatpush1.bf16.msra.mxu0 %v813
  %1010 = vmatprep.subr.bf16.mxu0 0
  %1011 = vmatpush1.bf16.msra.mxu0 %v814
  %1012 = vmatprep.subr.bf16.mxu0 0
  %1013 = vmatpush1.bf16.msra.mxu0 %v815
  %1014 = vmatprep.subr.bf16.mxu0 0
  %1015 = vmatpush1.bf16.msra.mxu0 %v816
  %1016 = vmatprep.subr.bf16.mxu0 0
  %1017 = vmatpush1.bf16.msra.mxu0 %v817
  %1018 = vmatprep.subr.bf16.mxu0 0
  %1019 = vmatpush1.bf16.msra.mxu0 %v818
  %1020 = vmatprep.subr.bf16.mxu0 0
  %1021 = vmatpush1.bf16.msra.mxu0 %v819
  %1022 = vmatprep.subr.bf16.mxu0 0
  %1023 = vmatpush1.bf16.msra.mxu0 %v820
  %1024 = vmatprep.subr.bf16.mxu0 0
  %1025 = vmatpush1.bf16.msra.mxu0 %v821
  %1026 = vmatprep.subr.bf16.mxu0 0
  %1027 = vmatpush1.bf16.msra.mxu0 %v822
  %1028 = vmatprep.subr.bf16.mxu0 0
  %1029 = vmatpush1.bf16.msra.mxu0 %v823
  %1030 = vmatprep.subr.bf16.mxu0 0
  %1031 = vmatpush1.bf16.msra.mxu0 %v824
  %1032 = vmatprep.subr.bf16.mxu0 0
  %1033 = vmatpush1.bf16.msra.mxu0 %v825
  %1034 = vmatprep.mubr.bf16.mxu0 %v28
  %1035 = vmatmul.mubr.bf16.gmra.mrb[0].mxu0 %v27
  %v1036 = vpop.f32.mrb[0].mxu0
  %v1037 = vadd.f32 %v997, %v1036
  %v1038 = vpop.f32.mrb[0].mxu0
  %v1039 = vpop.f32.mrb[0].mxu0
  %v1040 = vpop.f32.mrb[0].mxu0
  %1041 = vdwg.mxu0
  %1042 = vmatprep.subr.bf16.mxu0 0
  %1043 = vmatpush1.bf16.msra.mxu0 %v826
  %1044 = vmatprep.subr.bf16.mxu0 0
  %1045 = vmatpush1.bf16.msra.mxu0 %v827
  %1046 = vmatprep.subr.bf16.mxu0 0
  %1047 = vmatpush1.bf16.msra.mxu0 %v828
  %1048 = vmatprep.subr.bf16.mxu0 0
  %1049 = vmatpush1.bf16.msra.mxu0 %v829
  %1050 = vmatprep.subr.bf16.mxu0 0
  %1051 = vmatpush1.bf16.msra.mxu0 %v830
  %1052 = vmatprep.subr.bf16.mxu0 0
  %1053 = vmatpush1.bf16.msra.mxu0 %v831
  %1054 = vmatprep.subr.bf16.mxu0 0
  %1055 = vmatpush1.bf16.msra.mxu0 %v832
  %1056 = vmatprep.subr.bf16.mxu0 0
  %1057 = vmatpush1.bf16.msra.mxu0 %v833
  %1058 = vmatprep.subr.bf16.mxu0 0
  %1059 = vmatpush1.bf16.msra.mxu0 %v834
  %1060 = vmatprep.subr.bf16.mxu0 0
  %1061 = vmatpush1.bf16.msra.mxu0 %v835
  %1062 = vmatprep.subr.bf16.mxu0 0
  %1063 = vmatpush1.bf16.msra.mxu0 %v836
  %1064 = vmatprep.subr.bf16.mxu0 0
  %1065 = vmatpush1.bf16.msra.mxu0 %v837
  %1066 = vmatprep.subr.bf16.mxu0 0
  %1067 = vmatpush1.bf16.msra.mxu0 %v838
  %1068 = vmatprep.subr.bf16.mxu0 0
  %1069 = vmatpush1.bf16.msra.mxu0 %v839
  %1070 = vmatprep.subr.bf16.mxu0 0
  %1071 = vmatpush1.bf16.msra.mxu0 %v840
  %1072 = vmatprep.subr.bf16.mxu0 0
  %1073 = vmatpush1.bf16.msra.mxu0 %v841
  %1074 = vmatprep.mubr.bf16.mxu0 %v32
  %1075 = vmatmul.mubr.bf16.gmra.mrb[0].mxu0 %v31
  %v1076 = vpop.f32.mrb[0].mxu0
  %v1077 = vadd.f32 %v1037, %v1076
  %v1078 = vpop.f32.mrb[0].mxu0
  %v1079 = vpop.f32.mrb[0].mxu0
  %v1080 = vpop.f32.mrb[0].mxu0
  %1081 = vdwg.mxu0
  %1082 = vmatprep.subr.bf16.mxu0 0
  %1083 = vmatpush1.bf16.msra.mxu0 %v842
  %1084 = vmatprep.subr.bf16.mxu0 0
  %1085 = vmatpush1.bf16.msra.mxu0 %v843
  %1086 = vmatprep.subr.bf16.mxu0 0
  %1087 = vmatpush1.bf16.msra.mxu0 %v844
  %1088 = vmatprep.subr.bf16.mxu0 0
  %1089 = vmatpush1.bf16.msra.mxu0 %v845
  %1090 = vmatprep.subr.bf16.mxu0 0
  %1091 = vmatpush1.bf16.msra.mxu0 %v846
  %1092 = vmatprep.subr.bf16.mxu0 0
  %1093 = vmatpush1.bf16.msra.mxu0 %v847
  %1094 = vmatprep.subr.bf16.mxu0 0
  %1095 = vmatpush1.bf16.msra.mxu0 %v848
  %1096 = vmatprep.subr.bf16.mxu0 0
  %1097 = vmatpush1.bf16.msra.mxu0 %v849
  %1098 = vmatprep.subr.bf16.mxu0 0
  %1099 = vmatpush1.bf16.msra.mxu0 0
  %1100 = vmatprep.subr.bf16.mxu0 0
  %1101 = vmatpush1.bf16.msra.mxu0 0
  %1102 = vmatprep.subr.bf16.mxu0 0
  %1103 = vmatpush1.bf16.msra.mxu0 0
  %1104 = vmatprep.subr.bf16.mxu0 0
  %1105 = vmatpush1.bf16.msra.mxu0 0
  %1106 = vmatprep.subr.bf16.mxu0 0
  %1107 = vmatpush1.bf16.msra.mxu0 0
  %1108 = vmatprep.subr.bf16.mxu0 0
  %1109 = vmatpush1.bf16.msra.mxu0 0
  %1110 = vmatprep.subr.bf16.mxu0 0
  %1111 = vmatpush1.bf16.msra.mxu0 0
  %1112 = vmatprep.subr.bf16.mxu0 0
  %1113 = vmatpush1.bf16.msra.mxu0 0
  %1114 = vmatprep.mubr.bf16.mxu0 0
  %1115 = vmatmul.mubr.bf16.gmra.mrb[0].mxu0 %v33
  %v1116 = vpop.f32.mrb[0].mxu0
  %v1117 = vadd.f32 %v1077, %v1116
  %v1118 = vpop.f32.mrb[0].mxu0
  %v1119 = vpop.f32.mrb[0].mxu0
  %v1120 = vpop.f32.mrb[0].mxu0
  %1121 = vdwg.mxu0
  %1122 = vmatprep.subr.bf16.mxu0 0
  %1123 = vmatpush1.bf16.msra.mxu0 %v778
  %1124 = vmatprep.subr.bf16.mxu0 0
  %1125 = vmatpush1.bf16.msra.mxu0 %v779
  %1126 = vmatprep.subr.bf16.mxu0 0
  %1127 = vmatpush1.bf16.msra.mxu0 %v780
  %1128 = vmatprep.subr.bf16.mxu0 0
  %1129 = vmatpush1.bf16.msra.mxu0 %v781
  %1130 = vmatprep.subr.bf16.mxu0 0
  %1131 = vmatpush1.bf16.msra.mxu0 %v782
  %1132 = vmatprep.subr.bf16.mxu0 0
  %1133 = vmatpush1.bf16.msra.mxu0 %v783
  %1134 = vmatprep.subr.bf16.mxu0 0
  %1135 = vmatpush1.bf16.msra.mxu0 %v784
  %1136 = vmatprep.subr.bf16.mxu0 0
  %1137 = vmatpush1.bf16.msra.mxu0 %v785
  %1138 = vmatprep.subr.bf16.mxu0 0
  %1139 = vmatpush1.bf16.msra.mxu0 %v786
  %1140 = vmatprep.subr.bf16.mxu0 0
  %1141 = vmatpush1.bf16.msra.mxu0 %v787
  %1142 = vmatprep.subr.bf16.mxu0 0
  %1143 = vmatpush1.bf16.msra.mxu0 %v788
  %1144 = vmatprep.subr.bf16.mxu0 0
  %1145 = vmatpush1.bf16.msra.mxu0 %v789
  %1146 = vmatprep.subr.bf16.mxu0 0
  %1147 = vmatpush1.bf16.msra.mxu0 %v790
  %1148 = vmatprep.subr.bf16.mxu0 0
  %1149 = vmatpush1.bf16.msra.mxu0 %v791
  %1150 = vmatprep.subr.bf16.mxu0 0
  %1151 = vmatpush1.bf16.msra.mxu0 %v792
  %1152 = vmatprep.subr.bf16.mxu0 0
  %1153 = vmatpush1.bf16.msra.mxu0 %v793
  %1154 = vmatprep.mubr.bf16.mxu0 %v23
  %1155 = vmatmul.mubr.bf16.gmra.mrb[0].mxu0 %v22
  %v1156 = vpop.f32.mrb[0].mxu0
  %v1157 = vadd.f32 0.0, %v1156
  %v1158 = vpop.f32.mrb[0].mxu0
  %v1159 = vpop.f32.mrb[0].mxu0
  %v1160 = vpop.f32.mrb[0].mxu0
  %1161 = vdwg.mxu0
  %1162 = vmatprep.subr.bf16.mxu0 0
  %1163 = vmatpush1.bf16.msra.mxu0 %v794
  %1164 = vmatprep.subr.bf16.mxu0 0
  %1165 = vmatpush1.bf16.msra.mxu0 %v795
  %1166 = vmatprep.subr.bf16.mxu0 0
  %1167 = vmatpush1.bf16.msra.mxu0 %v796
  %1168 = vmatprep.subr.bf16.mxu0 0
  %1169 = vmatpush1.bf16.msra.mxu0 %v797
  %1170 = vmatprep.subr.bf16.mxu0 0
  %1171 = vmatpush1.bf16.msra.mxu0 %v798
  %1172 = vmatprep.subr.bf16.mxu0 0
  %1173 = vmatpush1.bf16.msra.mxu0 %v799
  %1174 = vmatprep.subr.bf16.mxu0 0
  %1175 = vmatpush1.bf16.msra.mxu0 %v800
  %1176 = vmatprep.subr.bf16.mxu0 0
  %1177 = vmatpush1.bf16.msra.mxu0 %v801
  %1178 = vmatprep.subr.bf16.mxu0 0
  %1179 = vmatpush1.bf16.msra.mxu0 %v802
  %1180 = vmatprep.subr.bf16.mxu0 0
  %1181 = vmatpush1.bf16.msra.mxu0 %v803
  %1182 = vmatprep.subr.bf16.mxu0 0
  %1183 = vmatpush1.bf16.msra.mxu0 %v804
  %1184 = vmatprep.subr.bf16.mxu0 0
  %1185 = vmatpush1.bf16.msra.mxu0 %v805
  %1186 = vmatprep.subr.bf16.mxu0 0
  %1187 = vmatpush1.bf16.msra.mxu0 %v806
  %1188 = vmatprep.subr.bf16.mxu0 0
  %1189 = vmatpush1.bf16.msra.mxu0 %v807
  %1190 = vmatprep.subr.bf16.mxu0 0
  %1191 = vmatpush1.bf16.msra.mxu0 %v808
  %1192 = vmatprep.subr.bf16.mxu0 0
  %1193 = vmatpush1.bf16.msra.mxu0 %v809
  %1194 = vmatprep.mubr.bf16.mxu0 %v27
  %1195 = vmatmul.mubr.bf16.gmra.mrb[0].mxu0 %v24
  %v1196 = vpop.f32.mrb[0].mxu0
  %v1197 = vadd.f32 %v1157, %v1196
  %v1198 = vpop.f32.mrb[0].mxu0
  %v1199 = vpop.f32.mrb[0].mxu0
  %v1200 = vpop.f32.mrb[0].mxu0
  %1201 = vdwg.mxu0
  %1202 = vmatprep.subr.bf16.mxu0 0
  %1203 = vmatpush1.bf16.msra.mxu0 %v810
  %1204 = vmatprep.subr.bf16.mxu0 0
  %1205 = vmatpush1.bf16.msra.mxu0 %v811
  %1206 = vmatprep.subr.bf16.mxu0 0
  %1207 = vmatpush1.bf16.msra.mxu0 %v812
  %1208 = vmatprep.subr.bf16.mxu0 0
  %1209 = vmatpush1.bf16.msra.mxu0 %v813
  %1210 = vmatprep.subr.bf16.mxu0 0
  %1211 = vmatpush1.bf16.msra.mxu0 %v814
  %1212 = vmatprep.subr.bf16.mxu0 0
  %1213 = vmatpush1.bf16.msra.mxu0 %v815
  %1214 = vmatprep.subr.bf16.mxu0 0
  %1215 = vmatpush1.bf16.msra.mxu0 %v816
  %1216 = vmatprep.subr.bf16.mxu0 0
  %1217 = vmatpush1.bf16.msra.mxu0 %v817
  %1218 = vmatprep.subr.bf16.mxu0 0
  %1219 = vmatpush1.bf16.msra.mxu0 %v818
  %1220 = vmatprep.subr.bf16.mxu0 0
  %1221 = vmatpush1.bf16.msra.mxu0 %v819
  %1222 = vmatprep.subr.bf16.mxu0 0
  %1223 = vmatpush1.bf16.msra.mxu0 %v820
  %1224 = vmatprep.subr.bf16.mxu0 0
  %1225 = vmatpush1.bf16.msra.mxu0 %v821
  %1226 = vmatprep.subr.bf16.mxu0 0
  %1227 = vmatpush1.bf16.msra.mxu0 %v822
  %1228 = vmatprep.subr.bf16.mxu0 0
  %1229 = vmatpush1.bf16.msra.mxu0 %v823
  %1230 = vmatprep.subr.bf16.mxu0 0
  %1231 = vmatpush1.bf16.msra.mxu0 %v824
  %1232 = vmatprep.subr.bf16.mxu0 0
  %1233 = vmatpush1.bf16.msra.mxu0 %v825
  %1234 = vmatprep.mubr.bf16.mxu0 %v29
  %1235 = vmatmul.mubr.bf16.gmra.mrb[0].mxu0 %v28
  %v1236 = vpop.f32.mrb[0].mxu0
  %v1237 = vadd.f32 %v1197, %v1236
  %v1238 = vpop.f32.mrb[0].mxu0
  %v1239 = vpop.f32.mrb[0].mxu0
  %v1240 = vpop.f32.mrb[0].mxu0
  %1241 = vdwg.mxu0
  %1242 = vmatprep.subr.bf16.mxu0 0
  %1243 = vmatpush1.bf16.msra.mxu0 %v826
  %1244 = vmatprep.subr.bf16.mxu0 0
  %1245 = vmatpush1.bf16.msra.mxu0 %v827
  %1246 = vmatprep.subr.bf16.mxu0 0
  %1247 = vmatpush1.bf16.msra.mxu0 %v828
  %1248 = vmatprep.subr.bf16.mxu0 0
  %1249 = vmatpush1.bf16.msra.mxu0 %v829
  %1250 = vmatprep.subr.bf16.mxu0 0
  %1251 = vmatpush1.bf16.msra.mxu0 %v830
  %1252 = vmatprep.subr.bf16.mxu0 0
  %1253 = vmatpush1.bf16.msra.mxu0 %v831
  %1254 = vmatprep.subr.bf16.mxu0 0
  %1255 = vmatpush1.bf16.msra.mxu0 %v832
  %1256 = vmatprep.subr.bf16.mxu0 0
  %1257 = vmatpush1.bf16.msra.mxu0 %v833
  %1258 = vmatprep.subr.bf16.mxu0 0
  %1259 = vmatpush1.bf16.msra.mxu0 %v834
  %1260 = vmatprep.subr.bf16.mxu0 0
  %1261 = vmatpush1.bf16.msra.mxu0 %v835
  %1262 = vmatprep.subr.bf16.mxu0 0
  %1263 = vmatpush1.bf16.msra.mxu0 %v836
  %1264 = vmatprep.subr.bf16.mxu0 0
  %1265 = vmatpush1.bf16.msra.mxu0 %v837
  %1266 = vmatprep.subr.bf16.mxu0 0
  %1267 = vmatpush1.bf16.msra.mxu0 %v838
  %1268 = vmatprep.subr.bf16.mxu0 0
  %1269 = vmatpush1.bf16.msra.mxu0 %v839
  %1270 = vmatprep.subr.bf16.mxu0 0
  %1271 = vmatpush1.bf16.msra.mxu0 %v840
  %1272 = vmatprep.subr.bf16.mxu0 0
  %1273 = vmatpush1.bf16.msra.mxu0 %v841
  %1274 = vmatprep.mubr.bf16.mxu0 %v33
  %1275 = vmatmul.mubr.bf16.gmra.mrb[0].mxu0 %v32
  %v1276 = vpop.f32.mrb[0].mxu0
  %v1277 = vadd.f32 %v1237, %v1276
  %v1278 = vpop.f32.mrb[0].mxu0
  %v1279 = vpop.f32.mrb[0].mxu0
  %v1280 = vpop.f32.mrb[0].mxu0
  %1281 = vdwg.mxu0
  %1282 = vmatprep.subr.bf16.mxu0 0
  %1283 = vmatpush1.bf16.msra.mxu0 %v842
  %1284 = vmatprep.subr.bf16.mxu0 0
  %1285 = vmatpush1.bf16.msra.mxu0 %v843
  %1286 = vmatprep.subr.bf16.mxu0 0
  %1287 = vmatpush1.bf16.msra.mxu0 %v844
  %1288 = vmatprep.subr.bf16.mxu0 0
  %1289 = vmatpush1.bf16.msra.mxu0 %v845
  %1290 = vmatprep.subr.bf16.mxu0 0
  %1291 = vmatpush1.bf16.msra.mxu0 %v846
  %1292 = vmatprep.subr.bf16.mxu0 0
  %1293 = vmatpush1.bf16.msra.mxu0 %v847
  %1294 = vmatprep.subr.bf16.mxu0 0
  %1295 = vmatpush1.bf16.msra.mxu0 %v848
  %1296 = vmatprep.subr.bf16.mxu0 0
  %1297 = vmatpush1.bf16.msra.mxu0 %v849
  %1298 = vmatprep.subr.bf16.mxu0 0
  %1299 = vmatpush1.bf16.msra.mxu0 0
  %1300 = vmatprep.subr.bf16.mxu0 0
  %1301 = vmatpush1.bf16.msra.mxu0 0
  %1302 = vmatprep.subr.bf16.mxu0 0
  %1303 = vmatpush1.bf16.msra.mxu0 0
  %1304 = vmatprep.subr.bf16.mxu0 0
  %1305 = vmatpush1.bf16.msra.mxu0 0
  %1306 = vmatprep.subr.bf16.mxu0 0
  %1307 = vmatpush1.bf16.msra.mxu0 0
  %1308 = vmatprep.subr.bf16.mxu0 0
  %1309 = vmatpush1.bf16.msra.mxu0 0
  %1310 = vmatprep.subr.bf16.mxu0 0
  %1311 = vmatpush1.bf16.msra.mxu0 0
  %1312 = vmatprep.subr.bf16.mxu0 0
  %1313 = vmatpush1.bf16.msra.mxu0 0
  %1314 = vmatprep.mubr.bf16.mxu0 0
  %1315 = vmatmul.mubr.bf16.gmra.mrb[0].mxu0 %v34
  %v1316 = vpop.f32.mrb[0].mxu0
  %v1317 = vadd.f32 %v1277, %v1316
  %v1318 = vpop.f32.mrb[0].mxu0
  %v1319 = vpop.f32.mrb[0].mxu0
  %v1320 = vpop.f32.mrb[0].mxu0
  %1321 = vdwg.mxu0
  %v1322 = vmax.f32 %v1117, %v1317
  %1323 = vmatprep.subr.bf16.mxu0 0
  %1324 = vmatpush1.bf16.msra.mxu0 %v778
  %1325 = vmatprep.subr.bf16.mxu0 0
  %1326 = vmatpush1.bf16.msra.mxu0 %v779
  %1327 = vmatprep.subr.bf16.mxu0 0
  %1328 = vmatpush1.bf16.msra.mxu0 %v780
  %1329 = vmatprep.subr.bf16.mxu0 0
  %1330 = vmatpush1.bf16.msra.mxu0 %v781
  %1331 = vmatprep.subr.bf16.mxu0 0
  %1332 = vmatpush1.bf16.msra.mxu0 %v782
  %1333 = vmatprep.subr.bf16.mxu0 0
  %1334 = vmatpush1.bf16.msra.mxu0 %v783
  %1335 = vmatprep.subr.bf16.mxu0 0
  %1336 = vmatpush1.bf16.msra.mxu0 %v784
  %1337 = vmatprep.subr.bf16.mxu0 0
  %1338 = vmatpush1.bf16.msra.mxu0 %v785
  %1339 = vmatprep.subr.bf16.mxu0 0
  %1340 = vmatpush1.bf16.msra.mxu0 %v786
  %1341 = vmatprep.subr.bf16.mxu0 0
  %1342 = vmatpush1.bf16.msra.mxu0 %v787
  %1343 = vmatprep.subr.bf16.mxu0 0
  %1344 = vmatpush1.bf16.msra.mxu0 %v788
  %1345 = vmatprep.subr.bf16.mxu0 0
  %1346 = vmatpush1.bf16.msra.mxu0 %v789
  %1347 = vmatprep.subr.bf16.mxu0 0
  %1348 = vmatpush1.bf16.msra.mxu0 %v790
  %1349 = vmatprep.subr.bf16.mxu0 0
  %1350 = vmatpush1.bf16.msra.mxu0 %v791
  %1351 = vmatprep.subr.bf16.mxu0 0
  %1352 = vmatpush1.bf16.msra.mxu0 %v792
  %1353 = vmatprep.subr.bf16.mxu0 0
  %1354 = vmatpush1.bf16.msra.mxu0 %v793
  %1355 = vmatprep.mubr.bf16.mxu0 %v24
  %1356 = vmatmul.mubr.bf16.gmra.mrb[0].mxu0 %v23
  %v1357 = vpop.f32.mrb[0].mxu0
  %v1358 = vadd.f32 0.0, %v1357
  %v1359 = vpop.f32.mrb[0].mxu0
  %v1360 = vpop.f32.mrb[0].mxu0
  %v1361 = vpop.f32.mrb[0].mxu0
  %1362 = vdwg.mxu0
  %1363 = vmatprep.subr.bf16.mxu0 0
  %1364 = vmatpush1.bf16.msra.mxu0 %v794
  %1365 = vmatprep.subr.bf16.mxu0 0
  %1366 = vmatpush1.bf16.msra.mxu0 %v795
  %1367 = vmatprep.subr.bf16.mxu0 0
  %1368 = vmatpush1.bf16.msra.mxu0 %v796
  %1369 = vmatprep.subr.bf16.mxu0 0
  %1370 = vmatpush1.bf16.msra.mxu0 %v797
  %1371 = vmatprep.subr.bf16.mxu0 0
  %1372 = vmatpush1.bf16.msra.mxu0 %v798
  %1373 = vmatprep.subr.bf16.mxu0 0
  %1374 = vmatpush1.bf16.msra.mxu0 %v799
  %1375 = vmatprep.subr.bf16.mxu0 0
  %1376 = vmatpush1.bf16.msra.mxu0 %v800
  %1377 = vmatprep.subr.bf16.mxu0 0
  %1378 = vmatpush1.bf16.msra.mxu0 %v801
  %1379 = vmatprep.subr.bf16.mxu0 0
  %1380 = vmatpush1.bf16.msra.mxu0 %v802
  %1381 = vmatprep.subr.bf16.mxu0 0
  %1382 = vmatpush1.bf16.msra.mxu0 %v803
  %1383 = vmatprep.subr.bf16.mxu0 0
  %1384 = vmatpush1.bf16.msra.mxu0 %v804
  %1385 = vmatprep.subr.bf16.mxu0 0
  %1386 = vmatpush1.bf16.msra.mxu0 %v805
  %1387 = vmatprep.subr.bf16.mxu0 0
  %1388 = vmatpush1.bf16.msra.mxu0 %v806
  %1389 = vmatprep.subr.bf16.mxu0 0
  %1390 = vmatpush1.bf16.msra.mxu0 %v807
  %1391 = vmatprep.subr.bf16.mxu0 0
  %1392 = vmatpush1.bf16.msra.mxu0 %v808
  %1393 = vmatprep.subr.bf16.mxu0 0
  %1394 = vmatpush1.bf16.msra.mxu0 %v809
  %1395 = vmatprep.mubr.bf16.mxu0 %v28
  %1396 = vmatmul.mubr.bf16.gmra.mrb[0].mxu0 %v25
  %v1397 = vpop.f32.mrb[0].mxu0
  %v1398 = vadd.f32 %v1358, %v1397
  %v1399 = vpop.f32.mrb[0].mxu0
  %v1400 = vpop.f32.mrb[0].mxu0
  %v1401 = vpop.f32.mrb[0].mxu0
  %1402 = vdwg.mxu0
  %1403 = vmatprep.subr.bf16.mxu0 0
  %1404 = vmatpush1.bf16.msra.mxu0 %v810
  %1405 = vmatprep.subr.bf16.mxu0 0
  %1406 = vmatpush1.bf16.msra.mxu0 %v811
  %1407 = vmatprep.subr.bf16.mxu0 0
  %1408 = vmatpush1.bf16.msra.mxu0 %v812
  %1409 = vmatprep.subr.bf16.mxu0 0
  %1410 = vmatpush1.bf16.msra.mxu0 %v813
  %1411 = vmatprep.subr.bf16.mxu0 0
  %1412 = vmatpush1.bf16.msra.mxu0 %v814
  %1413 = vmatprep.subr.bf16.mxu0 0
  %1414 = vmatpush1.bf16.msra.mxu0 %v815
  %1415 = vmatprep.subr.bf16.mxu0 0
  %1416 = vmatpush1.bf16.msra.mxu0 %v816
  %1417 = vmatprep.subr.bf16.mxu0 0
  %1418 = vmatpush1.bf16.msra.mxu0 %v817
  %1419 = vmatprep.subr.bf16.mxu0 0
  %1420 = vmatpush1.bf16.msra.mxu0 %v818
  %1421 = vmatprep.subr.bf16.mxu0 0
  %1422 = vmatpush1.bf16.msra.mxu0 %v819
  %1423 = vmatprep.subr.bf16.mxu0 0
  %1424 = vmatpush1.bf16.msra.mxu0 %v820
  %1425 = vmatprep.subr.bf16.mxu0 0
  %1426 = vmatpush1.bf16.msra.mxu0 %v821
  %1427 = vmatprep.subr.bf16.mxu0 0
  %1428 = vmatpush1.bf16.msra.mxu0 %v822
  %1429 = vmatprep.subr.bf16.mxu0 0
  %1430 = vmatpush1.bf16.msra.mxu0 %v823
  %1431 = vmatprep.subr.bf16.mxu0 0
  %1432 = vmatpush1.bf16.msra.mxu0 %v824
  %1433 = vmatprep.subr.bf16.mxu0 0
  %1434 = vmatpush1.bf16.msra.mxu0 %v825
  %1435 = vmatprep.mubr.bf16.mxu0 %v30
  %1436 = vmatmul.mubr.bf16.gmra.mrb[0].mxu0 %v29
  %v1437 = vpop.f32.mrb[0].mxu0
  %v1438 = vadd.f32 %v1398, %v1437
  %v1439 = vpop.f32.mrb[0].mxu0
  %v1440 = vpop.f32.mrb[0].mxu0
  %v1441 = vpop.f32.mrb[0].mxu0
  %1442 = vdwg.mxu0
  %1443 = vmatprep.subr.bf16.mxu0 0
  %1444 = vmatpush1.bf16.msra.mxu0 %v826
  %1445 = vmatprep.subr.bf16.mxu0 0
  %1446 = vmatpush1.bf16.msra.mxu0 %v827
  %1447 = vmatprep.subr.bf16.mxu0 0
  %1448 = vmatpush1.bf16.msra.mxu0 %v828
  %1449 = vmatprep.subr.bf16.mxu0 0
  %1450 = vmatpush1.bf16.msra.mxu0 %v829
  %1451 = vmatprep.subr.bf16.mxu0 0
  %1452 = vmatpush1.bf16.msra.mxu0 %v830
  %1453 = vmatprep.subr.bf16.mxu0 0
  %1454 = vmatpush1.bf16.msra.mxu0 %v831
  %1455 = vmatprep.subr.bf16.mxu0 0
  %1456 = vmatpush1.bf16.msra.mxu0 %v832
  %1457 = vmatprep.subr.bf16.mxu0 0
  %1458 = vmatpush1.bf16.msra.mxu0 %v833
  %1459 = vmatprep.subr.bf16.mxu0 0
  %1460 = vmatpush1.bf16.msra.mxu0 %v834
  %1461 = vmatprep.subr.bf16.mxu0 0
  %1462 = vmatpush1.bf16.msra.mxu0 %v835
  %1463 = vmatprep.subr.bf16.mxu0 0
  %1464 = vmatpush1.bf16.msra.mxu0 %v836
  %1465 = vmatprep.subr.bf16.mxu0 0
  %1466 = vmatpush1.bf16.msra.mxu0 %v837
  %1467 = vmatprep.subr.bf16.mxu0 0
  %1468 = vmatpush1.bf16.msra.mxu0 %v838
  %1469 = vmatprep.subr.bf16.mxu0 0
  %1470 = vmatpush1.bf16.msra.mxu0 %v839
  %1471 = vmatprep.subr.bf16.mxu0 0
  %1472 = vmatpush1.bf16.msra.mxu0 %v840
  %1473 = vmatprep.subr.bf16.mxu0 0
  %1474 = vmatpush1.bf16.msra.mxu0 %v841
  %1475 = vmatprep.mubr.bf16.mxu0 %v34
  %1476 = vmatmul.mubr.bf16.gmra.mrb[0].mxu0 %v33
  %v1477 = vpop.f32.mrb[0].mxu0
  %v1478 = vadd.f32 %v1438, %v1477
  %v1479 = vpop.f32.mrb[0].mxu0
  %v1480 = vpop.f32.mrb[0].mxu0
  %v1481 = vpop.f32.mrb[0].mxu0
  %1482 = vdwg.mxu0
  %1483 = vmatprep.subr.bf16.mxu0 0
  %1484 = vmatpush1.bf16.msra.mxu0 %v842
  %1485 = vmatprep.subr.bf16.mxu0 0
  %1486 = vmatpush1.bf16.msra.mxu0 %v843
  %1487 = vmatprep.subr.bf16.mxu0 0
  %1488 = vmatpush1.bf16.msra.mxu0 %v844
  %1489 = vmatprep.subr.bf16.mxu0 0
  %1490 = vmatpush1.bf16.msra.mxu0 %v845
  %1491 = vmatprep.subr.bf16.mxu0 0
  %1492 = vmatpush1.bf16.msra.mxu0 %v846
  %1493 = vmatprep.subr.bf16.mxu0 0
  %1494 = vmatpush1.bf16.msra.mxu0 %v847
  %1495 = vmatprep.subr.bf16.mxu0 0
  %1496 = vmatpush1.bf16.msra.mxu0 %v848
  %1497 = vmatprep.subr.bf16.mxu0 0
  %1498 = vmatpush1.bf16.msra.mxu0 %v849
  %1499 = vmatprep.subr.bf16.mxu0 0
  %1500 = vmatpush1.bf16.msra.mxu0 0
  %1501 = vmatprep.subr.bf16.mxu0 0
  %1502 = vmatpush1.bf16.msra.mxu0 0
  %1503 = vmatprep.subr.bf16.mxu0 0
  %1504 = vmatpush1.bf16.msra.mxu0 0
  %1505 = vmatprep.subr.bf16.mxu0 0
  %1506 = vmatpush1.bf16.msra.mxu0 0
  %1507 = vmatprep.subr.bf16.mxu0 0
  %1508 = vmatpush1.bf16.msra.mxu0 0
  %1509 = vmatprep.subr.bf16.mxu0 0
  %1510 = vmatpush1.bf16.msra.mxu0 0
  %1511 = vmatprep.subr.bf16.mxu0 0
  %1512 = vmatpush1.bf16.msra.mxu0 0
  %1513 = vmatprep.subr.bf16.mxu0 0
  %1514 = vmatpush1.bf16.msra.mxu0 0
  %1515 = vmatprep.mubr.bf16.mxu0 0
  %1516 = vmatmul.mubr.bf16.gmra.mrb[0].mxu0 %v35
  %v1517 = vpop.f32.mrb[0].mxu0
  %v1518 = vadd.f32 %v1478, %v1517
  %v1519 = vpop.f32.mrb[0].mxu0
  %v1520 = vpop.f32.mrb[0].mxu0
  %v1521 = vpop.f32.mrb[0].mxu0
  %1522 = vdwg.mxu0
  %v1523 = vmax.f32 %v1322, %v1518
  %1524 = vmatprep.subr.bf16.mxu0 0
  %1525 = vmatpush1.bf16.msra.mxu0 %v778
  %1526 = vmatprep.subr.bf16.mxu0 0
  %1527 = vmatpush1.bf16.msra.mxu0 %v779
  %1528 = vmatprep.subr.bf16.mxu0 0
  %1529 = vmatpush1.bf16.msra.mxu0 %v780
  %1530 = vmatprep.subr.bf16.mxu0 0
  %1531 = vmatpush1.bf16.msra.mxu0 %v781
  %1532 = vmatprep.subr.bf16.mxu0 0
  %1533 = vmatpush1.bf16.msra.mxu0 %v782
  %1534 = vmatprep.subr.bf16.mxu0 0
  %1535 = vmatpush1.bf16.msra.mxu0 %v783
  %1536 = vmatprep.subr.bf16.mxu0 0
  %1537 = vmatpush1.bf16.msra.mxu0 %v784
  %1538 = vmatprep.subr.bf16.mxu0 0
  %1539 = vmatpush1.bf16.msra.mxu0 %v785
  %1540 = vmatprep.subr.bf16.mxu0 0
  %1541 = vmatpush1.bf16.msra.mxu0 %v786
  %1542 = vmatprep.subr.bf16.mxu0 0
  %1543 = vmatpush1.bf16.msra.mxu0 %v787
  %1544 = vmatprep.subr.bf16.mxu0 0
  %1545 = vmatpush1.bf16.msra.mxu0 %v788
  %1546 = vmatprep.subr.bf16.mxu0 0
  %1547 = vmatpush1.bf16.msra.mxu0 %v789
  %1548 = vmatprep.subr.bf16.mxu0 0
  %1549 = vmatpush1.bf16.msra.mxu0 %v790
  %1550 = vmatprep.subr.bf16.mxu0 0
  %1551 = vmatpush1.bf16.msra.mxu0 %v791
  %1552 = vmatprep.subr.bf16.mxu0 0
  %1553 = vmatpush1.bf16.msra.mxu0 %v792
  %1554 = vmatprep.subr.bf16.mxu0 0
  %1555 = vmatpush1.bf16.msra.mxu0 %v793
  %1556 = vmatprep.mubr.bf16.mxu0 %v27
  %1557 = vmatmul.mubr.bf16.gmra.mrb[0].mxu0 %v26
  %v1558 = vpop.f32.mrb[0].mxu0
  %v1559 = vadd.f32 0.0, %v1558
  %v1560 = vpop.f32.mrb[0].mxu0
  %v1561 = vpop.f32.mrb[0].mxu0
  %v1562 = vpop.f32.mrb[0].mxu0
  %1563 = vdwg.mxu0
  %1564 = vmatprep.subr.bf16.mxu0 0
  %1565 = vmatpush1.bf16.msra.mxu0 %v794
  %1566 = vmatprep.subr.bf16.mxu0 0
  %1567 = vmatpush1.bf16.msra.mxu0 %v795
  %1568 = vmatprep.subr.bf16.mxu0 0
  %1569 = vmatpush1.bf16.msra.mxu0 %v796
  %1570 = vmatprep.subr.bf16.mxu0 0
  %1571 = vmatpush1.bf16.msra.mxu0 %v797
  %1572 = vmatprep.subr.bf16.mxu0 0
  %1573 = vmatpush1.bf16.msra.mxu0 %v798
  %1574 = vmatprep.subr.bf16.mxu0 0
  %1575 = vmatpush1.bf16.msra.mxu0 %v799
  %1576 = vmatprep.subr.bf16.mxu0 0
  %1577 = vmatpush1.bf16.msra.mxu0 %v800
  %1578 = vmatprep.subr.bf16.mxu0 0
  %1579 = vmatpush1.bf16.msra.mxu0 %v801
  %1580 = vmatprep.subr.bf16.mxu0 0
  %1581 = vmatpush1.bf16.msra.mxu0 %v802
  %1582 = vmatprep.subr.bf16.mxu0 0
  %1583 = vmatpush1.bf16.msra.mxu0 %v803
  %1584 = vmatprep.subr.bf16.mxu0 0
  %1585 = vmatpush1.bf16.msra.mxu0 %v804
  %1586 = vmatprep.subr.bf16.mxu0 0
  %1587 = vmatpush1.bf16.msra.mxu0 %v805
  %1588 = vmatprep.subr.bf16.mxu0 0
  %1589 = vmatpush1.bf16.msra.mxu0 %v806
  %1590 = vmatprep.subr.bf16.mxu0 0
  %1591 = vmatpush1.bf16.msra.mxu0 %v807
  %1592 = vmatprep.subr.bf16.mxu0 0
  %1593 = vmatpush1.bf16.msra.mxu0 %v808
  %1594 = vmatprep.subr.bf16.mxu0 0
  %1595 = vmatpush1.bf16.msra.mxu0 %v809
  %1596 = vmatprep.mubr.bf16.mxu0 %v31
  %1597 = vmatmul.mubr.bf16.gmra.mrb[0].mxu0 %v28
  %v1598 = vpop.f32.mrb[0].mxu0
  %v1599 = vadd.f32 %v1559, %v1598
  %v1600 = vpop.f32.mrb[0].mxu0
  %v1601 = vpop.f32.mrb[0].mxu0
  %v1602 = vpop.f32.mrb[0].mxu0
  %1603 = vdwg.mxu0
  %1604 = vmatprep.subr.bf16.mxu0 0
  %1605 = vmatpush1.bf16.msra.mxu0 %v810
  %1606 = vmatprep.subr.bf16.mxu0 0
  %1607 = vmatpush1.bf16.msra.mxu0 %v811
  %1608 = vmatprep.subr.bf16.mxu0 0
  %1609 = vmatpush1.bf16.msra.mxu0 %v812
  %1610 = vmatprep.subr.bf16.mxu0 0
  %1611 = vmatpush1.bf16.msra.mxu0 %v813
  %1612 = vmatprep.subr.bf16.mxu0 0
  %1613 = vmatpush1.bf16.msra.mxu0 %v814
  %1614 = vmatprep.subr.bf16.mxu0 0
  %1615 = vmatpush1.bf16.msra.mxu0 %v815
  %1616 = vmatprep.subr.bf16.mxu0 0
  %1617 = vmatpush1.bf16.msra.mxu0 %v816
  %1618 = vmatprep.subr.bf16.mxu0 0
  %1619 = vmatpush1.bf16.msra.mxu0 %v817
  %1620 = vmatprep.subr.bf16.mxu0 0
  %1621 = vmatpush1.bf16.msra.mxu0 %v818
  %1622 = vmatprep.subr.bf16.mxu0 0
  %1623 = vmatpush1.bf16.msra.mxu0 %v819
  %1624 = vmatprep.subr.bf16.mxu0 0
  %1625 = vmatpush1.bf16.msra.mxu0 %v820
  %1626 = vmatprep.subr.bf16.mxu0 0
  %1627 = vmatpush1.bf16.msra.mxu0 %v821
  %1628 = vmatprep.subr.bf16.mxu0 0
  %1629 = vmatpush1.bf16.msra.mxu0 %v822
  %1630 = vmatprep.subr.bf16.mxu0 0
  %1631 = vmatpush1.bf16.msra.mxu0 %v823
  %1632 = vmatprep.subr.bf16.mxu0 0
  %1633 = vmatpush1.bf16.msra.mxu0 %v824
  %1634 = vmatprep.subr.bf16.mxu0 0
  %1635 = vmatpush1.bf16.msra.mxu0 %v825
  %1636 = vmatprep.mubr.bf16.mxu0 %v33
  %1637 = vmatmul.mubr.bf16.gmra.mrb[0].mxu0 %v32
  %v1638 = vpop.f32.mrb[0].mxu0
  %v1639 = vadd.f32 %v1599, %v1638
  %v1640 = vpop.f32.mrb[0].mxu0
  %v1641 = vpop.f32.mrb[0].mxu0
  %v1642 = vpop.f32.mrb[0].mxu0
  %1643 = vdwg.mxu0
  %1644 = vmatprep.subr.bf16.mxu0 0
  %1645 = vmatpush1.bf16.msra.mxu0 %v826
  %1646 = vmatprep.subr.bf16.mxu0 0
  %1647 = vmatpush1.bf16.msra.mxu0 %v827
  %1648 = vmatprep.subr.bf16.mxu0 0
  %1649 = vmatpush1.bf16.msra.mxu0 %v828
  %1650 = vmatprep.subr.bf16.mxu0 0
  %1651 = vmatpush1.bf16.msra.mxu0 %v829
  %1652 = vmatprep.subr.bf16.mxu0 0
  %1653 = vmatpush1.bf16.msra.mxu0 %v830
  %1654 = vmatprep.subr.bf16.mxu0 0
  %1655 = vmatpush1.bf16.msra.mxu0 %v831
  %1656 = vmatprep.subr.bf16.mxu0 0
  %1657 = vmatpush1.bf16.msra.mxu0 %v832
  %1658 = vmatprep.subr.bf16.mxu0 0
  %1659 = vmatpush1.bf16.msra.mxu0 %v833
  %1660 = vmatprep.subr.bf16.mxu0 0
  %1661 = vmatpush1.bf16.msra.mxu0 %v834
  %1662 = vmatprep.subr.bf16.mxu0 0
  %1663 = vmatpush1.bf16.msra.mxu0 %v835
  %1664 = vmatprep.subr.bf16.mxu0 0
  %1665 = vmatpush1.bf16.msra.mxu0 %v836
  %1666 = vmatprep.subr.bf16.mxu0 0
  %1667 = vmatpush1.bf16.msra.mxu0 %v837
  %1668 = vmatprep.subr.bf16.mxu0 0
  %1669 = vmatpush1.bf16.msra.mxu0 %v838
  %1670 = vmatprep.subr.bf16.mxu0 0
  %1671 = vmatpush1.bf16.msra.mxu0 %v839
  %1672 = vmatprep.subr.bf16.mxu0 0
  %1673 = vmatpush1.bf16.msra.mxu0 %v840
  %1674 = vmatprep.subr.bf16.mxu0 0
  %1675 = vmatpush1.bf16.msra.mxu0 %v841
  %1676 = vmatprep.mubr.bf16.mxu0 %v37
  %1677 = vmatmul.mubr.bf16.gmra.mrb[0].mxu0 %v36
  %v1678 = vpop.f32.mrb[0].mxu0
  %v1679 = vadd.f32 %v1639, %v1678
  %v1680 = vpop.f32.mrb[0].mxu0
  %v1681 = vpop.f32.mrb[0].mxu0
  %v1682 = vpop.f32.mrb[0].mxu0
  %1683 = vdwg.mxu0
  %1684 = vmatprep.subr.bf16.mxu0 0
  %1685 = vmatpush1.bf16.msra.mxu0 %v842
  %1686 = vmatprep.subr.bf16.mxu0 0
  %1687 = vmatpush1.bf16.msra.mxu0 %v843
  %1688 = vmatprep.subr.bf16.mxu0 0
  %1689 = vmatpush1.bf16.msra.mxu0 %v844
  %1690 = vmatprep.subr.bf16.mxu0 0
  %1691 = vmatpush1.bf16.msra.mxu0 %v845
  %1692 = vmatprep.subr.bf16.mxu0 0
  %1693 = vmatpush1.bf16.msra.mxu0 %v846
  %1694 = vmatprep.subr.bf16.mxu0 0
  %1695 = vmatpush1.bf16.msra.mxu0 %v847
  %1696 = vmatprep.subr.bf16.mxu0 0
  %1697 = vmatpush1.bf16.msra.mxu0 %v848
  %1698 = vmatprep.subr.bf16.mxu0 0
  %1699 = vmatpush1.bf16.msra.mxu0 %v849
  %1700 = vmatprep.subr.bf16.mxu0 0
  %1701 = vmatpush1.bf16.msra.mxu0 0
  %1702 = vmatprep.subr.bf16.mxu0 0
  %1703 = vmatpush1.bf16.msra.mxu0 0
  %1704 = vmatprep.subr.bf16.mxu0 0
  %1705 = vmatpush1.bf16.msra.mxu0 0
  %1706 = vmatprep.subr.bf16.mxu0 0
  %1707 = vmatpush1.bf16.msra.mxu0 0
  %1708 = vmatprep.subr.bf16.mxu0 0
  %1709 = vmatpush1.bf16.msra.mxu0 0
  %1710 = vmatprep.subr.bf16.mxu0 0
  %1711 = vmatpush1.bf16.msra.mxu0 0
  %1712 = vmatprep.subr.bf16.mxu0 0
  %1713 = vmatpush1.bf16.msra.mxu0 0
  %1714 = vmatprep.subr.bf16.mxu0 0
  %1715 = vmatpush1.bf16.msra.mxu0 0
  %1716 = vmatprep.mubr.bf16.mxu0 0
  %1717 = vmatmul.mubr.bf16.gmra.mrb[0].mxu0 %v38
  %v1718 = vpop.f32.mrb[0].mxu0
  %v1719 = vadd.f32 %v1679, %v1718
  %v1720 = vpop.f32.mrb[0].mxu0
  %v1721 = vpop.f32.mrb[0].mxu0
  %v1722 = vpop.f32.mrb[0].mxu0
  %1723 = vdwg.mxu0
  %v1724 = vmax.f32 %v1523, %v1719
  %1725 = vmatprep.subr.bf16.mxu0 0
  %1726 = vmatpush1.bf16.msra.mxu0 %v778
  %1727 = vmatprep.subr.bf16.mxu0 0
  %1728 = vmatpush1.bf16.msra.mxu0 %v779
  %1729 = vmatprep.subr.bf16.mxu0 0
  %1730 = vmatpush1.bf16.msra.mxu0 %v780
  %1731 = vmatprep.subr.bf16.mxu0 0
  %1732 = vmatpush1.bf16.msra.mxu0 %v781
  %1733 = vmatprep.subr.bf16.mxu0 0
  %1734 = vmatpush1.bf16.msra.mxu0 %v782
  %1735 = vmatprep.subr.bf16.mxu0 0
  %1736 = vmatpush1.bf16.msra.mxu0 %v783
  %1737 = vmatprep.subr.bf16.mxu0 0
  %1738 = vmatpush1.bf16.msra.mxu0 %v784
  %1739 = vmatprep.subr.bf16.mxu0 0
  %1740 = vmatpush1.bf16.msra.mxu0 %v785
  %1741 = vmatprep.subr.bf16.mxu0 0
  %1742 = vmatpush1.bf16.msra.mxu0 %v786
  %1743 = vmatprep.subr.bf16.mxu0 0
  %1744 = vmatpush1.bf16.msra.mxu0 %v787
  %1745 = vmatprep.subr.bf16.mxu0 0
  %1746 = vmatpush1.bf16.msra.mxu0 %v788
  %1747 = vmatprep.subr.bf16.mxu0 0
  %1748 = vmatpush1.bf16.msra.mxu0 %v789
  %1749 = vmatprep.subr.bf16.mxu0 0
  %1750 = vmatpush1.bf16.msra.mxu0 %v790
  %1751 = vmatprep.subr.bf16.mxu0 0
  %1752 = vmatpush1.bf16.msra.mxu0 %v791
  %1753 = vmatprep.subr.bf16.mxu0 0
  %1754 = vmatpush1.bf16.msra.mxu0 %v792
  %1755 = vmatprep.subr.bf16.mxu0 0
  %1756 = vmatpush1.bf16.msra.mxu0 %v793
  %1757 = vmatprep.mubr.bf16.mxu0 %v28
  %1758 = vmatmul.mubr.bf16.gmra.mrb[0].mxu0 %v27
  %v1759 = vpop.f32.mrb[0].mxu0
  %v1760 = vadd.f32 0.0, %v1759
  %v1761 = vpop.f32.mrb[0].mxu0
  %v1762 = vpop.f32.mrb[0].mxu0
  %v1763 = vpop.f32.mrb[0].mxu0
  %1764 = vdwg.mxu0
  %1765 = vmatprep.subr.bf16.mxu0 0
  %1766 = vmatpush1.bf16.msra.mxu0 %v794
  %1767 = vmatprep.subr.bf16.mxu0 0
  %1768 = vmatpush1.bf16.msra.mxu0 %v795
  %1769 = vmatprep.subr.bf16.mxu0 0
  %1770 = vmatpush1.bf16.msra.mxu0 %v796
  %1771 = vmatprep.subr.bf16.mxu0 0
  %1772 = vmatpush1.bf16.msra.mxu0 %v797
  %1773 = vmatprep.subr.bf16.mxu0 0
  %1774 = vmatpush1.bf16.msra.mxu0 %v798
  %1775 = vmatprep.subr.bf16.mxu0 0
  %1776 = vmatpush1.bf16.msra.mxu0 %v799
  %1777 = vmatprep.subr.bf16.mxu0 0
  %1778 = vmatpush1.bf16.msra.mxu0 %v800
  %1779 = vmatprep.subr.bf16.mxu0 0
  %1780 = vmatpush1.bf16.msra.mxu0 %v801
  %1781 = vmatprep.subr.bf16.mxu0 0
  %1782 = vmatpush1.bf16.msra.mxu0 %v802
  %1783 = vmatprep.subr.bf16.mxu0 0
  %1784 = vmatpush1.bf16.msra.mxu0 %v803
  %1785 = vmatprep.subr.bf16.mxu0 0
  %1786 = vmatpush1.bf16.msra.mxu0 %v804
  %1787 = vmatprep.subr.bf16.mxu0 0
  %1788 = vmatpush1.bf16.msra.mxu0 %v805
  %1789 = vmatprep.subr.bf16.mxu0 0
  %1790 = vmatpush1.bf16.msra.mxu0 %v806
  %1791 = vmatprep.subr.bf16.mxu0 0
  %1792 = vmatpush1.bf16.msra.mxu0 %v807
  %1793 = vmatprep.subr.bf16.mxu0 0
  %1794 = vmatpush1.bf16.msra.mxu0 %v808
  %1795 = vmatprep.subr.bf16.mxu0 0
  %1796 = vmatpush1.bf16.msra.mxu0 %v809
  %1797 = vmatprep.mubr.bf16.mxu0 %v32
  %1798 = vmatmul.mubr.bf16.gmra.mrb[0].mxu0 %v29
  %v1799 = vpop.f32.mrb[0].mxu0
  %v1800 = vadd.f32 %v1760, %v1799
  %v1801 = vpop.f32.mrb[0].mxu0
  %v1802 = vpop.f32.mrb[0].mxu0
  %v1803 = vpop.f32.mrb[0].mxu0
  %1804 = vdwg.mxu0
  %1805 = vmatprep.subr.bf16.mxu0 0
  %1806 = vmatpush1.bf16.msra.mxu0 %v810
  %1807 = vmatprep.subr.bf16.mxu0 0
  %1808 = vmatpush1.bf16.msra.mxu0 %v811
  %1809 = vmatprep.subr.bf16.mxu0 0
  %1810 = vmatpush1.bf16.msra.mxu0 %v812
  %1811 = vmatprep.subr.bf16.mxu0 0
  %1812 = vmatpush1.bf16.msra.mxu0 %v813
  %1813 = vmatprep.subr.bf16.mxu0 0
  %1814 = vmatpush1.bf16.msra.mxu0 %v814
  %1815 = vmatprep.subr.bf16.mxu0 0
  %1816 = vmatpush1.bf16.msra.mxu0 %v815
  %1817 = vmatprep.subr.bf16.mxu0 0
  %1818 = vmatpush1.bf16.msra.mxu0 %v816
  %1819 = vmatprep.subr.bf16.mxu0 0
  %1820 = vmatpush1.bf16.msra.mxu0 %v817
  %1821 = vmatprep.subr.bf16.mxu0 0
  %1822 = vmatpush1.bf16.msra.mxu0 %v818
  %1823 = vmatprep.subr.bf16.mxu0 0
  %1824 = vmatpush1.bf16.msra.mxu0 %v819
  %1825 = vmatprep.subr.bf16.mxu0 0
  %1826 = vmatpush1.bf16.msra.mxu0 %v820
  %1827 = vmatprep.subr.bf16.mxu0 0
  %1828 = vmatpush1.bf16.msra.mxu0 %v821
  %1829 = vmatprep.subr.bf16.mxu0 0
  %1830 = vmatpush1.bf16.msra.mxu0 %v822
  %1831 = vmatprep.subr.bf16.mxu0 0
  %1832 = vmatpush1.bf16.msra.mxu0 %v823
  %1833 = vmatprep.subr.bf16.mxu0 0
  %1834 = vmatpush1.bf16.msra.mxu0 %v824
  %1835 = vmatprep.subr.bf16.mxu0 0
  %1836 = vmatpush1.bf16.msra.mxu0 %v825
  %1837 = vmatprep.mubr.bf16.mxu0 %v34
  %1838 = vmatmul.mubr.bf16.gmra.mrb[0].mxu0 %v33
  %v1839 = vpop.f32.mrb[0].mxu0
  %v1840 = vadd.f32 %v1800, %v1839
  %v1841 = vpop.f32.mrb[0].mxu0
  %v1842 = vpop.f32.mrb[0].mxu0
  %v1843 = vpop.f32.mrb[0].mxu0
  %1844 = vdwg.mxu0
  %1845 = vmatprep.subr.bf16.mxu0 0
  %1846 = vmatpush1.bf16.msra.mxu0 %v826
  %1847 = vmatprep.subr.bf16.mxu0 0
  %1848 = vmatpush1.bf16.msra.mxu0 %v827
  %1849 = vmatprep.subr.bf16.mxu0 0
  %1850 = vmatpush1.bf16.msra.mxu0 %v828
  %1851 = vmatprep.subr.bf16.mxu0 0
  %1852 = vmatpush1.bf16.msra.mxu0 %v829
  %1853 = vmatprep.subr.bf16.mxu0 0
  %1854 = vmatpush1.bf16.msra.mxu0 %v830
  %1855 = vmatprep.subr.bf16.mxu0 0
  %1856 = vmatpush1.bf16.msra.mxu0 %v831
  %1857 = vmatprep.subr.bf16.mxu0 0
  %1858 = vmatpush1.bf16.msra.mxu0 %v832
  %1859 = vmatprep.subr.bf16.mxu0 0
  %1860 = vmatpush1.bf16.msra.mxu0 %v833
  %1861 = vmatprep.subr.bf16.mxu0 0
  %1862 = vmatpush1.bf16.msra.mxu0 %v834
  %1863 = vmatprep.subr.bf16.mxu0 0
  %1864 = vmatpush1.bf16.msra.mxu0 %v835
  %1865 = vmatprep.subr.bf16.mxu0 0
  %1866 = vmatpush1.bf16.msra.mxu0 %v836
  %1867 = vmatprep.subr.bf16.mxu0 0
  %1868 = vmatpush1.bf16.msra.mxu0 %v837
  %1869 = vmatprep.subr.bf16.mxu0 0
  %1870 = vmatpush1.bf16.msra.mxu0 %v838
  %1871 = vmatprep.subr.bf16.mxu0 0
  %1872 = vmatpush1.bf16.msra.mxu0 %v839
  %1873 = vmatprep.subr.bf16.mxu0 0
  %1874 = vmatpush1.bf16.msra.mxu0 %v840
  %1875 = vmatprep.subr.bf16.mxu0 0
  %1876 = vmatpush1.bf16.msra.mxu0 %v841
  %1877 = vmatprep.mubr.bf16.mxu0 %v38
  %1878 = vmatmul.mubr.bf16.gmra.mrb[0].mxu0 %v37
  %v1879 = vpop.f32.mrb[0].mxu0
  %v1880 = vadd.f32 %v1840, %v1879
  %v1881 = vpop.f32.mrb[0].mxu0
  %v1882 = vpop.f32.mrb[0].mxu0
  %v1883 = vpop.f32.mrb[0].mxu0
  %1884 = vdwg.mxu0
  %1885 = vmatprep.subr.bf16.mxu0 0
  %1886 = vmatpush1.bf16.msra.mxu0 %v842
  %1887 = vmatprep.subr.bf16.mxu0 0
  %1888 = vmatpush1.bf16.msra.mxu0 %v843
  %1889 = vmatprep.subr.bf16.mxu0 0
  %1890 = vmatpush1.bf16.msra.mxu0 %v844
  %1891 = vmatprep.subr.bf16.mxu0 0
  %1892 = vmatpush1.bf16.msra.mxu0 %v845
  %1893 = vmatprep.subr.bf16.mxu0 0
  %1894 = vmatpush1.bf16.msra.mxu0 %v846
  %1895 = vmatprep.subr.bf16.mxu0 0
  %1896 = vmatpush1.bf16.msra.mxu0 %v847
  %1897 = vmatprep.subr.bf16.mxu0 0
  %1898 = vmatpush1.bf16.msra.mxu0 %v848
  %1899 = vmatprep.subr.bf16.mxu0 0
  %1900 = vmatpush1.bf16.msra.mxu0 %v849
  %1901 = vmatprep.subr.bf16.mxu0 0
  %1902 = vmatpush1.bf16.msra.mxu0 0
  %1903 = vmatprep.subr.bf16.mxu0 0
  %1904 = vmatpush1.bf16.msra.mxu0 0
  %1905 = vmatprep.subr.bf16.mxu0 0
  %1906 = vmatpush1.bf16.msra.mxu0 0
  %1907 = vmatprep.subr.bf16.mxu0 0
  %1908 = vmatpush1.bf16.msra.mxu0 0
  %1909 = vmatprep.subr.bf16.mxu0 0
  %1910 = vmatpush1.bf16.msra.mxu0 0
  %1911 = vmatprep.subr.bf16.mxu0 0
  %1912 = vmatpush1.bf16.msra.mxu0 0
  %1913 = vmatprep.subr.bf16.mxu0 0
  %1914 = vmatpush1.bf16.msra.mxu0 0
  %1915 = vmatprep.subr.bf16.mxu0 0
  %1916 = vmatpush1.bf16.msra.mxu0 0
  %1917 = vmatprep.mubr.bf16.mxu0 0
  %1918 = vmatmul.mubr.bf16.gmra.mrb[0].mxu0 %v39
  %v1919 = vpop.f32.mrb[0].mxu0
  %v1920 = vadd.f32 %v1880, %v1919
  %v1921 = vpop.f32.mrb[0].mxu0
  %v1922 = vpop.f32.mrb[0].mxu0
  %v1923 = vpop.f32.mrb[0].mxu0
  %1924 = vdwg.mxu0
  %v1925 = vmax.f32 %v1724, %v1920
  %1926 = vmatprep.subr.bf16.mxu0 0
  %1927 = vmatpush1.bf16.msra.mxu0 %v778
  %1928 = vmatprep.subr.bf16.mxu0 0
  %1929 = vmatpush1.bf16.msra.mxu0 %v779
  %1930 = vmatprep.subr.bf16.mxu0 0
  %1931 = vmatpush1.bf16.msra.mxu0 %v780
  %1932 = vmatprep.subr.bf16.mxu0 0
  %1933 = vmatpush1.bf16.msra.mxu0 %v781
  %1934 = vmatprep.subr.bf16.mxu0 0
  %1935 = vmatpush1.bf16.msra.mxu0 %v782
  %1936 = vmatprep.subr.bf16.mxu0 0
  %1937 = vmatpush1.bf16.msra.mxu0 %v783
  %1938 = vmatprep.subr.bf16.mxu0 0
  %1939 = vmatpush1.bf16.msra.mxu0 %v784
  %1940 = vmatprep.subr.bf16.mxu0 0
  %1941 = vmatpush1.bf16.msra.mxu0 %v785
  %1942 = vmatprep.subr.bf16.mxu0 0
  %1943 = vmatpush1.bf16.msra.mxu0 %v786
  %1944 = vmatprep.subr.bf16.mxu0 0
  %1945 = vmatpush1.bf16.msra.mxu0 %v787
  %1946 = vmatprep.subr.bf16.mxu0 0
  %1947 = vmatpush1.bf16.msra.mxu0 %v788
  %1948 = vmatprep.subr.bf16.mxu0 0
  %1949 = vmatpush1.bf16.msra.mxu0 %v789
  %1950 = vmatprep.subr.bf16.mxu0 0
  %1951 = vmatpush1.bf16.msra.mxu0 %v790
  %1952 = vmatprep.subr.bf16.mxu0 0
  %1953 = vmatpush1.bf16.msra.mxu0 %v791
  %1954 = vmatprep.subr.bf16.mxu0 0
  %1955 = vmatpush1.bf16.msra.mxu0 %v792
  %1956 = vmatprep.subr.bf16.mxu0 0
  %1957 = vmatpush1.bf16.msra.mxu0 %v793
  %1958 = vmatprep.mubr.bf16.mxu0 %v29
  %1959 = vmatmul.mubr.bf16.gmra.mrb[0].mxu0 %v28
  %v1960 = vpop.f32.mrb[0].mxu0
  %v1961 = vadd.f32 0.0, %v1960
  %v1962 = vpop.f32.mrb[0].mxu0
  %v1963 = vpop.f32.mrb[0].mxu0
  %v1964 = vpop.f32.mrb[0].mxu0
  %1965 = vdwg.mxu0
  %1966 = vmatprep.subr.bf16.mxu0 0
  %1967 = vmatpush1.bf16.msra.mxu0 %v794
  %1968 = vmatprep.subr.bf16.mxu0 0
  %1969 = vmatpush1.bf16.msra.mxu0 %v795
  %1970 = vmatprep.subr.bf16.mxu0 0
  %1971 = vmatpush1.bf16.msra.mxu0 %v796
  %1972 = vmatprep.subr.bf16.mxu0 0
  %1973 = vmatpush1.bf16.msra.mxu0 %v797
  %1974 = vmatprep.subr.bf16.mxu0 0
  %1975 = vmatpush1.bf16.msra.mxu0 %v798
  %1976 = vmatprep.subr.bf16.mxu0 0
  %1977 = vmatpush1.bf16.msra.mxu0 %v799
  %1978 = vmatprep.subr.bf16.mxu0 0
  %1979 = vmatpush1.bf16.msra.mxu0 %v800
  %1980 = vmatprep.subr.bf16.mxu0 0
  %1981 = vmatpush1.bf16.msra.mxu0 %v801
  %1982 = vmatprep.subr.bf16.mxu0 0
  %1983 = vmatpush1.bf16.msra.mxu0 %v802
  %1984 = vmatprep.subr.bf16.mxu0 0
  %1985 = vmatpush1.bf16.msra.mxu0 %v803
  %1986 = vmatprep.subr.bf16.mxu0 0
  %1987 = vmatpush1.bf16.msra.mxu0 %v804
  %1988 = vmatprep.subr.bf16.mxu0 0
  %1989 = vmatpush1.bf16.msra.mxu0 %v805
  %1990 = vmatprep.subr.bf16.mxu0 0
  %1991 = vmatpush1.bf16.msra.mxu0 %v806
  %1992 = vmatprep.subr.bf16.mxu0 0
  %1993 = vmatpush1.bf16.msra.mxu0 %v807
  %1994 = vmatprep.subr.bf16.mxu0 0
  %1995 = vmatpush1.bf16.msra.mxu0 %v808
  %1996 = vmatprep.subr.bf16.mxu0 0
  %1997 = vmatpush1.bf16.msra.mxu0 %v809
  %1998 = vmatprep.mubr.bf16.mxu0 %v33
  %1999 = vmatmul.mubr.bf16.gmra.mrb[0].mxu0 %v30
  %v2000 = vpop.f32.mrb[0].mxu0
  %v2001 = vadd.f32 %v1961, %v2000
  %v2002 = vpop.f32.mrb[0].mxu0
  %v2003 = vpop.f32.mrb[0].mxu0
  %v2004 = vpop.f32.mrb[0].mxu0
  %2005 = vdwg.mxu0
  %2006 = vmatprep.subr.bf16.mxu0 0
  %2007 = vmatpush1.bf16.msra.mxu0 %v810
  %2008 = vmatprep.subr.bf16.mxu0 0
  %2009 = vmatpush1.bf16.msra.mxu0 %v811
  %2010 = vmatprep.subr.bf16.mxu0 0
  %2011 = vmatpush1.bf16.msra.mxu0 %v812
  %2012 = vmatprep.subr.bf16.mxu0 0
  %2013 = vmatpush1.bf16.msra.mxu0 %v813
  %2014 = vmatprep.subr.bf16.mxu0 0
  %2015 = vmatpush1.bf16.msra.mxu0 %v814
  %2016 = vmatprep.subr.bf16.mxu0 0
  %2017 = vmatpush1.bf16.msra.mxu0 %v815
  %2018 = vmatprep.subr.bf16.mxu0 0
  %2019 = vmatpush1.bf16.msra.mxu0 %v816
  %2020 = vmatprep.subr.bf16.mxu0 0
  %2021 = vmatpush1.bf16.msra.mxu0 %v817
  %2022 = vmatprep.subr.bf16.mxu0 0
  %2023 = vmatpush1.bf16.msra.mxu0 %v818
  %2024 = vmatprep.subr.bf16.mxu0 0
  %2025 = vmatpush1.bf16.msra.mxu0 %v819
  %2026 = vmatprep.subr.bf16.mxu0 0
  %2027 = vmatpush1.bf16.msra.mxu0 %v820
  %2028 = vmatprep.subr.bf16.mxu0 0
  %2029 = vmatpush1.bf16.msra.mxu0 %v821
  %2030 = vmatprep.subr.bf16.mxu0 0
  %2031 = vmatpush1.bf16.msra.mxu0 %v822
  %2032 = vmatprep.subr.bf16.mxu0 0
  %2033 = vmatpush1.bf16.msra.mxu0 %v823
  %2034 = vmatprep.subr.bf16.mxu0 0
  %2035 = vmatpush1.bf16.msra.mxu0 %v824
  %2036 = vmatprep.subr.bf16.mxu0 0
  %2037 = vmatpush1.bf16.msra.mxu0 %v825
  %2038 = vmatprep.mubr.bf16.mxu0 %v35
  %2039 = vmatmul.mubr.bf16.gmra.mrb[0].mxu0 %v34
  %v2040 = vpop.f32.mrb[0].mxu0
  %v2041 = vadd.f32 %v2001, %v2040
  %v2042 = vpop.f32.mrb[0].mxu0
  %v2043 = vpop.f32.mrb[0].mxu0
  %v2044 = vpop.f32.mrb[0].mxu0
  %2045 = vdwg.mxu0
  %2046 = vmatprep.subr.bf16.mxu0 0
  %2047 = vmatpush1.bf16.msra.mxu0 %v826
  %2048 = vmatprep.subr.bf16.mxu0 0
  %2049 = vmatpush1.bf16.msra.mxu0 %v827
  %2050 = vmatprep.subr.bf16.mxu0 0
  %2051 = vmatpush1.bf16.msra.mxu0 %v828
  %2052 = vmatprep.subr.bf16.mxu0 0
  %2053 = vmatpush1.bf16.msra.mxu0 %v829
  %2054 = vmatprep.subr.bf16.mxu0 0
  %2055 = vmatpush1.bf16.msra.mxu0 %v830
  %2056 = vmatprep.subr.bf16.mxu0 0
  %2057 = vmatpush1.bf16.msra.mxu0 %v831
  %2058 = vmatprep.subr.bf16.mxu0 0
  %2059 = vmatpush1.bf16.msra.mxu0 %v832
  %2060 = vmatprep.subr.bf16.mxu0 0
  %2061 = vmatpush1.bf16.msra.mxu0 %v833
  %2062 = vmatprep.subr.bf16.mxu0 0
  %2063 = vmatpush1.bf16.msra.mxu0 %v834
  %2064 = vmatprep.subr.bf16.mxu0 0
  %2065 = vmatpush1.bf16.msra.mxu0 %v835
  %2066 = vmatprep.subr.bf16.mxu0 0
  %2067 = vmatpush1.bf16.msra.mxu0 %v836
  %2068 = vmatprep.subr.bf16.mxu0 0
  %2069 = vmatpush1.bf16.msra.mxu0 %v837
  %2070 = vmatprep.subr.bf16.mxu0 0
  %2071 = vmatpush1.bf16.msra.mxu0 %v838
  %2072 = vmatprep.subr.bf16.mxu0 0
  %2073 = vmatpush1.bf16.msra.mxu0 %v839
  %2074 = vmatprep.subr.bf16.mxu0 0
  %2075 = vmatpush1.bf16.msra.mxu0 %v840
  %2076 = vmatprep.subr.bf16.mxu0 0
  %2077 = vmatpush1.bf16.msra.mxu0 %v841
  %2078 = vmatprep.mubr.bf16.mxu0 %v39
  %2079 = vmatmul.mubr.bf16.gmra.mrb[0].mxu0 %v38
  %v2080 = vpop.f32.mrb[0].mxu0
  %v2081 = vadd.f32 %v2041, %v2080
  %v2082 = vpop.f32.mrb[0].mxu0
  %v2083 = vpop.f32.mrb[0].mxu0
  %v2084 = vpop.f32.mrb[0].mxu0
  %2085 = vdwg.mxu0
  %2086 = vmatprep.subr.bf16.mxu0 0
  %2087 = vmatpush1.bf16.msra.mxu0 %v842
  %2088 = vmatprep.subr.bf16.mxu0 0
  %2089 = vmatpush1.bf16.msra.mxu0 %v843
  %2090 = vmatprep.subr.bf16.mxu0 0
  %2091 = vmatpush1.bf16.msra.mxu0 %v844
  %2092 = vmatprep.subr.bf16.mxu0 0
  %2093 = vmatpush1.bf16.msra.mxu0 %v845
  %2094 = vmatprep.subr.bf16.mxu0 0
  %2095 = vmatpush1.bf16.msra.mxu0 %v846
  %2096 = vmatprep.subr.bf16.mxu0 0
  %2097 = vmatpush1.bf16.msra.mxu0 %v847
  %2098 = vmatprep.subr.bf16.mxu0 0
  %2099 = vmatpush1.bf16.msra.mxu0 %v848
  %2100 = vmatprep.subr.bf16.mxu0 0
  %2101 = vmatpush1.bf16.msra.mxu0 %v849
  %2102 = vmatprep.subr.bf16.mxu0 0
  %2103 = vmatpush1.bf16.msra.mxu0 0
  %2104 = vmatprep.subr.bf16.mxu0 0
  %2105 = vmatpush1.bf16.msra.mxu0 0
  %2106 = vmatprep.subr.bf16.mxu0 0
  %2107 = vmatpush1.bf16.msra.mxu0 0
  %2108 = vmatprep.subr.bf16.mxu0 0
  %2109 = vmatpush1.bf16.msra.mxu0 0
  %2110 = vmatprep.subr.bf16.mxu0 0
  %2111 = vmatpush1.bf16.msra.mxu0 0
  %2112 = vmatprep.subr.bf16.mxu0 0
  %2113 = vmatpush1.bf16.msra.mxu0 0
  %2114 = vmatprep.subr.bf16.mxu0 0
  %2115 = vmatpush1.bf16.msra.mxu0 0
  %2116 = vmatprep.subr.bf16.mxu0 0
  %2117 = vmatpush1.bf16.msra.mxu0 0
  %2118 = vmatprep.mubr.bf16.mxu0 0
  %2119 = vmatmul.mubr.bf16.gmra.mrb[0].mxu0 %v40
  %v2120 = vpop.f32.mrb[0].mxu0
  %v2121 = vadd.f32 %v2081, %v2120
  %v2122 = vpop.f32.mrb[0].mxu0
  %v2123 = vpop.f32.mrb[0].mxu0
  %v2124 = vpop.f32.mrb[0].mxu0
  %2125 = vdwg.mxu0
  %v2126 = vmax.f32 %v1925, %v2121
  %2127 = vmatprep.subr.bf16.mxu0 0
  %2128 = vmatpush1.bf16.msra.mxu0 %v778
  %2129 = vmatprep.subr.bf16.mxu0 0
  %2130 = vmatpush1.bf16.msra.mxu0 %v779
  %2131 = vmatprep.subr.bf16.mxu0 0
  %2132 = vmatpush1.bf16.msra.mxu0 %v780
  %2133 = vmatprep.subr.bf16.mxu0 0
  %2134 = vmatpush1.bf16.msra.mxu0 %v781
  %2135 = vmatprep.subr.bf16.mxu0 0
  %2136 = vmatpush1.bf16.msra.mxu0 %v782
  %2137 = vmatprep.subr.bf16.mxu0 0
  %2138 = vmatpush1.bf16.msra.mxu0 %v783
  %2139 = vmatprep.subr.bf16.mxu0 0
  %2140 = vmatpush1.bf16.msra.mxu0 %v784
  %2141 = vmatprep.subr.bf16.mxu0 0
  %2142 = vmatpush1.bf16.msra.mxu0 %v785
  %2143 = vmatprep.subr.bf16.mxu0 0
  %2144 = vmatpush1.bf16.msra.mxu0 %v786
  %2145 = vmatprep.subr.bf16.mxu0 0
  %2146 = vmatpush1.bf16.msra.mxu0 %v787
  %2147 = vmatprep.subr.bf16.mxu0 0
  %2148 = vmatpush1.bf16.msra.mxu0 %v788
  %2149 = vmatprep.subr.bf16.mxu0 0
  %2150 = vmatpush1.bf16.msra.mxu0 %v789
  %2151 = vmatprep.subr.bf16.mxu0 0
  %2152 = vmatpush1.bf16.msra.mxu0 %v790
  %2153 = vmatprep.subr.bf16.mxu0 0
  %2154 = vmatpush1.bf16.msra.mxu0 %v791
  %2155 = vmatprep.subr.bf16.mxu0 0
  %2156 = vmatpush1.bf16.msra.mxu0 %v792
  %2157 = vmatprep.subr.bf16.mxu0 0
  %2158 = vmatpush1.bf16.msra.mxu0 %v793
  %2159 = vmatprep.mubr.bf16.mxu0 %v32
  %2160 = vmatmul.mubr.bf16.gmra.mrb[0].mxu0 %v31
  %v2161 = vpop.f32.mrb[0].mxu0
  %v2162 = vadd.f32 0.0, %v2161
  %v2163 = vpop.f32.mrb[0].mxu0
  %v2164 = vpop.f32.mrb[0].mxu0
  %v2165 = vpop.f32.mrb[0].mxu0
  %2166 = vdwg.mxu0
  %2167 = vmatprep.subr.bf16.mxu0 0
  %2168 = vmatpush1.bf16.msra.mxu0 %v794
  %2169 = vmatprep.subr.bf16.mxu0 0
  %2170 = vmatpush1.bf16.msra.mxu0 %v795
  %2171 = vmatprep.subr.bf16.mxu0 0
  %2172 = vmatpush1.bf16.msra.mxu0 %v796
  %2173 = vmatprep.subr.bf16.mxu0 0
  %2174 = vmatpush1.bf16.msra.mxu0 %v797
  %2175 = vmatprep.subr.bf16.mxu0 0
  %2176 = vmatpush1.bf16.msra.mxu0 %v798
  %2177 = vmatprep.subr.bf16.mxu0 0
  %2178 = vmatpush1.bf16.msra.mxu0 %v799
  %2179 = vmatprep.subr.bf16.mxu0 0
  %2180 = vmatpush1.bf16.msra.mxu0 %v800
  %2181 = vmatprep.subr.bf16.mxu0 0
  %2182 = vmatpush1.bf16.msra.mxu0 %v801
  %2183 = vmatprep.subr.bf16.mxu0 0
  %2184 = vmatpush1.bf16.msra.mxu0 %v802
  %2185 = vmatprep.subr.bf16.mxu0 0
  %2186 = vmatpush1.bf16.msra.mxu0 %v803
  %2187 = vmatprep.subr.bf16.mxu0 0
  %2188 = vmatpush1.bf16.msra.mxu0 %v804
  %2189 = vmatprep.subr.bf16.mxu0 0
  %2190 = vmatpush1.bf16.msra.mxu0 %v805
  %2191 = vmatprep.subr.bf16.mxu0 0
  %2192 = vmatpush1.bf16.msra.mxu0 %v806
  %2193 = vmatprep.subr.bf16.mxu0 0
  %2194 = vmatpush1.bf16.msra.mxu0 %v807
  %2195 = vmatprep.subr.bf16.mxu0 0
  %2196 = vmatpush1.bf16.msra.mxu0 %v808
  %2197 = vmatprep.subr.bf16.mxu0 0
  %2198 = vmatpush1.bf16.msra.mxu0 %v809
  %2199 = vmatprep.mubr.bf16.mxu0 %v36
  %2200 = vmatmul.mubr.bf16.gmra.mrb[0].mxu0 %v33
  %v2201 = vpop.f32.mrb[0].mxu0
  %v2202 = vadd.f32 %v2162, %v2201
  %v2203 = vpop.f32.mrb[0].mxu0
  %v2204 = vpop.f32.mrb[0].mxu0
  %v2205 = vpop.f32.mrb[0].mxu0
  %2206 = vdwg.mxu0
  %2207 = vmatprep.subr.bf16.mxu0 0
  %2208 = vmatpush1.bf16.msra.mxu0 %v810
  %2209 = vmatprep.subr.bf16.mxu0 0
  %2210 = vmatpush1.bf16.msra.mxu0 %v811
  %2211 = vmatprep.subr.bf16.mxu0 0
  %2212 = vmatpush1.bf16.msra.mxu0 %v812
  %2213 = vmatprep.subr.bf16.mxu0 0
  %2214 = vmatpush1.bf16.msra.mxu0 %v813
  %2215 = vmatprep.subr.bf16.mxu0 0
  %2216 = vmatpush1.bf16.msra.mxu0 %v814
  %2217 = vmatprep.subr.bf16.mxu0 0
  %2218 = vmatpush1.bf16.msra.mxu0 %v815
  %2219 = vmatprep.subr.bf16.mxu0 0
  %2220 = vmatpush1.bf16.msra.mxu0 %v816
  %2221 = vmatprep.subr.bf16.mxu0 0
  %2222 = vmatpush1.bf16.msra.mxu0 %v817
  %2223 = vmatprep.subr.bf16.mxu0 0
  %2224 = vmatpush1.bf16.msra.mxu0 %v818
  %2225 = vmatprep.subr.bf16.mxu0 0
  %2226 = vmatpush1.bf16.msra.mxu0 %v819
  %2227 = vmatprep.subr.bf16.mxu0 0
  %2228 = vmatpush1.bf16.msra.mxu0 %v820
  %2229 = vmatprep.subr.bf16.mxu0 0
  %2230 = vmatpush1.bf16.msra.mxu0 %v821
  %2231 = vmatprep.subr.bf16.mxu0 0
  %2232 = vmatpush1.bf16.msra.mxu0 %v822
  %2233 = vmatprep.subr.bf16.mxu0 0
  %2234 = vmatpush1.bf16.msra.mxu0 %v823
  %2235 = vmatprep.subr.bf16.mxu0 0
  %2236 = vmatpush1.bf16.msra.mxu0 %v824
  %2237 = vmatprep.subr.bf16.mxu0 0
  %2238 = vmatpush1.bf16.msra.mxu0 %v825
  %2239 = vmatprep.mubr.bf16.mxu0 %v38
  %2240 = vmatmul.mubr.bf16.gmra.mrb[0].mxu0 %v37
  %v2241 = vpop.f32.mrb[0].mxu0
  %v2242 = vadd.f32 %v2202, %v2241
  %v2243 = vpop.f32.mrb[0].mxu0
  %v2244 = vpop.f32.mrb[0].mxu0
  %v2245 = vpop.f32.mrb[0].mxu0
  %2246 = vdwg.mxu0
  %2247 = vmatprep.subr.bf16.mxu0 0
  %2248 = vmatpush1.bf16.msra.mxu0 %v826
  %2249 = vmatprep.subr.bf16.mxu0 0
  %2250 = vmatpush1.bf16.msra.mxu0 %v827
  %2251 = vmatprep.subr.bf16.mxu0 0
  %2252 = vmatpush1.bf16.msra.mxu0 %v828
  %2253 = vmatprep.subr.bf16.mxu0 0
  %2254 = vmatpush1.bf16.msra.mxu0 %v829
  %2255 = vmatprep.subr.bf16.mxu0 0
  %2256 = vmatpush1.bf16.msra.mxu0 %v830
  %2257 = vmatprep.subr.bf16.mxu0 0
  %2258 = vmatpush1.bf16.msra.mxu0 %v831
  %2259 = vmatprep.subr.bf16.mxu0 0
  %2260 = vmatpush1.bf16.msra.mxu0 %v832
  %2261 = vmatprep.subr.bf16.mxu0 0
  %2262 = vmatpush1.bf16.msra.mxu0 %v833
  %2263 = vmatprep.subr.bf16.mxu0 0
  %2264 = vmatpush1.bf16.msra.mxu0 %v834
  %2265 = vmatprep.subr.bf16.mxu0 0
  %2266 = vmatpush1.bf16.msra.mxu0 %v835
  %2267 = vmatprep.subr.bf16.mxu0 0
  %2268 = vmatpush1.bf16.msra.mxu0 %v836
  %2269 = vmatprep.subr.bf16.mxu0 0
  %2270 = vmatpush1.bf16.msra.mxu0 %v837
  %2271 = vmatprep.subr.bf16.mxu0 0
  %2272 = vmatpush1.bf16.msra.mxu0 %v838
  %2273 = vmatprep.subr.bf16.mxu0 0
  %2274 = vmatpush1.bf16.msra.mxu0 %v839
  %2275 = vmatprep.subr.bf16.mxu0 0
  %2276 = vmatpush1.bf16.msra.mxu0 %v840
  %2277 = vmatprep.subr.bf16.mxu0 0
  %2278 = vmatpush1.bf16.msra.mxu0 %v841
  %2279 = vmatprep.mubr.bf16.mxu0 %v42
  %2280 = vmatmul.mubr.bf16.gmra.mrb[0].mxu0 %v41
  %v2281 = vpop.f32.mrb[0].mxu0
  %v2282 = vadd.f32 %v2242, %v2281
  %v2283 = vpop.f32.mrb[0].mxu0
  %v2284 = vpop.f32.mrb[0].mxu0
  %v2285 = vpop.f32.mrb[0].mxu0
  %2286 = vdwg.mxu0
  %2287 = vmatprep.subr.bf16.mxu0 0
  %2288 = vmatpush1.bf16.msra.mxu0 %v842
  %2289 = vmatprep.subr.bf16.mxu0 0
  %2290 = vmatpush1.bf16.msra.mxu0 %v843
  %2291 = vmatprep.subr.bf16.mxu0 0
  %2292 = vmatpush1.bf16.msra.mxu0 %v844
  %2293 = vmatprep.subr.bf16.mxu0 0
  %2294 = vmatpush1.bf16.msra.mxu0 %v845
  %2295 = vmatprep.subr.bf16.mxu0 0
  %2296 = vmatpush1.bf16.msra.mxu0 %v846
  %2297 = vmatprep.subr.bf16.mxu0 0
  %2298 = vmatpush1.bf16.msra.mxu0 %v847
  %2299 = vmatprep.subr.bf16.mxu0 0
  %2300 = vmatpush1.bf16.msra.mxu0 %v848
  %2301 = vmatprep.subr.bf16.mxu0 0
  %2302 = vmatpush1.bf16.msra.mxu0 %v849
  %2303 = vmatprep.subr.bf16.mxu0 0
  %2304 = vmatpush1.bf16.msra.mxu0 0
  %2305 = vmatprep.subr.bf16.mxu0 0
  %2306 = vmatpush1.bf16.msra.mxu0 0
  %2307 = vmatprep.subr.bf16.mxu0 0
  %2308 = vmatpush1.bf16.msra.mxu0 0
  %2309 = vmatprep.subr.bf16.mxu0 0
  %2310 = vmatpush1.bf16.msra.mxu0 0
  %2311 = vmatprep.subr.bf16.mxu0 0
  %2312 = vmatpush1.bf16.msra.mxu0 0
  %2313 = vmatprep.subr.bf16.mxu0 0
  %2314 = vmatpush1.bf16.msra.mxu0 0
  %2315 = vmatprep.subr.bf16.mxu0 0
  %2316 = vmatpush1.bf16.msra.mxu0 0
  %2317 = vmatprep.subr.bf16.mxu0 0
  %2318 = vmatpush1.bf16.msra.mxu0 0
  %2319 = vmatprep.mubr.bf16.mxu0 0
  %2320 = vmatmul.mubr.bf16.gmra.mrb[0].mxu0 %v43
  %v2321 = vpop.f32.mrb[0].mxu0
  %v2322 = vadd.f32 %v2282, %v2321
  %v2323 = vpop.f32.mrb[0].mxu0
  %v2324 = vpop.f32.mrb[0].mxu0
  %v2325 = vpop.f32.mrb[0].mxu0
  %2326 = vdwg.mxu0
  %v2327 = vmax.f32 %v2126, %v2322
  %2328 = vmatprep.subr.bf16.mxu0 0
  %2329 = vmatpush1.bf16.msra.mxu0 %v778
  %2330 = vmatprep.subr.bf16.mxu0 0
  %2331 = vmatpush1.bf16.msra.mxu0 %v779
  %2332 = vmatprep.subr.bf16.mxu0 0
  %2333 = vmatpush1.bf16.msra.mxu0 %v780
  %2334 = vmatprep.subr.bf16.mxu0 0
  %2335 = vmatpush1.bf16.msra.mxu0 %v781
  %2336 = vmatprep.subr.bf16.mxu0 0
  %2337 = vmatpush1.bf16.msra.mxu0 %v782
  %2338 = vmatprep.subr.bf16.mxu0 0
  %2339 = vmatpush1.bf16.msra.mxu0 %v783
  %2340 = vmatprep.subr.bf16.mxu0 0
  %2341 = vmatpush1.bf16.msra.mxu0 %v784
  %2342 = vmatprep.subr.bf16.mxu0 0
  %2343 = vmatpush1.bf16.msra.mxu0 %v785
  %2344 = vmatprep.subr.bf16.mxu0 0
  %2345 = vmatpush1.bf16.msra.mxu0 %v786
  %2346 = vmatprep.subr.bf16.mxu0 0
  %2347 = vmatpush1.bf16.msra.mxu0 %v787
  %2348 = vmatprep.subr.bf16.mxu0 0
  %2349 = vmatpush1.bf16.msra.mxu0 %v788
  %2350 = vmatprep.subr.bf16.mxu0 0
  %2351 = vmatpush1.bf16.msra.mxu0 %v789
  %2352 = vmatprep.subr.bf16.mxu0 0
  %2353 = vmatpush1.bf16.msra.mxu0 %v790
  %2354 = vmatprep.subr.bf16.mxu0 0
  %2355 = vmatpush1.bf16.msra.mxu0 %v791
  %2356 = vmatprep.subr.bf16.mxu0 0
  %2357 = vmatpush1.bf16.msra.mxu0 %v792
  %2358 = vmatprep.subr.bf16.mxu0 0
  %2359 = vmatpush1.bf16.msra.mxu0 %v793
  %2360 = vmatprep.mubr.bf16.mxu0 %v33
  %2361 = vmatmul.mubr.bf16.gmra.mrb[0].mxu0 %v32
  %v2362 = vpop.f32.mrb[0].mxu0
  %v2363 = vadd.f32 0.0, %v2362
  %v2364 = vpop.f32.mrb[0].mxu0
  %v2365 = vpop.f32.mrb[0].mxu0
  %v2366 = vpop.f32.mrb[0].mxu0
  %2367 = vdwg.mxu0
  %2368 = vmatprep.subr.bf16.mxu0 0
  %2369 = vmatpush1.bf16.msra.mxu0 %v794
  %2370 = vmatprep.subr.bf16.mxu0 0
  %2371 = vmatpush1.bf16.msra.mxu0 %v795
  %2372 = vmatprep.subr.bf16.mxu0 0
  %2373 = vmatpush1.bf16.msra.mxu0 %v796
  %2374 = vmatprep.subr.bf16.mxu0 0
  %2375 = vmatpush1.bf16.msra.mxu0 %v797
  %2376 = vmatprep.subr.bf16.mxu0 0
  %2377 = vmatpush1.bf16.msra.mxu0 %v798
  %2378 = vmatprep.subr.bf16.mxu0 0
  %2379 = vmatpush1.bf16.msra.mxu0 %v799
  %2380 = vmatprep.subr.bf16.mxu0 0
  %2381 = vmatpush1.bf16.msra.mxu0 %v800
  %2382 = vmatprep.subr.bf16.mxu0 0
  %2383 = vmatpush1.bf16.msra.mxu0 %v801
  %2384 = vmatprep.subr.bf16.mxu0 0
  %2385 = vmatpush1.bf16.msra.mxu0 %v802
  %2386 = vmatprep.subr.bf16.mxu0 0
  %2387 = vmatpush1.bf16.msra.mxu0 %v803
  %2388 = vmatprep.subr.bf16.mxu0 0
  %2389 = vmatpush1.bf16.msra.mxu0 %v804
  %2390 = vmatprep.subr.bf16.mxu0 0
  %2391 = vmatpush1.bf16.msra.mxu0 %v805
  %2392 = vmatprep.subr.bf16.mxu0 0
  %2393 = vmatpush1.bf16.msra.mxu0 %v806
  %2394 = vmatprep.subr.bf16.mxu0 0
  %2395 = vmatpush1.bf16.msra.mxu0 %v807
  %2396 = vmatprep.subr.bf16.mxu0 0
  %2397 = vmatpush1.bf16.msra.mxu0 %v808
  %2398 = vmatprep.subr.bf16.mxu0 0
  %2399 = vmatpush1.bf16.msra.mxu0 %v809
  %2400 = vmatprep.mubr.bf16.mxu0 %v37
  %2401 = vmatmul.mubr.bf16.gmra.mrb[0].mxu0 %v34
  %v2402 = vpop.f32.mrb[0].mxu0
  %v2403 = vadd.f32 %v2363, %v2402
  %v2404 = vpop.f32.mrb[0].mxu0
  %v2405 = vpop.f32.mrb[0].mxu0
  %v2406 = vpop.f32.mrb[0].mxu0
  %2407 = vdwg.mxu0
  %2408 = vmatprep.subr.bf16.mxu0 0
  %2409 = vmatpush1.bf16.msra.mxu0 %v810
  %2410 = vmatprep.subr.bf16.mxu0 0
  %2411 = vmatpush1.bf16.msra.mxu0 %v811
  %2412 = vmatprep.subr.bf16.mxu0 0
  %2413 = vmatpush1.bf16.msra.mxu0 %v812
  %2414 = vmatprep.subr.bf16.mxu0 0
  %2415 = vmatpush1.bf16.msra.mxu0 %v813
  %2416 = vmatprep.subr.bf16.mxu0 0
  %2417 = vmatpush1.bf16.msra.mxu0 %v814
  %2418 = vmatprep.subr.bf16.mxu0 0
  %2419 = vmatpush1.bf16.msra.mxu0 %v815
  %2420 = vmatprep.subr.bf16.mxu0 0
  %2421 = vmatpush1.bf16.msra.mxu0 %v816
  %2422 = vmatprep.subr.bf16.mxu0 0
  %2423 = vmatpush1.bf16.msra.mxu0 %v817
  %2424 = vmatprep.subr.bf16.mxu0 0
  %2425 = vmatpush1.bf16.msra.mxu0 %v818
  %2426 = vmatprep.subr.bf16.mxu0 0
  %2427 = vmatpush1.bf16.msra.mxu0 %v819
  %2428 = vmatprep.subr.bf16.mxu0 0
  %2429 = vmatpush1.bf16.msra.mxu0 %v820
  %2430 = vmatprep.subr.bf16.mxu0 0
  %2431 = vmatpush1.bf16.msra.mxu0 %v821
  %2432 = vmatprep.subr.bf16.mxu0 0
  %2433 = vmatpush1.bf16.msra.mxu0 %v822
  %2434 = vmatprep.subr.bf16.mxu0 0
  %2435 = vmatpush1.bf16.msra.mxu0 %v823
  %2436 = vmatprep.subr.bf16.mxu0 0
  %2437 = vmatpush1.bf16.msra.mxu0 %v824
  %2438 = vmatprep.subr.bf16.mxu0 0
  %2439 = vmatpush1.bf16.msra.mxu0 %v825
  %2440 = vmatprep.mubr.bf16.mxu0 %v39
  %2441 = vmatmul.mubr.bf16.gmra.mrb[0].mxu0 %v38
  %v2442 = vpop.f32.mrb[0].mxu0
  %v2443 = vadd.f32 %v2403, %v2442
  %v2444 = vpop.f32.mrb[0].mxu0
  %v2445 = vpop.f32.mrb[0].mxu0
  %v2446 = vpop.f32.mrb[0].mxu0
  %2447 = vdwg.mxu0
  %2448 = vmatprep.subr.bf16.mxu0 0
  %2449 = vmatpush1.bf16.msra.mxu0 %v826
  %2450 = vmatprep.subr.bf16.mxu0 0
  %2451 = vmatpush1.bf16.msra.mxu0 %v827
  %2452 = vmatprep.subr.bf16.mxu0 0
  %2453 = vmatpush1.bf16.msra.mxu0 %v828
  %2454 = vmatprep.subr.bf16.mxu0 0
  %2455 = vmatpush1.bf16.msra.mxu0 %v829
  %2456 = vmatprep.subr.bf16.mxu0 0
  %2457 = vmatpush1.bf16.msra.mxu0 %v830
  %2458 = vmatprep.subr.bf16.mxu0 0
  %2459 = vmatpush1.bf16.msra.mxu0 %v831
  %2460 = vmatprep.subr.bf16.mxu0 0
  %2461 = vmatpush1.bf16.msra.mxu0 %v832
  %2462 = vmatprep.subr.bf16.mxu0 0
  %2463 = vmatpush1.bf16.msra.mxu0 %v833
  %2464 = vmatprep.subr.bf16.mxu0 0
  %2465 = vmatpush1.bf16.msra.mxu0 %v834
  %2466 = vmatprep.subr.bf16.mxu0 0
  %2467 = vmatpush1.bf16.msra.mxu0 %v835
  %2468 = vmatprep.subr.bf16.mxu0 0
  %2469 = vmatpush1.bf16.msra.mxu0 %v836
  %2470 = vmatprep.subr.bf16.mxu0 0
  %2471 = vmatpush1.bf16.msra.mxu0 %v837
  %2472 = vmatprep.subr.bf16.mxu0 0
  %2473 = vmatpush1.bf16.msra.mxu0 %v838
  %2474 = vmatprep.subr.bf16.mxu0 0
  %2475 = vmatpush1.bf16.msra.mxu0 %v839
  %2476 = vmatprep.subr.bf16.mxu0 0
  %2477 = vmatpush1.bf16.msra.mxu0 %v840
  %2478 = vmatprep.subr.bf16.mxu0 0
  %2479 = vmatpush1.bf16.msra.mxu0 %v841
  %2480 = vmatprep.mubr.bf16.mxu0 %v43
  %2481 = vmatmul.mubr.bf16.gmra.mrb[0].mxu0 %v42
  %v2482 = vpop.f32.mrb[0].mxu0
  %v2483 = vadd.f32 %v2443, %v2482
  %v2484 = vpop.f32.mrb[0].mxu0
  %v2485 = vpop.f32.mrb[0].mxu0
  %v2486 = vpop.f32.mrb[0].mxu0
  %2487 = vdwg.mxu0
  %2488 = vmatprep.subr.bf16.mxu0 0
  %2489 = vmatpush1.bf16.msra.mxu0 %v842
  %2490 = vmatprep.subr.bf16.mxu0 0
  %2491 = vmatpush1.bf16.msra.mxu0 %v843
  %2492 = vmatprep.subr.bf16.mxu0 0
  %2493 = vmatpush1.bf16.msra.mxu0 %v844
  %2494 = vmatprep.subr.bf16.mxu0 0
  %2495 = vmatpush1.bf16.msra.mxu0 %v845
  %2496 = vmatprep.subr.bf16.mxu0 0
  %2497 = vmatpush1.bf16.msra.mxu0 %v846
  %2498 = vmatprep.subr.bf16.mxu0 0
  %2499 = vmatpush1.bf16.msra.mxu0 %v847
  %2500 = vmatprep.subr.bf16.mxu0 0
  %2501 = vmatpush1.bf16.msra.mxu0 %v848
  %2502 = vmatprep.subr.bf16.mxu0 0
  %2503 = vmatpush1.bf16.msra.mxu0 %v849
  %2504 = vmatprep.subr.bf16.mxu0 0
  %2505 = vmatpush1.bf16.msra.mxu0 0
  %2506 = vmatprep.subr.bf16.mxu0 0
  %2507 = vmatpush1.bf16.msra.mxu0 0
  %2508 = vmatprep.subr.bf16.mxu0 0
  %2509 = vmatpush1.bf16.msra.mxu0 0
  %2510 = vmatprep.subr.bf16.mxu0 0
  %2511 = vmatpush1.bf16.msra.mxu0 0
  %2512 = vmatprep.subr.bf16.mxu0 0
  %2513 = vmatpush1.bf16.msra.mxu0 0
  %2514 = vmatprep.subr.bf16.mxu0 0
  %2515 = vmatpush1.bf16.msra.mxu0 0
  %2516 = vmatprep.subr.bf16.mxu0 0
  %2517 = vmatpush1.bf16.msra.mxu0 0
  %2518 = vmatprep.subr.bf16.mxu0 0
  %2519 = vmatpush1.bf16.msra.mxu0 0
  %2520 = vmatprep.mubr.bf16.mxu0 0
  %2521 = vmatmul.mubr.bf16.gmra.mrb[0].mxu0 %v44
  %v2522 = vpop.f32.mrb[0].mxu0
  %v2523 = vadd.f32 %v2483, %v2522
  %v2524 = vpop.f32.mrb[0].mxu0
  %v2525 = vpop.f32.mrb[0].mxu0
  %v2526 = vpop.f32.mrb[0].mxu0
  %2527 = vdwg.mxu0
  %v2528 = vmax.f32 %v2327, %v2523
  %2529 = vmatprep.subr.bf16.mxu0 0
  %2530 = vmatpush1.bf16.msra.mxu0 %v778
  %2531 = vmatprep.subr.bf16.mxu0 0
  %2532 = vmatpush1.bf16.msra.mxu0 %v779
  %2533 = vmatprep.subr.bf16.mxu0 0
  %2534 = vmatpush1.bf16.msra.mxu0 %v780
  %2535 = vmatprep.subr.bf16.mxu0 0
  %2536 = vmatpush1.bf16.msra.mxu0 %v781
  %2537 = vmatprep.subr.bf16.mxu0 0
  %2538 = vmatpush1.bf16.msra.mxu0 %v782
  %2539 = vmatprep.subr.bf16.mxu0 0
  %2540 = vmatpush1.bf16.msra.mxu0 %v783
  %2541 = vmatprep.subr.bf16.mxu0 0
  %2542 = vmatpush1.bf16.msra.mxu0 %v784
  %2543 = vmatprep.subr.bf16.mxu0 0
  %2544 = vmatpush1.bf16.msra.mxu0 %v785
  %2545 = vmatprep.subr.bf16.mxu0 0
  %2546 = vmatpush1.bf16.msra.mxu0 %v786
  %2547 = vmatprep.subr.bf16.mxu0 0
  %2548 = vmatpush1.bf16.msra.mxu0 %v787
  %2549 = vmatprep.subr.bf16.mxu0 0
  %2550 = vmatpush1.bf16.msra.mxu0 %v788
  %2551 = vmatprep.subr.bf16.mxu0 0
  %2552 = vmatpush1.bf16.msra.mxu0 %v789
  %2553 = vmatprep.subr.bf16.mxu0 0
  %2554 = vmatpush1.bf16.msra.mxu0 %v790
  %2555 = vmatprep.subr.bf16.mxu0 0
  %2556 = vmatpush1.bf16.msra.mxu0 %v791
  %2557 = vmatprep.subr.bf16.mxu0 0
  %2558 = vmatpush1.bf16.msra.mxu0 %v792
  %2559 = vmatprep.subr.bf16.mxu0 0
  %2560 = vmatpush1.bf16.msra.mxu0 %v793
  %2561 = vmatprep.mubr.bf16.mxu0 %v34
  %2562 = vmatmul.mubr.bf16.gmra.mrb[0].mxu0 %v33
  %v2563 = vpop.f32.mrb[0].mxu0
  %v2564 = vadd.f32 0.0, %v2563
  %v2565 = vpop.f32.mrb[0].mxu0
  %v2566 = vpop.f32.mrb[0].mxu0
  %v2567 = vpop.f32.mrb[0].mxu0
  %2568 = vdwg.mxu0
  %2569 = vmatprep.subr.bf16.mxu0 0
  %2570 = vmatpush1.bf16.msra.mxu0 %v794
  %2571 = vmatprep.subr.bf16.mxu0 0
  %2572 = vmatpush1.bf16.msra.mxu0 %v795
  %2573 = vmatprep.subr.bf16.mxu0 0
  %2574 = vmatpush1.bf16.msra.mxu0 %v796
  %2575 = vmatprep.subr.bf16.mxu0 0
  %2576 = vmatpush1.bf16.msra.mxu0 %v797
  %2577 = vmatprep.subr.bf16.mxu0 0
  %2578 = vmatpush1.bf16.msra.mxu0 %v798
  %2579 = vmatprep.subr.bf16.mxu0 0
  %2580 = vmatpush1.bf16.msra.mxu0 %v799
  %2581 = vmatprep.subr.bf16.mxu0 0
  %2582 = vmatpush1.bf16.msra.mxu0 %v800
  %2583 = vmatprep.subr.bf16.mxu0 0
  %2584 = vmatpush1.bf16.msra.mxu0 %v801
  %2585 = vmatprep.subr.bf16.mxu0 0
  %2586 = vmatpush1.bf16.msra.mxu0 %v802
  %2587 = vmatprep.subr.bf16.mxu0 0
  %2588 = vmatpush1.bf16.msra.mxu0 %v803
  %2589 = vmatprep.subr.bf16.mxu0 0
  %2590 = vmatpush1.bf16.msra.mxu0 %v804
  %2591 = vmatprep.subr.bf16.mxu0 0
  %2592 = vmatpush1.bf16.msra.mxu0 %v805
  %2593 = vmatprep.subr.bf16.mxu0 0
  %2594 = vmatpush1.bf16.msra.mxu0 %v806
  %2595 = vmatprep.subr.bf16.mxu0 0
  %2596 = vmatpush1.bf16.msra.mxu0 %v807
  %2597 = vmatprep.subr.bf16.mxu0 0
  %2598 = vmatpush1.bf16.msra.mxu0 %v808
  %2599 = vmatprep.subr.bf16.mxu0 0
  %2600 = vmatpush1.bf16.msra.mxu0 %v809
  %2601 = vmatprep.mubr.bf16.mxu0 %v38
  %2602 = vmatmul.mubr.bf16.gmra.mrb[0].mxu0 %v35
  %v2603 = vpop.f32.mrb[0].mxu0
  %v2604 = vadd.f32 %v2564, %v2603
  %v2605 = vpop.f32.mrb[0].mxu0
  %v2606 = vpop.f32.mrb[0].mxu0
  %v2607 = vpop.f32.mrb[0].mxu0
  %2608 = vdwg.mxu0
  %2609 = vmatprep.subr.bf16.mxu0 0
  %2610 = vmatpush1.bf16.msra.mxu0 %v810
  %2611 = vmatprep.subr.bf16.mxu0 0
  %2612 = vmatpush1.bf16.msra.mxu0 %v811
  %2613 = vmatprep.subr.bf16.mxu0 0
  %2614 = vmatpush1.bf16.msra.mxu0 %v812
  %2615 = vmatprep.subr.bf16.mxu0 0
  %2616 = vmatpush1.bf16.msra.mxu0 %v813
  %2617 = vmatprep.subr.bf16.mxu0 0
  %2618 = vmatpush1.bf16.msra.mxu0 %v814
  %2619 = vmatprep.subr.bf16.mxu0 0
  %2620 = vmatpush1.bf16.msra.mxu0 %v815
  %2621 = vmatprep.subr.bf16.mxu0 0
  %2622 = vmatpush1.bf16.msra.mxu0 %v816
  %2623 = vmatprep.subr.bf16.mxu0 0
  %2624 = vmatpush1.bf16.msra.mxu0 %v817
  %2625 = vmatprep.subr.bf16.mxu0 0
  %2626 = vmatpush1.bf16.msra.mxu0 %v818
  %2627 = vmatprep.subr.bf16.mxu0 0
  %2628 = vmatpush1.bf16.msra.mxu0 %v819
  %2629 = vmatprep.subr.bf16.mxu0 0
  %2630 = vmatpush1.bf16.msra.mxu0 %v820
  %2631 = vmatprep.subr.bf16.mxu0 0
  %2632 = vmatpush1.bf16.msra.mxu0 %v821
  %2633 = vmatprep.subr.bf16.mxu0 0
  %2634 = vmatpush1.bf16.msra.mxu0 %v822
  %2635 = vmatprep.subr.bf16.mxu0 0
  %2636 = vmatpush1.bf16.msra.mxu0 %v823
  %2637 = vmatprep.subr.bf16.mxu0 0
  %2638 = vmatpush1.bf16.msra.mxu0 %v824
  %2639 = vmatprep.subr.bf16.mxu0 0
  %2640 = vmatpush1.bf16.msra.mxu0 %v825
  %2641 = vmatprep.mubr.bf16.mxu0 %v40
  %2642 = vmatmul.mubr.bf16.gmra.mrb[0].mxu0 %v39
  %v2643 = vpop.f32.mrb[0].mxu0
  %v2644 = vadd.f32 %v2604, %v2643
  %v2645 = vpop.f32.mrb[0].mxu0
  %v2646 = vpop.f32.mrb[0].mxu0
  %v2647 = vpop.f32.mrb[0].mxu0
  %2648 = vdwg.mxu0
  %2649 = vmatprep.subr.bf16.mxu0 0
  %2650 = vmatpush1.bf16.msra.mxu0 %v826
  %2651 = vmatprep.subr.bf16.mxu0 0
  %2652 = vmatpush1.bf16.msra.mxu0 %v827
  %2653 = vmatprep.subr.bf16.mxu0 0
  %2654 = vmatpush1.bf16.msra.mxu0 %v828
  %2655 = vmatprep.subr.bf16.mxu0 0
  %2656 = vmatpush1.bf16.msra.mxu0 %v829
  %2657 = vmatprep.subr.bf16.mxu0 0
  %2658 = vmatpush1.bf16.msra.mxu0 %v830
  %2659 = vmatprep.subr.bf16.mxu0 0
  %2660 = vmatpush1.bf16.msra.mxu0 %v831
  %2661 = vmatprep.subr.bf16.mxu0 0
  %2662 = vmatpush1.bf16.msra.mxu0 %v832
  %2663 = vmatprep.subr.bf16.mxu0 0
  %2664 = vmatpush1.bf16.msra.mxu0 %v833
  %2665 = vmatprep.subr.bf16.mxu0 0
  %2666 = vmatpush1.bf16.msra.mxu0 %v834
  %2667 = vmatprep.subr.bf16.mxu0 0
  %2668 = vmatpush1.bf16.msra.mxu0 %v835
  %2669 = vmatprep.subr.bf16.mxu0 0
  %2670 = vmatpush1.bf16.msra.mxu0 %v836
  %2671 = vmatprep.subr.bf16.mxu0 0
  %2672 = vmatpush1.bf16.msra.mxu0 %v837
  %2673 = vmatprep.subr.bf16.mxu0 0
  %2674 = vmatpush1.bf16.msra.mxu0 %v838
  %2675 = vmatprep.subr.bf16.mxu0 0
  %2676 = vmatpush1.bf16.msra.mxu0 %v839
  %2677 = vmatprep.subr.bf16.mxu0 0
  %2678 = vmatpush1.bf16.msra.mxu0 %v840
  %2679 = vmatprep.subr.bf16.mxu0 0
  %2680 = vmatpush1.bf16.msra.mxu0 %v841
  %2681 = vmatprep.mubr.bf16.mxu0 %v44
  %2682 = vmatmul.mubr.bf16.gmra.mrb[0].mxu0 %v43
  %v2683 = vpop.f32.mrb[0].mxu0
  %v2684 = vadd.f32 %v2644, %v2683
  %v2685 = vpop.f32.mrb[0].mxu0
  %v2686 = vpop.f32.mrb[0].mxu0
  %v2687 = vpop.f32.mrb[0].mxu0
  %2688 = vdwg.mxu0
  %2689 = vmatprep.subr.bf16.mxu0 0
  %2690 = vmatpush1.bf16.msra.mxu0 %v842
  %2691 = vmatprep.subr.bf16.mxu0 0
  %2692 = vmatpush1.bf16.msra.mxu0 %v843
  %2693 = vmatprep.subr.bf16.mxu0 0
  %2694 = vmatpush1.bf16.msra.mxu0 %v844
  %2695 = vmatprep.subr.bf16.mxu0 0
  %2696 = vmatpush1.bf16.msra.mxu0 %v845
  %2697 = vmatprep.subr.bf16.mxu0 0
  %2698 = vmatpush1.bf16.msra.mxu0 %v846
  %2699 = vmatprep.subr.bf16.mxu0 0
  %2700 = vmatpush1.bf16.msra.mxu0 %v847
  %2701 = vmatprep.subr.bf16.mxu0 0
  %2702 = vmatpush1.bf16.msra.mxu0 %v848
  %2703 = vmatprep.subr.bf16.mxu0 0
  %2704 = vmatpush1.bf16.msra.mxu0 %v849
  %2705 = vmatprep.subr.bf16.mxu0 0
  %2706 = vmatpush1.bf16.msra.mxu0 0
  %2707 = vmatprep.subr.bf16.mxu0 0
  %2708 = vmatpush1.bf16.msra.mxu0 0
  %2709 = vmatprep.subr.bf16.mxu0 0
  %2710 = vmatpush1.bf16.msra.mxu0 0
  %2711 = vmatprep.subr.bf16.mxu0 0
  %2712 = vmatpush1.bf16.msra.mxu0 0
  %2713 = vmatprep.subr.bf16.mxu0 0
  %2714 = vmatpush1.bf16.msra.mxu0 0
  %2715 = vmatprep.subr.bf16.mxu0 0
  %2716 = vmatpush1.bf16.msra.mxu0 0
  %2717 = vmatprep.subr.bf16.mxu0 0
  %2718 = vmatpush1.bf16.msra.mxu0 0
  %2719 = vmatprep.subr.bf16.mxu0 0
  %2720 = vmatpush1.bf16.msra.mxu0 0
  %2721 = vmatprep.mubr.bf16.mxu0 0
  %2722 = vmatmul.mubr.bf16.gmra.mrb[0].mxu0 %v45
  %v2723 = vpop.f32.mrb[0].mxu0
  %v2724 = vadd.f32 %v2684, %v2723
  %v2725 = vpop.f32.mrb[0].mxu0
  %v2726 = vpop.f32.mrb[0].mxu0
  %v2727 = vpop.f32.mrb[0].mxu0
  %2728 = vdwg.mxu0
  %v2729 = vmax.f32 %v2528, %v2724
  %v2730 = vadd.f32 %v2729, %v345
  %v2731 = vld [vmem:[%s3] sm:$0x1]
  %v2733 = vlaneseq
  %v2734 = vshrl.u32 %v2733, 7
  %v2735 = vsub.s32 0, %v2734
  %v2736 = vrot.slane %v2731, %v2735
  %v2738 = vadd.f32 %v2730, %v2736
  %v2739 = vpack.c.bf16 %v2738, %v2738
  %2740 = vst [vmem:[%s4] sm:$0xf] %v2739
  %v2741 = vadd.f32 %v2738, 0.0
  %2742 = vst [vmem:[%s5] sm:$0xff] %v2741
  %v2743 = vmul.f32 %v2738, %v2738
  %v2744 = vadd.f32 %v2743, 0.0
  %2745 = vst [vmem:[%s6] sm:$0xff] %v2744
  // Predicated region
  $region18: #{wcrn_forward.2} parent=0 // pred_check
    _
  $region19: #{wcrn_forward.2} parent=0 // pred_check_branch
    %2747 = sbr.rel (0) target = $region21
  $region20: #{wcrn_forward.2} parent=0 // pred_region
    _
  $region21: #{wcrn_forward.2} parent=0 // pred_fallthru
    _
  // Predicated region
  $region22: #{wcrn_forward.2} parent=0 // pred_check
    _
  $region23: #{wcrn_forward.2} parent=0 // pred_check_branch
    %2749 = sbr.rel (0) target = $region25
  $region24: #{wcrn_forward.2} parent=0 // pred_region
    _
  $region25: #{wcrn_forward.2} parent=0 // pred_fallthru
    _
  // Predicated region
  $region26: #{wcrn_forward.2} parent=0 // pred_check
    _
  $region27: #{wcrn_forward.2} parent=0 // pred_check_branch
    %2751 = sbr.rel (0) target = $region29
  $region28: #{wcrn_forward.2} parent=0 // pred_region
    _
  $region29: #{wcrn_forward.2} parent=0 // pred_fallthru
    _
  // Predicated region
  $region30: #{wcrn_forward.2} parent=0 // pred_check
    _
  $region31: #{wcrn_forward.2} parent=0 // pred_check_branch
    %2753 = sbr.rel (0) target = $region33
  $region32: #{wcrn_forward.2} parent=0 // pred_region
    _
  $region33: #{wcrn_forward.2} parent=0 // pred_fallthru
    _
  // Predicated region
  $region34: #{wcrn_forward.2} parent=0 // pred_check
    _
  $region35: #{wcrn_forward.2} parent=0 // pred_check_branch
    %2755 = sbr.rel (0) target = $region37
  $region36: #{wcrn_forward.2} parent=0 // pred_region
    _
  $region37: #{wcrn_forward.2} parent=0 // pred_fallthru
    _
  // Predicated region
  $region38: #{wcrn_forward.2} parent=0 // pred_check
    _
  $region39: #{wcrn_forward.2} parent=0 // pred_check_branch
    %2757 = sbr.rel (0) target = $region41
  $region40: #{wcrn_forward.2} parent=0 // pred_region
    _
  $region41: #{wcrn_forward.2} parent=0 // pred_fallthru
    _

</llo_original>
